<compile_context>
chip_gen: v7x
topology: tpu7x:2x2x1
jax: 0.10.0
libtpu: 0.0.40
codegen_flags: <defaults>
</compile_context>

<pallas_src>
import math
import functools

import jax
import jax.numpy as jnp
from jax.experimental import pallas as pl
from jax.experimental.pallas import tpu as pltpu


_VMEM_LIMIT = 32 * 1024 * 1024


# --------------------------------------------------------------------------
# Shared in-kernel pieces.
# --------------------------------------------------------------------------
def _tri_bf16(n, *, lower):
    """(n, n) bf16 triangular ones, built in-kernel (iota compare; no HBM DMA)."""
    r = jax.lax.broadcasted_iota(jnp.int32, (n, n), 0)
    c = jax.lax.broadcasted_iota(jnp.int32, (n, n), 1)
    cond = (c <= r) if lower else (r <= c)
    return jnp.where(cond, 1.0, 0.0).astype(jnp.bfloat16)


def _masked_cumsums(mask_ref, *, normalize, scale, approx_reciprocal):
    """not_mask cumsums over H (y) and W (x), plus the -0.5/normalize/scale step.

    mask_ref: (1, H, W) int8 (1 = padded, 0 = valid).  Returns two (H, W) f32.
    The bf16 matmul operands are exact 0/1 and accumulation is f32, so the
    counts are exact for any H, W.
    """
    H = mask_ref.shape[1]
    W = mask_ref.shape[2]
    not_mask = (1.0 - mask_ref[0].astype(jnp.float32)).astype(jnp.bfloat16)  # (H, W)

    tri_h = _tri_bf16(H, lower=True)    # (H, H) lower-tri -> inclusive cumsum over rows
    tri_w = _tri_bf16(W, lower=False)   # (W, W) upper-tri -> inclusive cumsum over cols

    y_embed = jnp.dot(tri_h, not_mask, preferred_element_type=jnp.float32)  # (H, W)
    x_embed = jnp.dot(not_mask, tri_w, preferred_element_type=jnp.float32)  # (H, W)

    if normalize:
        eps = 1e-6
        # Normalizers are (1, W) / (H, 1): one reciprocal per row/col, then a multiply.
        inv_y = pl.reciprocal(y_embed[H - 1:H, :] + eps, approx=approx_reciprocal) * scale
        inv_x = pl.reciprocal(x_embed[:, W - 1:W] + eps, approx=approx_reciprocal) * scale
        y_embed = (y_embed - 0.5) * inv_y
        x_embed = (x_embed - 0.5) * inv_x
    else:
        y_embed = (y_embed - 0.5) * scale
        x_embed = (x_embed - 0.5) * scale
    return y_embed, x_embed


# --------------------------------------------------------------------------
# Fused kernel (small / typical feature maps): cumsums + sine in one body.
# --------------------------------------------------------------------------
def _fused_kernel(mask_ref, inv_ref, phase_ref, out_ref, *,
                  normalize, scale, num_pos_feats, approx_reciprocal):
    # mask_ref : (1, H, W) int8
    # inv_ref  : (F, 1, 1) f32   1 / dim_t
    # phase_ref: (F, 1, 1) f32   0 (even ch) or pi/2 (odd ch):  cos(x) = sin(x + pi/2)
    # out_ref  : (1, 2F, H, W)   [pos_y ; pos_x]
    F = num_pos_feats
    y_embed, x_embed = _masked_cumsums(
        mask_ref, normalize=normalize, scale=scale,
        approx_reciprocal=approx_reciprocal)

    inv = inv_ref[...]     # (F, 1, 1)
    ph = phase_ref[...]    # (F, 1, 1)
    out_ref[0, 0:F] = jnp.sin(y_embed[None, :, :] * inv + ph).astype(out_ref.dtype)
    out_ref[0, F:2 * F] = jnp.sin(x_embed[None, :, :] * inv + ph).astype(out_ref.dtype)


# --------------------------------------------------------------------------
# Split path, kernel 1: cumsums + normalize/scale -> (B, 2, H, W) f32.
# --------------------------------------------------------------------------
def _cumsum_kernel(mask_ref, yx_ref, *, normalize, scale, approx_reciprocal):
    y_embed, x_embed = _masked_cumsums(
        mask_ref, normalize=normalize, scale=scale,
        approx_reciprocal=approx_reciprocal)
    yx_ref[0, 0] = y_embed
    yx_ref[0, 1] = x_embed


# --------------------------------------------------------------------------
# Split path, kernel 2: lane-dense phase-folded sine over (2F, T) tiles.
# --------------------------------------------------------------------------
def _sine_kernel(yx_ref, inv_ref, phase_ref, out_ref, *, num_pos_feats):
    # yx_ref   : (1, 2, T) f32   [y_embed_flat ; x_embed_flat] (already scaled)
    # inv_ref  : (F, 1) f32, phase_ref: (F, 1) f32
    # out_ref  : (1, 2F, T)      [pos_y ; pos_x]
    F = num_pos_feats
    yx = yx_ref[0]                 # (2, T)
    y = yx[0:1, :]                 # (1, T)
    x = yx[1:2, :]                 # (1, T)
    inv = inv_ref[...]             # (F, 1)
    ph = phase_ref[...]            # (F, 1)
    out_ref[0, 0:F] = jnp.sin(y * inv + ph).astype(out_ref.dtype)
    out_ref[0, F:2 * F] = jnp.sin(x * inv + ph).astype(out_ref.dtype)


def _pick_hw_tile(hw, two_f, out_bytes):
    """Lane-aligned tile over flat H*W; prefer a divisor of hw (no masked tail)."""
    if hw <= 1024:
        return hw
    budget = 4 * 1024 * 1024                      # out block bytes; x2 buffers <= ~8 MiB
    t_max = min(hw, max(budget // (two_f * out_bytes), 128))
    t_max = max((t_max // 128) * 128, 128)
    if t_max >= hw:
        return hw
    for t in range(t_max, 127, -128):             # largest lane-aligned divisor of hw
        if hw % t == 0:
            return t
    return t_max                                  # masked epilogue tile (still correct)


# --------------------------------------------------------------------------
# Wrapper.
# --------------------------------------------------------------------------
def position_embedding_sine(mask, *, num_pos_feats=64, temperature=10000,
                            normalize=False, scale=None, out_dtype=jnp.float32,
                            fuse=None, approx_reciprocal=False):
    """mask: (B, H, W) bool/int (True/1 = padded). Returns (B, 2*num_pos_feats, H, W)."""
    if scale is not None and normalize is False:
        raise ValueError('normalize should be True if scale is passed')
    if scale is None:
        scale = 2 * math.pi
    scale = float(scale)

    B, H, W = mask.shape
    F = num_pos_feats
    HW = H * W
    out_bytes = jnp.dtype(out_dtype).itemsize

    # int8 mask: 4x less HBM->VMEM DMA than int32; (1 - m)/bf16 cast is in-kernel.
    mask_i8 = mask.astype(jnp.int8)

    # Per-channel constants (tiny; built once on host, constant index_maps).
    f = jnp.arange(F, dtype=jnp.float32)
    dim_t = jnp.asarray(temperature, jnp.float32) ** (2.0 * jnp.floor(f / 2.0) / F)
    inv_dim_t = 1.0 / dim_t                                             # (F,)
    phase = (jnp.arange(F) % 2).astype(jnp.float32) * (math.pi / 2.0)   # (F,)

    if fuse is None:
        # Fuse when the whole per-batch output block (plus ~3-4x f32 temporaries
        # and the in-kernel tri matrices) comfortably fits scoped VMEM.
        fuse = (2 * F * HW * out_bytes <= (2 << 20)) and max(H, W) <= 512

    if fuse:
        kern = functools.partial(
            _fused_kernel, normalize=normalize, scale=scale,
            num_pos_feats=F, approx_reciprocal=approx_reciprocal)
        return pl.pallas_call(
            kern,
            out_shape=jax.ShapeDtypeStruct((B, 2 * F, H, W), out_dtype),
            grid=(B,),
            in_specs=[pl.BlockSpec((1, H, W), lambda b: (b, 0, 0)),
                      pl.BlockSpec((F, 1, 1), lambda b: (0, 0, 0)),
                      pl.BlockSpec((F, 1, 1), lambda b: (0, 0, 0))],
            out_specs=pl.BlockSpec((1, 2 * F, H, W), lambda b: (b, 0, 0, 0)),
            compiler_params=pltpu.CompilerParams(
                dimension_semantics=("parallel",),
                vmem_limit_bytes=_VMEM_LIMIT),
        )(mask_i8, inv_dim_t.reshape(F, 1, 1), phase.reshape(F, 1, 1))

    # ---------------- split path (large feature maps) ----------------
    # TODO(synk): for image-resolution masks on v7x (32 MiB scoped / 64 MiB phys
    # VMEM), add a second "parallel" W-block axis to the cumsum kernel so both
    # TensorCores stay busy at B == 1 and per-step VMEM stays bounded.
    cumsum_kern = functools.partial(
        _cumsum_kernel, normalize=normalize, scale=scale,
        approx_reciprocal=approx_reciprocal)
    yx = pl.pallas_call(
        cumsum_kern,
        out_shape=jax.ShapeDtypeStruct((B, 2, H, W), jnp.float32),
        grid=(B,),
        in_specs=[pl.BlockSpec((1, H, W), lambda b: (b, 0, 0))],
        out_specs=pl.BlockSpec((1, 2, H, W), lambda b: (b, 0, 0, 0)),
        compiler_params=pltpu.CompilerParams(
            dimension_semantics=("parallel",),
            vmem_limit_bytes=_VMEM_LIMIT),
    )(mask_i8)

    yx_flat = yx.reshape(B, 2, HW)   # merge of trailing dims: free
    T = _pick_hw_tile(HW, 2 * F, out_bytes)
    num_t = pl.cdiv(HW, T)
    sine_kern = functools.partial(_sine_kernel, num_pos_feats=F)
    pos_flat = pl.pallas_call(
        sine_kern,
        out_shape=jax.ShapeDtypeStruct((B, 2 * F, HW), out_dtype),
        grid=(B, num_t),
        in_specs=[pl.BlockSpec((1, 2, T), lambda b, t: (b, 0, t)),
                  pl.BlockSpec((F, 1), lambda b, t: (0, 0)),
                  pl.BlockSpec((F, 1), lambda b, t: (0, 0))],
        out_specs=pl.BlockSpec((1, 2 * F, T), lambda b, t: (b, 0, t)),
        compiler_params=pltpu.CompilerParams(
            dimension_semantics=("parallel", "parallel"),
            vmem_limit_bytes=_VMEM_LIMIT),
    )(yx_flat, inv_dim_t.reshape(F, 1), phase.reshape(F, 1))

    return pos_flat.reshape(B, 2 * F, H, W)   # split of trailing dim: free


# --------------------------------------------------------------------------
# Pure-JAX transliteration of the PyTorch forward, for verification.
# --------------------------------------------------------------------------
def _reference(mask, *, num_pos_feats, temperature, normalize, scale):
    not_mask = (~mask).astype(jnp.float32)
    y_embed = jnp.cumsum(not_mask, axis=1)
    x_embed = jnp.cumsum(not_mask, axis=2)
    if normalize:
        eps = 1e-6
        y_embed = (y_embed - 0.5) / (y_embed[:, -1:, :] + eps) * scale
        x_embed = (x_embed - 0.5) / (x_embed[:, :, -1:] + eps) * scale
    else:
        y_embed = (y_embed - 0.5) * scale
        x_embed = (x_embed - 0.5) * scale
    dim_t = jnp.arange(num_pos_feats, dtype=jnp.float32)
    dim_t = temperature ** (2 * jnp.floor(dim_t / 2) / num_pos_feats)
    pos_x = x_embed[:, :, :, None] / dim_t
    pos_y = y_embed[:, :, :, None] / dim_t
    B, H, W = mask.shape
    pos_x = jnp.stack((jnp.sin(pos_x[..., 0::2]), jnp.cos(pos_x[..., 1::2])),
                      axis=4).reshape(B, H, W, -1)
    pos_y = jnp.stack((jnp.sin(pos_y[..., 0::2]), jnp.cos(pos_y[..., 1::2])),
                      axis=4).reshape(B, H, W, -1)
    pos = jnp.concatenate((pos_y, pos_x), axis=3).transpose(0, 3, 1, 2)
    return pos


if __name__ == "__main__":
    B, C, H, W = 2, 4, 16, 16
    num_pos_feats = 8          # -> 16 output channels
    temperature = 10000

    key = jax.random.PRNGKey(0)
    kx, km = jax.random.split(key)
    # NCHW image tensor; the reference forward never reads its values.
    x = jax.random.normal(kx, (B, C, H, W), dtype=jnp.float32)
    mask = jax.random.bernoulli(km, 0.3, (B, H, W))             # True = padded

    ok = True
    for normalize, scale in [(False, None), (True, None), (True, 3.0)]:
        ref = _reference(
            mask, num_pos_feats=num_pos_feats, temperature=temperature,
            normalize=normalize,
            scale=(2 * math.pi if scale is None else scale))

        # Fused path (auto-selected for small maps), f32 output.
        out = position_embedding_sine(
            mask, num_pos_feats=num_pos_feats, temperature=temperature,
            normalize=normalize, scale=scale)
        out = jax.block_until_ready(out)
        assert out.shape == (B, 2 * num_pos_feats, H, W)
        assert out.dtype == jnp.float32
        # Tolerance covers the exact cos(x)=sin(x+pi/2) fold and
        # reciprocal-multiply vs divide (few-ulp differences at |arg|~1e2).
        ok &= bool(jnp.allclose(out, ref, atol=2e-4, rtol=2e-4))

        # Split two-kernel path (used for large maps), forced here to test it.
        out_s = jax.block_until_ready(position_embedding_sine(
            mask, num_pos_feats=num_pos_feats, temperature=temperature,
            normalize=normalize, scale=scale, fuse=False))
        assert out_s.shape == (B, 2 * num_pos_feats, H, W)
        ok &= bool(jnp.allclose(out_s, ref, atol=2e-4, rtol=2e-4))

    # bf16 output (recommended on v5e/v6e where the sine write-back is HBM-bound).
    ref_n = _reference(mask, num_pos_feats=num_pos_feats, temperature=temperature,
                       normalize=True, scale=2 * math.pi)
    out_bf = jax.block_until_ready(position_embedding_sine(
        mask, num_pos_feats=num_pos_feats, temperature=temperature,
        normalize=True, out_dtype=jnp.bfloat16))
    assert out_bf.dtype == jnp.bfloat16
    ok &= bool(jnp.allclose(out_bf.astype(jnp.float32), ref_n, atol=3e-2, rtol=3e-2))

    # EUP approximate reciprocal for the normalizers (loose accuracy check only).
    out_ap = jax.block_until_ready(position_embedding_sine(
        mask, num_pos_feats=num_pos_feats, temperature=temperature,
        normalize=True, approx_reciprocal=True))
    ok &= bool(jnp.allclose(out_ap, ref_n, atol=5e-2, rtol=5e-2))

    print("KERNEL_OK" if ok else "KERNEL_MISMATCH")
</pallas_src>

<mosaic_0001>
module attributes {stable_mosaic.version = 11 : i64} {
  func.func @_fused_kernel(%arg0: i32, %arg1: memref<1x16x16xi8, #tpu.memory_space<vmem>>, %arg2: memref<8x1x1xf32, #tpu.memory_space<vmem>>, %arg3: memref<8x1x1xf32, #tpu.memory_space<vmem>>, %arg4: memref<1x16x16x16xf32, #tpu.memory_space<vmem>>) attributes {dimension_semantics = [#tpu.dimension_semantics<parallel>], iteration_bounds = array<i64: 2>, scalar_prefetch = 0 : i64, scratch_operands = 0 : i64, tpu.core_type = #tpu.core_type<tc>, window_params = [{transform_indices = @transform_0, window_bounds = array<i64: 1, 16, 16>}, {pipeline_mode = #tpu.pipeline_mode<synchronous>, transform_indices = @transform_1, window_bounds = array<i64: 8, 1, 1>}, {pipeline_mode = #tpu.pipeline_mode<synchronous>, transform_indices = @transform_2, window_bounds = array<i64: 8, 1, 1>}, {transform_indices = @transform_3, window_bounds = array<i64: 1, 16, 16, 16>}]} {
    %c0 = arith.constant 0 : index
    %c0_0 = arith.constant 0 : index
    %c0_1 = arith.constant 0 : index
    %0 = vector.load %arg1[%c0, %c0_0, %c0_1] : memref<1x16x16xi8, #tpu.memory_space<vmem>>, vector<1x16x16xi8>
    %1 = vector.shape_cast %0 : vector<1x16x16xi8> to vector<16x16xi8>
    %2 = arith.sitofp %1 : vector<16x16xi8> to vector<16x16xf32>
    %cst = arith.constant 1.000000e+00 : f32
    %3 = vector.broadcast %cst : f32 to vector<16x16xf32>
    %4 = arith.subf %3, %2 : vector<16x16xf32>
    %5 = arith.truncf %4 : vector<16x16xf32> to vector<16x16xbf16>
    %6 = tpu.iota {dimensions = array<i32: 0>} : vector<16x16xi32>
    %7 = tpu.iota {dimensions = array<i32: 1>} : vector<16x16xi32>
    %8 = arith.cmpi sle, %7, %6 : vector<16x16xi32>
    %cst_2 = arith.constant 1.000000e+00 : f32
    %cst_3 = arith.constant 0.000000e+00 : f32
    %9 = vector.broadcast %cst_2 : f32 to vector<16x16xf32>
    %10 = vector.broadcast %cst_3 : f32 to vector<16x16xf32>
    %11 = arith.select %8, %9, %10 : vector<16x16xi1>, vector<16x16xf32>
    %12 = arith.truncf %11 : vector<16x16xf32> to vector<16x16xbf16>
    %13 = tpu.iota {dimensions = array<i32: 0>} : vector<16x16xi32>
    %14 = tpu.iota {dimensions = array<i32: 1>} : vector<16x16xi32>
    %15 = arith.cmpi sle, %13, %14 : vector<16x16xi32>
    %cst_4 = arith.constant 1.000000e+00 : f32
    %cst_5 = arith.constant 0.000000e+00 : f32
    %16 = vector.broadcast %cst_4 : f32 to vector<16x16xf32>
    %17 = vector.broadcast %cst_5 : f32 to vector<16x16xf32>
    %18 = arith.select %15, %16, %17 : vector<16x16xi1>, vector<16x16xf32>
    %19 = arith.truncf %18 : vector<16x16xf32> to vector<16x16xbf16>
    %cst_6 = arith.constant dense<0.000000e+00> : vector<16x16xf32>
    %20 = tpu.matmul %12, %5, %cst_6 {dimension_numbers = #tpu.dot_dimension_numbers<[1], [0], [0], [1], [0, 0, 1, 1], [], []>} : vector<16x16xbf16>, vector<16x16xbf16>, vector<16x16xf32> -> vector<16x16xf32>
    %cst_7 = arith.constant dense<0.000000e+00> : vector<16x16xf32>
    %21 = tpu.matmul %5, %19, %cst_7 {dimension_numbers = #tpu.dot_dimension_numbers<[1], [0], [0], [1], [0, 0, 1, 1], [], []>} : vector<16x16xbf16>, vector<16x16xbf16>, vector<16x16xf32> -> vector<16x16xf32>
    %cst_8 = arith.constant 5.000000e-01 : f32
    %22 = vector.broadcast %cst_8 : f32 to vector<16x16xf32>
    %23 = arith.subf %20, %22 : vector<16x16xf32>
    %cst_9 = arith.constant 6.28318548 : f32
    %24 = vector.broadcast %cst_9 : f32 to vector<16x16xf32>
    %25 = arith.mulf %23, %24 : vector<16x16xf32>
    %cst_10 = arith.constant 5.000000e-01 : f32
    %26 = vector.broadcast %cst_10 : f32 to vector<16x16xf32>
    %27 = arith.subf %21, %26 : vector<16x16xf32>
    %cst_11 = arith.constant 6.28318548 : f32
    %28 = vector.broadcast %cst_11 : f32 to vector<16x16xf32>
    %29 = arith.mulf %27, %28 : vector<16x16xf32>
    %c0_12 = arith.constant 0 : index
    %c0_13 = arith.constant 0 : index
    %c0_14 = arith.constant 0 : index
    %30 = vector.load %arg2[%c0_12, %c0_13, %c0_14] : memref<8x1x1xf32, #tpu.memory_space<vmem>>, vector<8x1x1xf32>
    %c0_15 = arith.constant 0 : index
    %c0_16 = arith.constant 0 : index
    %c0_17 = arith.constant 0 : index
    %31 = vector.load %arg3[%c0_15, %c0_16, %c0_17] : memref<8x1x1xf32, #tpu.memory_space<vmem>>, vector<8x1x1xf32>
    %32 = vector.shape_cast %25 : vector<16x16xf32> to vector<1x16x16xf32>
    %33 = vector.broadcast %32 : vector<1x16x16xf32> to vector<8x16x16xf32>
    %34 = vector.broadcast %30 : vector<8x1x1xf32> to vector<8x16x16xf32>
    %35 = arith.mulf %33, %34 : vector<8x16x16xf32>
    %36 = vector.broadcast %31 : vector<8x1x1xf32> to vector<8x16x16xf32>
    %37 = arith.addf %35, %36 : vector<8x16x16xf32>
    %38 = math.sin %37 : vector<8x16x16xf32>
    %c0_18 = arith.constant 0 : index
    %c0_19 = arith.constant 0 : index
    %c0_20 = arith.constant 0 : index
    %c0_21 = arith.constant 0 : index
    %39 = vector.load %arg4[%c0_18, %c0_19, %c0_20, %c0_21] : memref<1x16x16x16xf32, #tpu.memory_space<vmem>>, vector<1x8x16x16xf32>
    %40 = vector.shape_cast %39 : vector<1x8x16x16xf32> to vector<8x16x16xf32>
    %41 = vector.shape_cast %38 : vector<8x16x16xf32> to vector<1x8x16x16xf32>
    tpu.vector_store %arg4[%c0_18, %c0_19, %c0_20, %c0_21], %41 {strides = array<i32>} : memref<1x16x16x16xf32, #tpu.memory_space<vmem>>, vector<1x8x16x16xf32>,
    %42 = vector.shape_cast %29 : vector<16x16xf32> to vector<1x16x16xf32>
    %43 = vector.broadcast %42 : vector<1x16x16xf32> to vector<8x16x16xf32>
    %44 = vector.broadcast %30 : vector<8x1x1xf32> to vector<8x16x16xf32>
    %45 = arith.mulf %43, %44 : vector<8x16x16xf32>
    %46 = vector.broadcast %31 : vector<8x1x1xf32> to vector<8x16x16xf32>
    %47 = arith.addf %45, %46 : vector<8x16x16xf32>
    %48 = math.sin %47 : vector<8x16x16xf32>
    %c0_22 = arith.constant 0 : index
    %c8 = arith.constant 8 : index
    %c0_23 = arith.constant 0 : index
    %c0_24 = arith.constant 0 : index
    %49 = vector.load %arg4[%c0_22, %c8, %c0_23, %c0_24] : memref<1x16x16x16xf32, #tpu.memory_space<vmem>>, vector<1x8x16x16xf32>
    %50 = vector.shape_cast %49 : vector<1x8x16x16xf32> to vector<8x16x16xf32>
    %51 = vector.shape_cast %48 : vector<8x16x16xf32> to vector<1x8x16x16xf32>
    tpu.vector_store %arg4[%c0_22, %c8, %c0_23, %c0_24], %51 {strides = array<i32>} : memref<1x16x16x16xf32, #tpu.memory_space<vmem>>, vector<1x8x16x16xf32>,
    return
  }
  func.func @transform_0(%arg0: i32) -> (i32, i32, i32) {
    %c0_i32 = arith.constant 0 : i32
    %c0_i32_0 = arith.constant 0 : i32
    %c0_i32_1 = arith.constant 0 : i32
    return %arg0, %c0_i32, %c0_i32_0 : i32, i32, i32
  }
  func.func @transform_1(%arg0: i32) -> (i32, i32, i32) {
    %c0_i32 = arith.constant 0 : i32
    %c0_i32_0 = arith.constant 0 : i32
    %c0_i32_1 = arith.constant 0 : i32
    %c0_i32_2 = arith.constant 0 : i32
    return %c0_i32, %c0_i32_0, %c0_i32_1 : i32, i32, i32
  }
  func.func @transform_2(%arg0: i32) -> (i32, i32, i32) {
    %c0_i32 = arith.constant 0 : i32
    %c0_i32_0 = arith.constant 0 : i32
    %c0_i32_1 = arith.constant 0 : i32
    %c0_i32_2 = arith.constant 0 : i32
    return %c0_i32, %c0_i32_0, %c0_i32_1 : i32, i32, i32
  }
  func.func @transform_3(%arg0: i32) -> (i32, i32, i32, i32) {
    %c0_i32 = arith.constant 0 : i32
    %c0_i32_0 = arith.constant 0 : i32
    %c0_i32_1 = arith.constant 0 : i32
    %c0_i32_2 = arith.constant 0 : i32
    return %arg0, %c0_i32, %c0_i32_0, %c0_i32_1 : i32, i32, i32, i32
  }
}

</mosaic_0001>

<llo_original>
// kernel: tpu_custom_call.1
$region0: #{tpu_custom_call.1}
  #allocation0 [shape = 'u32[]', space=smem, size = 0x4, offset = 0x4, fixed_abs, tag = 'smem constant byte address 0x4 - core index']
  #allocation1 [shape = 'u32[144,128]{1,0:T(1,128)}', space=vmem, size = 0x12000, scoped, tag = 'internal scratch']
  %s0 = inlined_call_operand.vmem [shape: s8[2,16,16], index: 0, kind: input, shape index: {}]
  %s1 = inlined_call_operand.vmem [shape: f32[8,1,1], index: 1, kind: input, shape index: {}]
  %s2 = inlined_call_operand.vmem [shape: f32[8,1,1], index: 2, kind: input, shape index: {}]
  %s3 = inlined_call_operand.hbm [shape: f32[2,16,16,16], index: 3, kind: output, shape index: {}]
  %s4 = sld [smem:[#allocation0]]
  $region45: #{tpu_custom_call.1} parent=0
    _
  %s6 = ssub.s32 1, %s4
  %s7 = scalar_select 0, %s6, %s4
  $region1: #{tpu_custom_call.1} parent=0
    #allocation2 [shape = 'u8[262144]{0}', space=vmem, size = 0x40000, scoped, tag = 'output window, operand 0']
    #allocation3 [shape = 's32[2]{0}', space=sflag, size = 0x8, scoped, tag = 'scoped memory for tpu_custom_call.1']
    %8 = vsyncpa [#allocation3], 0
    %s9 = scalar_lea.sflag [#allocation3], 1
    %10 = vsyncpa %s9, 0
    loop: start=0, step=1, limit=4
    $region2: #{tpu_custom_call.1} parent=1 // loop_pre_header
      _
    $region3: #{tpu_custom_call.1} parent=1 // loop_header
      %s12 = sphi 0, %s16
      %p13 = scmp.ge.s32.totalorder %s12, 4
      %s22 = sphi 0, %s24
      %s25 = sphi 0, %s22
      %s26 = sphi 0, %s25
      %s42 = sphi 0, %s26
      %s46 = sphi 0, %s46
      %s48 = sphi 0, %s46
      %s49 = sphi 0, %s48
      %s63 = sphi 0, %s49
      %s67 = sphi 0, %s67
      %s69 = sphi 0, %s67
      %s70 = sphi 0, %s69
      %s84 = sphi 0, %s70
      %s90 = sphi 0, %s92
      %s93 = sphi 0, %s90
      %s94 = sphi 0, %s93
      %s110 = sphi 0, %s94
    $region4: #{tpu_custom_call.1} parent=1 // loop_header_branch
      %15 = sbr.rel (%p13) target = $region8
    $region5: #{tpu_custom_call.1} parent=1 // loop_body
      %s17 = ssub.s32 %s12, 1
      %s18 = ssub.s32 %s12, 2
      %s19 = sadd.s32 %s12, 1
      %s20 = ssub.s32 %s12, %s19
      %p21 = scmp.eq.s32.totalorder %s20, 0
      %s23 = sadd.s32 %s22, 1
      %s24 = scalar_select %p21, %s22, %s23
      %p27 = pneg %p21
      %p28 = scmp.eq.s32.totalorder %s12, 1
      %p29 = por %p27, %p28
      %p30 = scmp.ne.s32.totalorder %s22, %s25
      %p31 = scmp.eq.s32.totalorder %s12, 0
      %p32 = por %p30, %p31
      %p33 = scmp.ne.s32.totalorder %s22, %s25
      %p34 = scmp.eq.s32.totalorder %s17, 1
      %p35 = por %p33, %p34
      %p36 = scmp.ne.s32.totalorder %s25, %s26
      %p37 = scmp.eq.s32.totalorder %s17, 0
      %p38 = por %p36, %p37
      %p39 = scmp.ne.s32.totalorder %s25, %s26
      %p40 = scmp.eq.s32.totalorder %s18, 1
      %p41 = por %p39, %p40
      %p43 = scmp.ne.s32.totalorder %s26, %s42
      %p44 = scmp.eq.s32.totalorder %s18, 0
      %p45 = por %p43, %p44
      %s47 = sadd.s32 %s46, 1
      %p50 = scmp.eq.s32.totalorder %s12, 1
      %p51 = scmp.ne.s32.totalorder %s46, %s48
      %p52 = scmp.eq.s32.totalorder %s12, 0
      %p53 = por %p51, %p52
      %p54 = scmp.ne.s32.totalorder %s46, %s48
      %p55 = scmp.eq.s32.totalorder %s17, 1
      %p56 = por %p54, %p55
      %p57 = scmp.ne.s32.totalorder %s48, %s49
      %p58 = scmp.eq.s32.totalorder %s17, 0
      %p59 = por %p57, %p58
      %p60 = scmp.ne.s32.totalorder %s48, %s49
      %p61 = scmp.eq.s32.totalorder %s18, 1
      %p62 = por %p60, %p61
      %p64 = scmp.ne.s32.totalorder %s49, %s63
      %p65 = scmp.eq.s32.totalorder %s18, 0
      %p66 = por %p64, %p65
      %s68 = sadd.s32 %s67, 1
      %p71 = scmp.eq.s32.totalorder %s12, 1
      %p72 = scmp.ne.s32.totalorder %s67, %s69
      %p73 = scmp.eq.s32.totalorder %s12, 0
      %p74 = por %p72, %p73
      %p75 = scmp.ne.s32.totalorder %s67, %s69
      %p76 = scmp.eq.s32.totalorder %s17, 1
      %p77 = por %p75, %p76
      %p78 = scmp.ne.s32.totalorder %s69, %s70
      %p79 = scmp.eq.s32.totalorder %s17, 0
      %p80 = por %p78, %p79
      %p81 = scmp.ne.s32.totalorder %s69, %s70
      %p82 = scmp.eq.s32.totalorder %s18, 1
      %p83 = por %p81, %p82
      %p85 = scmp.ne.s32.totalorder %s70, %s84
      %p86 = scmp.eq.s32.totalorder %s18, 0
      %p87 = por %p85, %p86
      %s88 = ssub.s32 %s12, %s19
      %p89 = scmp.eq.s32.totalorder %s88, 0
      %s91 = sadd.s32 %s90, 1
      %s92 = scalar_select %p89, %s90, %s91
      %p95 = pneg %p89
      %p96 = scmp.eq.s32.totalorder %s12, 1
      %p97 = por %p95, %p96
      %p98 = scmp.ne.s32.totalorder %s90, %s93
      %p99 = scmp.eq.s32.totalorder %s12, 0
      %p100 = por %p98, %p99
      %p101 = scmp.ne.s32.totalorder %s90, %s93
      %p102 = scmp.eq.s32.totalorder %s17, 1
      %p103 = por %p101, %p102
      %p104 = scmp.ne.s32.totalorder %s93, %s94
      %p105 = scmp.eq.s32.totalorder %s17, 0
      %p106 = por %p104, %p105
      %p107 = scmp.ne.s32.totalorder %s93, %s94
      %p108 = scmp.eq.s32.totalorder %s18, 1
      %p109 = por %p107, %p108
      %p111 = scmp.ne.s32.totalorder %s94, %s110
      %p112 = scmp.eq.s32.totalorder %s18, 0
      %p113 = por %p111, %p112
      %p114 = scmp.le.s32.totalorder 1, %s12
      %p115 = scmp.lt.s32.totalorder %s12, 3
      %p116 = pnand %p114, %p115
      %p117 = pneg %p116
      // Predicated region
      $region9: #{tpu_custom_call.1} parent=5 // pred_check
        _
      $region10: #{tpu_custom_call.1} parent=5 // pred_check_branch
        %119 = sbr.rel (%p116) target = $region12
      $region11: #{tpu_custom_call.1} parent=5 // pred_region
        %s120 = ssub.s32 %s12, 1
        // Predicated region
        $region13: #{tpu_custom_call.1} parent=11 // pred_check
          %p121 = pneg %p59
        $region14: #{tpu_custom_call.1} parent=11 // pred_check_branch
          %123 = sbr.rel (%p121) target = $region16
        $region15: #{tpu_custom_call.1} parent=11 // pred_region
          _
        $region16: #{tpu_custom_call.1} parent=11 // pred_fallthru
          _
        // Predicated region
        $region17: #{tpu_custom_call.1} parent=11 // pred_check
          %p124 = pneg %p80
        $region18: #{tpu_custom_call.1} parent=11 // pred_check_branch
          %126 = sbr.rel (%p124) target = $region20
        $region19: #{tpu_custom_call.1} parent=11 // pred_region
          _
        $region20: #{tpu_custom_call.1} parent=11 // pred_fallthru
          _
      $region12: #{tpu_custom_call.1} parent=5 // pred_fallthru
        _
      %p127 = scmp.lt.s32.totalorder %s12, 2
      // Predicated region
      $region21: #{tpu_custom_call.1} parent=5 // pred_check
        %p128 = pneg %p127
      $region22: #{tpu_custom_call.1} parent=5 // pred_check_branch
        %130 = sbr.rel (%p128) target = $region24
      $region23: #{tpu_custom_call.1} parent=5 // pred_region
        // Predicated region
        $region25: #{tpu_custom_call.1} parent=23 // pred_check
          %p131 = pneg %p32
        $region26: #{tpu_custom_call.1} parent=23 // pred_check_branch
          %133 = sbr.rel (%p131) target = $region28
        $region27: #{tpu_custom_call.1} parent=23 // pred_region
          %p134 = scmp.lt.s32.totalorder %s12, 1
          %s135 = scalar_select %p134, %s12, 1
          %s136 = smul.addr %s135, 2
          %s137 = smul.addr %s136, 2
          %s138 = scalar_lea.vmem %s0, %s137
        $region28: #{tpu_custom_call.1} parent=23 // pred_fallthru
          _
      $region24: #{tpu_custom_call.1} parent=5 // pred_fallthru
        _
      %p139 = scmp.le.s32.totalorder 1, %s12
      %p140 = scmp.lt.s32.totalorder %s12, 3
      %p141 = pnand %p139, %p140
      %p142 = pneg %p141
      // Predicated region
      $region29: #{tpu_custom_call.1} parent=5 // pred_check
        _
      $region30: #{tpu_custom_call.1} parent=5 // pred_check_branch
        %144 = sbr.rel (%p141) target = $region32
      $region31: #{tpu_custom_call.1} parent=5 // pred_region
        %s145 = ssub.s32 %s12, 1
        %p146 = scmp.lt.s32.totalorder %s17, 1
        %s147 = scalar_select %p146, %s17, 1
        %s148 = smul.addr %s147, 2
        %s149 = smul.addr %s148, 2
        %s150 = scalar_lea.vmem %s0, %s149
        %p151 = pneg %p38
        %p152 = pneg %p35
        %p153 = pneg %p59
        %p154 = pneg %p56
        %p155 = pneg %p80
        %p156 = pneg %p77
        %p157 = pneg %p106
        %p158 = pneg %p103
        %s159 = sand.u32 %s93, 1
        %s160 = scalar_lea.sflag [#allocation3], %s159
        %s161 = sand.u32 %s93, 1
        %s162 = smul.addr %s161, 256
        %s163 = scalar_lea.vmem [#allocation2], %s162
        %p164 = scmp.lt.s32.totalorder %s17, 1
        %s165 = scalar_select %p164, %s17, 1
        %s166 = smul.addr %s165, 2
        %s167 = smul.addr %s166, 2
        %s168 = scalar_lea.vmem %s0, %s167
        %v170 = vld [vmem:[%s168] sm:$0x3]
        %v171 = vld [vmem:[%s168 + $0x2] sm:$0x3]
        %v172 = vunpack.c.0.s8 %v170
        %v173 = vunpack.c.0.s8 %v171
        %v174 = vcvt.s32.f32 %v172
        %v175 = vcvt.s32.f32 %v173
        %v176 = vsub.f32 1.0, %v174
        %v177 = vsub.f32 1.0, %v175
        %v178 = vpack.c.bf16 %v177, %v176
        %v179 = vlaneseq
        %v180 = vshrl.u32 %v179, 7
        %v181 = vadd.s32 %v180, 8
        %v182 = vlaneseq
        %v183 = vand.u32 %v182, 127
        %vm184 = vcmp.le.s32.totalorder %v183, %v180
        %vm185 = vcmp.le.s32.totalorder %v183, %v181
        %v186 = vsel %vm184, 1.0, 0.0
        %v187 = vsel %vm185, 1.0, 0.0
        %v188 = vpack.c.bf16 %v187, %v186
        %vm189 = vcmp.le.s32.totalorder %v180, %v183
        %vm190 = vcmp.le.s32.totalorder %v181, %v183
        %v191 = vsel %vm189, 1.0, 0.0
        %v192 = vsel %vm190, 1.0, 0.0
        %v193 = vpack.c.bf16 %v192, %v191
        %vm194 = vcmask 130048
        %v196 = vsel %vm194, %v188, 0
        %198 = vmatprep.subr.bf16.mxu0 0
        %199 = vmatpush1.bf16.msra.mxu0 %v178
        %200 = vmatprep.subr.bf16.mxu0 0
        %201 = vmatpush1.bf16.msra.mxu0 0
        %202 = vmatprep.subr.bf16.mxu0 0
        %203 = vmatpush1.bf16.msra.mxu0 0
        %204 = vmatprep.subr.bf16.mxu0 0
        %205 = vmatpush1.bf16.msra.mxu0 0
        %206 = vmatprep.subr.bf16.mxu0 0
        %207 = vmatpush1.bf16.msra.mxu0 0
        %208 = vmatprep.subr.bf16.mxu0 0
        %209 = vmatpush1.bf16.msra.mxu0 0
        %210 = vmatprep.subr.bf16.mxu0 0
        %211 = vmatpush1.bf16.msra.mxu0 0
        %212 = vmatprep.subr.bf16.mxu0 0
        %213 = vmatpush1.bf16.msra.mxu0 0
        %214 = vmatprep.subr.bf16.mxu0 0
        %215 = vmatpush1.bf16.msra.mxu0 0
        %216 = vmatprep.subr.bf16.mxu0 0
        %217 = vmatpush1.bf16.msra.mxu0 0
        %218 = vmatprep.subr.bf16.mxu0 0
        %219 = vmatpush1.bf16.msra.mxu0 0
        %220 = vmatprep.subr.bf16.mxu0 0
        %221 = vmatpush1.bf16.msra.mxu0 0
        %222 = vmatprep.subr.bf16.mxu0 0
        %223 = vmatpush1.bf16.msra.mxu0 0
        %224 = vmatprep.subr.bf16.mxu0 0
        %225 = vmatpush1.bf16.msra.mxu0 0
        %226 = vmatprep.subr.bf16.mxu0 0
        %227 = vmatpush1.bf16.msra.mxu0 0
        %228 = vmatprep.subr.bf16.mxu0 0
        %229 = vmatpush1.bf16.msra.mxu0 0
        %230 = vmatprep.mubr.bf16.mxu0 0
        %231 = vmatmul.mubr.bf16.gmra.mrb[0].mxu0 %v196
        %v232 = vpop.f32.mrb[0].mxu0
        %v233 = vadd.f32 0.0, %v232
        %v234 = vpop.f32.mrb[0].mxu0
        %v235 = vpop.f32.mrb[0].mxu0
        %v236 = vadd.f32 0.0, %v235
        %v237 = vpop.f32.mrb[0].mxu0
        %238 = vdwg.mxu0
        %v240 = vsel %vm194, %v178, 0
        %242 = vmatprep.subr.bf16.mxu0 0
        %243 = vmatpush1.bf16.msra.mxu0 %v193
        %244 = vmatprep.subr.bf16.mxu0 0
        %245 = vmatpush1.bf16.msra.mxu0 0
        %246 = vmatprep.subr.bf16.mxu0 0
        %247 = vmatpush1.bf16.msra.mxu0 0
        %248 = vmatprep.subr.bf16.mxu0 0
        %249 = vmatpush1.bf16.msra.mxu0 0
        %250 = vmatprep.subr.bf16.mxu0 0
        %251 = vmatpush1.bf16.msra.mxu0 0
        %252 = vmatprep.subr.bf16.mxu0 0
        %253 = vmatpush1.bf16.msra.mxu0 0
        %254 = vmatprep.subr.bf16.mxu0 0
        %255 = vmatpush1.bf16.msra.mxu0 0
        %256 = vmatprep.subr.bf16.mxu0 0
        %257 = vmatpush1.bf16.msra.mxu0 0
        %258 = vmatprep.subr.bf16.mxu0 0
        %259 = vmatpush1.bf16.msra.mxu0 0
        %260 = vmatprep.subr.bf16.mxu0 0
        %261 = vmatpush1.bf16.msra.mxu0 0
        %262 = vmatprep.subr.bf16.mxu0 0
        %263 = vmatpush1.bf16.msra.mxu0 0
        %264 = vmatprep.subr.bf16.mxu0 0
        %265 = vmatpush1.bf16.msra.mxu0 0
        %266 = vmatprep.subr.bf16.mxu0 0
        %267 = vmatpush1.bf16.msra.mxu0 0
        %268 = vmatprep.subr.bf16.mxu0 0
        %269 = vmatpush1.bf16.msra.mxu0 0
        %270 = vmatprep.subr.bf16.mxu0 0
        %271 = vmatpush1.bf16.msra.mxu0 0
        %272 = vmatprep.subr.bf16.mxu0 0
        %273 = vmatpush1.bf16.msra.mxu0 0
        %274 = vmatprep.mubr.bf16.mxu0 0
        %275 = vmatmul.mubr.bf16.gmra.mrb[0].mxu0 %v240
        %v276 = vpop.f32.mrb[0].mxu0
        %v277 = vadd.f32 0.0, %v276
        %v278 = vpop.f32.mrb[0].mxu0
        %v279 = vpop.f32.mrb[0].mxu0
        %v280 = vadd.f32 0.0, %v279
        %v281 = vpop.f32.mrb[0].mxu0
        %282 = vdwg.mxu0
        %v283 = vsub.f32 %v233, 0.5
        %v284 = vsub.f32 %v236, 0.5
        %v285 = vmul.f32 %v283, 6.2831855
        %v286 = vmul.f32 %v284, 6.2831855
        %v287 = vsub.f32 %v277, 0.5
        %v288 = vsub.f32 %v280, 0.5
        %v289 = vmul.f32 %v287, 6.2831855
        %v290 = vmul.f32 %v288, 6.2831855
        %v291 = vld [vmem:[%s1] sm:$0x1]
        %v292 = vld [vmem:[%s1 + $0x1] sm:$0x1]
        %v293 = vld [vmem:[%s1 + $0x2] sm:$0x1]
        %v294 = vld [vmem:[%s1 + $0x3] sm:$0x1]
        %v295 = vld [vmem:[%s1 + $0x4] sm:$0x1]
        %v296 = vld [vmem:[%s1 + $0x5] sm:$0x1]
        %v297 = vld [vmem:[%s1 + $0x6] sm:$0x1]
        %v298 = vld [vmem:[%s1 + $0x7] sm:$0x1]
        %v299 = vld [vmem:[%s2] sm:$0x1]
        %v300 = vld [vmem:[%s2 + $0x1] sm:$0x1]
        %v301 = vld [vmem:[%s2 + $0x2] sm:$0x1]
        %v302 = vld [vmem:[%s2 + $0x3] sm:$0x1]
        %v303 = vld [vmem:[%s2 + $0x4] sm:$0x1]
        %v304 = vld [vmem:[%s2 + $0x5] sm:$0x1]
        %v305 = vld [vmem:[%s2 + $0x6] sm:$0x1]
        %v306 = vld [vmem:[%s2 + $0x7] sm:$0x1]
        %v315 = vlaneseq
        %v316 = vshrl.u32 %v315, 7
        %v317 = vsub.s32 0, %v316
        %v318 = vrot.slane %v291, %v317
        %v319 = vlaneseq
        %v320 = vshrl.u32 %v319, 7
        %v321 = vsub.s32 0, %v320
        %v322 = vrot.slane %v292, %v321
        %v323 = vlaneseq
        %v324 = vshrl.u32 %v323, 7
        %v325 = vsub.s32 0, %v324
        %v326 = vrot.slane %v293, %v325
        %v327 = vlaneseq
        %v328 = vshrl.u32 %v327, 7
        %v329 = vsub.s32 0, %v328
        %v330 = vrot.slane %v294, %v329
        %v331 = vlaneseq
        %v332 = vshrl.u32 %v331, 7
        %v333 = vsub.s32 0, %v332
        %v334 = vrot.slane %v295, %v333
        %v335 = vlaneseq
        %v336 = vshrl.u32 %v335, 7
        %v337 = vsub.s32 0, %v336
        %v338 = vrot.slane %v296, %v337
        %v339 = vlaneseq
        %v340 = vshrl.u32 %v339, 7
        %v341 = vsub.s32 0, %v340
        %v342 = vrot.slane %v297, %v341
        %v343 = vlaneseq
        %v344 = vshrl.u32 %v343, 7
        %v345 = vsub.s32 0, %v344
        %v346 = vrot.slane %v298, %v345
        %347 = vset.pattern.permute.xlu0 0
        %348 = vperm.xlu0 %347, %v318
        %v349 = vpop.permute.xlu0 %348
        %351 = vset.pattern.permute.xlu0 0
        %352 = vperm.xlu0 %351, %v322
        %v353 = vpop.permute.xlu0 %352
        %355 = vset.pattern.permute.xlu0 0
        %356 = vperm.xlu0 %355, %v326
        %v357 = vpop.permute.xlu0 %356
        %359 = vset.pattern.permute.xlu0 0
        %360 = vperm.xlu0 %359, %v330
        %v361 = vpop.permute.xlu0 %360
        %363 = vset.pattern.permute.xlu0 0
        %364 = vperm.xlu0 %363, %v334
        %v365 = vpop.permute.xlu0 %364
        %367 = vset.pattern.permute.xlu0 0
        %368 = vperm.xlu0 %367, %v338
        %v369 = vpop.permute.xlu0 %368
        %371 = vset.pattern.permute.xlu0 0
        %372 = vperm.xlu0 %371, %v342
        %v373 = vpop.permute.xlu0 %372
        %375 = vset.pattern.permute.xlu0 0
        %376 = vperm.xlu0 %375, %v346
        %v377 = vpop.permute.xlu0 %376
        %v379 = vmul.f32 %v285, %v349
        %v380 = vmul.f32 %v286, %v349
        %v381 = vmul.f32 %v285, %v353
        %v382 = vmul.f32 %v286, %v353
        %v383 = vmul.f32 %v285, %v357
        %v384 = vmul.f32 %v286, %v357
        %v385 = vmul.f32 %v285, %v361
        %v386 = vmul.f32 %v286, %v361
        %v387 = vmul.f32 %v285, %v365
        %v388 = vmul.f32 %v286, %v365
        %v389 = vmul.f32 %v285, %v369
        %v390 = vmul.f32 %v286, %v369
        %v391 = vmul.f32 %v285, %v373
        %v392 = vmul.f32 %v286, %v373
        %v393 = vmul.f32 %v285, %v377
        %v394 = vmul.f32 %v286, %v377
        %v403 = vlaneseq
        %v404 = vshrl.u32 %v403, 7
        %v405 = vsub.s32 0, %v404
        %v406 = vrot.slane %v299, %v405
        %v407 = vlaneseq
        %v408 = vshrl.u32 %v407, 7
        %v409 = vsub.s32 0, %v408
        %v410 = vrot.slane %v300, %v409
        %v411 = vlaneseq
        %v412 = vshrl.u32 %v411, 7
        %v413 = vsub.s32 0, %v412
        %v414 = vrot.slane %v301, %v413
        %v415 = vlaneseq
        %v416 = vshrl.u32 %v415, 7
        %v417 = vsub.s32 0, %v416
        %v418 = vrot.slane %v302, %v417
        %v419 = vlaneseq
        %v420 = vshrl.u32 %v419, 7
        %v421 = vsub.s32 0, %v420
        %v422 = vrot.slane %v303, %v421
        %v423 = vlaneseq
        %v424 = vshrl.u32 %v423, 7
        %v425 = vsub.s32 0, %v424
        %v426 = vrot.slane %v304, %v425
        %v427 = vlaneseq
        %v428 = vshrl.u32 %v427, 7
        %v429 = vsub.s32 0, %v428
        %v430 = vrot.slane %v305, %v429
        %v431 = vlaneseq
        %v432 = vshrl.u32 %v431, 7
        %v433 = vsub.s32 0, %v432
        %v434 = vrot.slane %v306, %v433
        %435 = vset.pattern.permute.xlu0 0
        %436 = vperm.xlu0 %435, %v406
        %v437 = vpop.permute.xlu0 %436
        %439 = vset.pattern.permute.xlu0 0
        %440 = vperm.xlu0 %439, %v410
        %v441 = vpop.permute.xlu0 %440
        %443 = vset.pattern.permute.xlu0 0
        %444 = vperm.xlu0 %443, %v414
        %v445 = vpop.permute.xlu0 %444
        %447 = vset.pattern.permute.xlu0 0
        %448 = vperm.xlu0 %447, %v418
        %v449 = vpop.permute.xlu0 %448
        %451 = vset.pattern.permute.xlu0 0
        %452 = vperm.xlu0 %451, %v422
        %v453 = vpop.permute.xlu0 %452
        %455 = vset.pattern.permute.xlu0 0
        %456 = vperm.xlu0 %455, %v426
        %v457 = vpop.permute.xlu0 %456
        %459 = vset.pattern.permute.xlu0 0
        %460 = vperm.xlu0 %459, %v430
        %v461 = vpop.permute.xlu0 %460
        %463 = vset.pattern.permute.xlu0 0
        %464 = vperm.xlu0 %463, %v434
        %v465 = vpop.permute.xlu0 %464
        %v467 = vadd.f32 %v379, %v437
        %v468 = vadd.f32 %v380, %v437
        %v469 = vadd.f32 %v381, %v441
        %v470 = vadd.f32 %v382, %v441
        %v471 = vadd.f32 %v383, %v445
        %v472 = vadd.f32 %v384, %v445
        %v473 = vadd.f32 %v385, %v449
        %v474 = vadd.f32 %v386, %v449
        %v475 = vadd.f32 %v387, %v453
        %v476 = vadd.f32 %v388, %v453
        %v477 = vadd.f32 %v389, %v457
        %v478 = vadd.f32 %v390, %v457
        %v479 = vadd.f32 %v391, %v461
        %v480 = vadd.f32 %v392, %v461
        %v481 = vadd.f32 %v393, %v465
        %v482 = vadd.f32 %v394, %v465
        %v483 = vand.u32 2147483647, %v467
        %vm484 = vcmp.le.f32.partialorder %v483, 0.7853982
        %vm485 = vcmp.lt.s32.totalorder %v467, 0
        %v486 = vand.u32 %v467, 2139095040
        %v487 = vshrl.u32 %v486, 23
        %v488 = vsub.s32 %v487, 127
        %v489 = vand.u32 2147483647, %v467
        %v490 = vand.u32 %v489, 8388607
        %v491 = vor.u32 %v490, 8388608
        %v492 = vsub.s32 0, %v491
        %v493 = vadd.s32 %v488, 1
        %vm494 = vcmp.gt.s32.totalorder %v493, 0
        %v495 = vsel %vm494, %v493, 0
        %v496 = vshrl.u32 %v495, 5
        %v497 = vand.u32 %v495, 31
        %v498 = vsub.s32 32, %v497
        %v499 = vshrl.u32 683565275, %v498
        %v500 = vshll.u32 683565275, %v497
        %v501 = vshrl.u32 2475754826, %v498
        %v502 = vor.u32 %v500, %v501
        %v503 = vshll.u32 2475754826, %v497
        %v504 = vshrl.u32 2131351028, %v498
        %v505 = vor.u32 %v503, %v504
        %v506 = vshll.u32 2131351028, %v497
        %v507 = vshrl.u32 2102212464, %v498
        %v508 = vor.u32 %v506, %v507
        %v509 = vshll.u32 2102212464, %v497
        %v510 = vshrl.u32 920167782, %v498
        %v511 = vor.u32 %v509, %v510
        %v512 = vshll.u32 920167782, %v497
        %v513 = vshrl.u32 1326507024, %v498
        %v514 = vor.u32 %v512, %v513
        %vm515 = vcmp.lt.s32.totalorder %v496, 1
        %vm516 = vcmp.lt.s32.totalorder %v496, 2
        %vm517 = vcmp.lt.s32.totalorder %v496, 3
        %vm518 = vcmp.lt.s32.totalorder %v496, 4
        %v519 = vsel %vm515, %v499, %v502
        %v520 = vsel %vm518, %v508, 2102212464
        %v521 = vsel %vm517, %v505, %v520
        %v522 = vsel %vm516, %v519, %v521
        %v523 = vsel %vm515, %v502, %v505
        %v524 = vsel %vm518, %v511, 920167782
        %v525 = vsel %vm517, %v508, %v524
        %v526 = vsel %vm516, %v523, %v525
        %v527 = vsel %vm515, %v505, %v508
        %v528 = vsel %vm518, %v514, 1326507024
        %v529 = vsel %vm517, %v511, %v528
        %v530 = vsel %vm516, %v527, %v529
        %v531 = vshll.u32 %v491, 8
        %v532 = vmul.u32.u64.compose %v531, %v530
        %v533 = vextract.low.u32 %v532
        %v534 = vextract.high.u32 %v532
        %v535 = vmul.u32.u64.compose %v531, %v526
        %v536 = vextract.low.u32 %v535
        %v537 = vextract.high.u32 %v535
        %v538 = vmul.u32 %v531, %v522
        %v539 = vadd.s32 %v534, %v536
        %vm540 = vc.u32 %v534, %v536
        %v541 = vadd.s32 %v537, 1
        %v542 = vsel %vm540, %v541, %v537
        %v543 = vadd.s32 %v538, %v542
        %v544 = vadd.s32 %v543, 536870912
        %v545 = vshrl.u32 %v544, 30
        %v546 = vshll.u32 %v545, 30
        %v547 = vsub.s32 %v543, %v546
        %vm548 = vcmp.lt.s32.totalorder %v547, 0
        %v549 = vsub.s32 0, %v547
        %v550 = vsel %vm548, %v549, %v547
        %v551 = vclz %v550
        %v552 = vsub.s32 %v551, 2
        %vm553 = vcmp.gt.s32.totalorder 0, %v552
        %v554 = vsel %vm553, 0, %v552
        %v555 = vsub.s32 32, %v554
        %v556 = vshll.u32 %v547, %v554
        %v557 = vshrl.u32 %v539, %v555
        %v558 = vor.u32 %v556, %v557
        %v559 = vsub.s32 4294967266, %v554
        %v560 = vadd.s32 %v559, 127
        %v561 = vshll.u32 %v560, 23
        %v562 = vor.u32 4788187, %v561
        %v563 = vand.u32 2147483647, %v562
        %v565 = vcvt.s32.f32 %v558
        %v566 = vmul.f32 %v565, %v563
        %v567 = vxor.u32 %v566, 2147483648
        %v568 = vsel %vm485, %v567, %v566
        %v569 = vsub.s32 4, %v545
        %v570 = vsel %vm485, %v569, %v545
        %v571 = vsel %vm484, %v467, %v568
        %v572 = vsel %vm484, 0, %v570
        %v573 = vcosq.f32.pop %v571
        %v574 = vsinq.f32.pop %v571
        %vm575 = vweird.f32 %v467
        %v576 = vadd.s32 %v572, 3
        %v577 = vand.u32 %v576, 3
        %vm578 = vcmp.lt.s32.totalorder %v577, 2
        %vm579 = vcmp.eq.s32.totalorder %v577, 0
        %v580 = vxor.u32 %v574, 2147483648
        %v581 = vsel %vm579, %v573, %v580
        %vm582 = vcmp.eq.s32.totalorder %v577, 2
        %v583 = vxor.u32 %v573, 2147483648
        %v584 = vsel %vm582, %v583, %v574
        %v585 = vsel %vm578, %v581, %v584
        %v586 = vsel %vm575, nan, %v585
        %v587 = vand.u32 2147483647, %v468
        %vm588 = vcmp.le.f32.partialorder %v587, 0.7853982
        %vm589 = vcmp.lt.s32.totalorder %v468, 0
        %v590 = vand.u32 %v468, 2139095040
        %v591 = vshrl.u32 %v590, 23
        %v592 = vsub.s32 %v591, 127
        %v593 = vand.u32 2147483647, %v468
        %v594 = vand.u32 %v593, 8388607
        %v595 = vor.u32 %v594, 8388608
        %v596 = vsub.s32 0, %v595
        %v597 = vadd.s32 %v592, 1
        %vm598 = vcmp.gt.s32.totalorder %v597, 0
        %v599 = vsel %vm598, %v597, 0
        %v600 = vshrl.u32 %v599, 5
        %v601 = vand.u32 %v599, 31
        %v602 = vsub.s32 32, %v601
        %v603 = vshrl.u32 683565275, %v602
        %v604 = vshll.u32 683565275, %v601
        %v605 = vshrl.u32 2475754826, %v602
        %v606 = vor.u32 %v604, %v605
        %v607 = vshll.u32 2475754826, %v601
        %v608 = vshrl.u32 2131351028, %v602
        %v609 = vor.u32 %v607, %v608
        %v610 = vshll.u32 2131351028, %v601
        %v611 = vshrl.u32 2102212464, %v602
        %v612 = vor.u32 %v610, %v611
        %v613 = vshll.u32 2102212464, %v601
        %v614 = vshrl.u32 920167782, %v602
        %v615 = vor.u32 %v613, %v614
        %v616 = vshll.u32 920167782, %v601
        %v617 = vshrl.u32 1326507024, %v602
        %v618 = vor.u32 %v616, %v617
        %vm619 = vcmp.lt.s32.totalorder %v600, 1
        %vm620 = vcmp.lt.s32.totalorder %v600, 2
        %vm621 = vcmp.lt.s32.totalorder %v600, 3
        %vm622 = vcmp.lt.s32.totalorder %v600, 4
        %v623 = vsel %vm619, %v603, %v606
        %v624 = vsel %vm622, %v612, 2102212464
        %v625 = vsel %vm621, %v609, %v624
        %v626 = vsel %vm620, %v623, %v625
        %v627 = vsel %vm619, %v606, %v609
        %v628 = vsel %vm622, %v615, 920167782
        %v629 = vsel %vm621, %v612, %v628
        %v630 = vsel %vm620, %v627, %v629
        %v631 = vsel %vm619, %v609, %v612
        %v632 = vsel %vm622, %v618, 1326507024
        %v633 = vsel %vm621, %v615, %v632
        %v634 = vsel %vm620, %v631, %v633
        %v635 = vshll.u32 %v595, 8
        %v636 = vmul.u32.u64.compose %v635, %v634
        %v637 = vextract.low.u32 %v636
        %v638 = vextract.high.u32 %v636
        %v639 = vmul.u32.u64.compose %v635, %v630
        %v640 = vextract.low.u32 %v639
        %v641 = vextract.high.u32 %v639
        %v642 = vmul.u32 %v635, %v626
        %v643 = vadd.s32 %v638, %v640
        %vm644 = vc.u32 %v638, %v640
        %v645 = vadd.s32 %v641, 1
        %v646 = vsel %vm644, %v645, %v641
        %v647 = vadd.s32 %v642, %v646
        %v648 = vadd.s32 %v647, 536870912
        %v649 = vshrl.u32 %v648, 30
        %v650 = vshll.u32 %v649, 30
        %v651 = vsub.s32 %v647, %v650
        %vm652 = vcmp.lt.s32.totalorder %v651, 0
        %v653 = vsub.s32 0, %v651
        %v654 = vsel %vm652, %v653, %v651
        %v655 = vclz %v654
        %v656 = vsub.s32 %v655, 2
        %vm657 = vcmp.gt.s32.totalorder 0, %v656
        %v658 = vsel %vm657, 0, %v656
        %v659 = vsub.s32 32, %v658
        %v660 = vshll.u32 %v651, %v658
        %v661 = vshrl.u32 %v643, %v659
        %v662 = vor.u32 %v660, %v661
        %v663 = vsub.s32 4294967266, %v658
        %v664 = vadd.s32 %v663, 127
        %v665 = vshll.u32 %v664, 23
        %v666 = vor.u32 4788187, %v665
        %v667 = vand.u32 2147483647, %v666
        %v669 = vcvt.s32.f32 %v662
        %v670 = vmul.f32 %v669, %v667
        %v671 = vxor.u32 %v670, 2147483648
        %v672 = vsel %vm589, %v671, %v670
        %v673 = vsub.s32 4, %v649
        %v674 = vsel %vm589, %v673, %v649
        %v675 = vsel %vm588, %v468, %v672
        %v676 = vsel %vm588, 0, %v674
        %v677 = vcosq.f32.pop %v675
        %v678 = vsinq.f32.pop %v675
        %vm679 = vweird.f32 %v468
        %v680 = vadd.s32 %v676, 3
        %v681 = vand.u32 %v680, 3
        %vm682 = vcmp.lt.s32.totalorder %v681, 2
        %vm683 = vcmp.eq.s32.totalorder %v681, 0
        %v684 = vxor.u32 %v678, 2147483648
        %v685 = vsel %vm683, %v677, %v684
        %vm686 = vcmp.eq.s32.totalorder %v681, 2
        %v687 = vxor.u32 %v677, 2147483648
        %v688 = vsel %vm686, %v687, %v678
        %v689 = vsel %vm682, %v685, %v688
        %v690 = vsel %vm679, nan, %v689
        %v691 = vand.u32 2147483647, %v469
        %vm692 = vcmp.le.f32.partialorder %v691, 0.7853982
        %vm693 = vcmp.lt.s32.totalorder %v469, 0
        %v694 = vand.u32 %v469, 2139095040
        %v695 = vshrl.u32 %v694, 23
        %v696 = vsub.s32 %v695, 127
        %v697 = vand.u32 2147483647, %v469
        %v698 = vand.u32 %v697, 8388607
        %v699 = vor.u32 %v698, 8388608
        %v700 = vsub.s32 0, %v699
        %v701 = vadd.s32 %v696, 1
        %vm702 = vcmp.gt.s32.totalorder %v701, 0
        %v703 = vsel %vm702, %v701, 0
        %v704 = vshrl.u32 %v703, 5
        %v705 = vand.u32 %v703, 31
        %v706 = vsub.s32 32, %v705
        %v707 = vshrl.u32 683565275, %v706
        %v708 = vshll.u32 683565275, %v705
        %v709 = vshrl.u32 2475754826, %v706
        %v710 = vor.u32 %v708, %v709
        %v711 = vshll.u32 2475754826, %v705
        %v712 = vshrl.u32 2131351028, %v706
        %v713 = vor.u32 %v711, %v712
        %v714 = vshll.u32 2131351028, %v705
        %v715 = vshrl.u32 2102212464, %v706
        %v716 = vor.u32 %v714, %v715
        %v717 = vshll.u32 2102212464, %v705
        %v718 = vshrl.u32 920167782, %v706
        %v719 = vor.u32 %v717, %v718
        %v720 = vshll.u32 920167782, %v705
        %v721 = vshrl.u32 1326507024, %v706
        %v722 = vor.u32 %v720, %v721
        %vm723 = vcmp.lt.s32.totalorder %v704, 1
        %vm724 = vcmp.lt.s32.totalorder %v704, 2
        %vm725 = vcmp.lt.s32.totalorder %v704, 3
        %vm726 = vcmp.lt.s32.totalorder %v704, 4
        %v727 = vsel %vm723, %v707, %v710
        %v728 = vsel %vm726, %v716, 2102212464
        %v729 = vsel %vm725, %v713, %v728
        %v730 = vsel %vm724, %v727, %v729
        %v731 = vsel %vm723, %v710, %v713
        %v732 = vsel %vm726, %v719, 920167782
        %v733 = vsel %vm725, %v716, %v732
        %v734 = vsel %vm724, %v731, %v733
        %v735 = vsel %vm723, %v713, %v716
        %v736 = vsel %vm726, %v722, 1326507024
        %v737 = vsel %vm725, %v719, %v736
        %v738 = vsel %vm724, %v735, %v737
        %v739 = vshll.u32 %v699, 8
        %v740 = vmul.u32.u64.compose %v739, %v738
        %v741 = vextract.low.u32 %v740
        %v742 = vextract.high.u32 %v740
        %v743 = vmul.u32.u64.compose %v739, %v734
        %v744 = vextract.low.u32 %v743
        %v745 = vextract.high.u32 %v743
        %v746 = vmul.u32 %v739, %v730
        %v747 = vadd.s32 %v742, %v744
        %vm748 = vc.u32 %v742, %v744
        %v749 = vadd.s32 %v745, 1
        %v750 = vsel %vm748, %v749, %v745
        %v751 = vadd.s32 %v746, %v750
        %v752 = vadd.s32 %v751, 536870912
        %v753 = vshrl.u32 %v752, 30
        %v754 = vshll.u32 %v753, 30
        %v755 = vsub.s32 %v751, %v754
        %vm756 = vcmp.lt.s32.totalorder %v755, 0
        %v757 = vsub.s32 0, %v755
        %v758 = vsel %vm756, %v757, %v755
        %v759 = vclz %v758
        %v760 = vsub.s32 %v759, 2
        %vm761 = vcmp.gt.s32.totalorder 0, %v760
        %v762 = vsel %vm761, 0, %v760
        %v763 = vsub.s32 32, %v762
        %v764 = vshll.u32 %v755, %v762
        %v765 = vshrl.u32 %v747, %v763
        %v766 = vor.u32 %v764, %v765
        %v767 = vsub.s32 4294967266, %v762
        %v768 = vadd.s32 %v767, 127
        %v769 = vshll.u32 %v768, 23
        %v770 = vor.u32 4788187, %v769
        %v771 = vand.u32 2147483647, %v770
        %v773 = vcvt.s32.f32 %v766
        %v774 = vmul.f32 %v773, %v771
        %v775 = vxor.u32 %v774, 2147483648
        %v776 = vsel %vm693, %v775, %v774
        %v777 = vsub.s32 4, %v753
        %v778 = vsel %vm693, %v777, %v753
        %v779 = vsel %vm692, %v469, %v776
        %v780 = vsel %vm692, 0, %v778
        %v781 = vcosq.f32.pop %v779
        %v782 = vsinq.f32.pop %v779
        %vm783 = vweird.f32 %v469
        %v784 = vadd.s32 %v780, 3
        %v785 = vand.u32 %v784, 3
        %vm786 = vcmp.lt.s32.totalorder %v785, 2
        %vm787 = vcmp.eq.s32.totalorder %v785, 0
        %v788 = vxor.u32 %v782, 2147483648
        %v789 = vsel %vm787, %v781, %v788
        %vm790 = vcmp.eq.s32.totalorder %v785, 2
        %v791 = vxor.u32 %v781, 2147483648
        %v792 = vsel %vm790, %v791, %v782
        %v793 = vsel %vm786, %v789, %v792
        %v794 = vsel %vm783, nan, %v793
        %v795 = vand.u32 2147483647, %v470
        %vm796 = vcmp.le.f32.partialorder %v795, 0.7853982
        %vm797 = vcmp.lt.s32.totalorder %v470, 0
        %v798 = vand.u32 %v470, 2139095040
        %v799 = vshrl.u32 %v798, 23
        %v800 = vsub.s32 %v799, 127
        %v801 = vand.u32 2147483647, %v470
        %v802 = vand.u32 %v801, 8388607
        %v803 = vor.u32 %v802, 8388608
        %v804 = vsub.s32 0, %v803
        %v805 = vadd.s32 %v800, 1
        %vm806 = vcmp.gt.s32.totalorder %v805, 0
        %v807 = vsel %vm806, %v805, 0
        %v808 = vshrl.u32 %v807, 5
        %v809 = vand.u32 %v807, 31
        %v810 = vsub.s32 32, %v809
        %v811 = vshrl.u32 683565275, %v810
        %v812 = vshll.u32 683565275, %v809
        %v813 = vshrl.u32 2475754826, %v810
        %v814 = vor.u32 %v812, %v813
        %v815 = vshll.u32 2475754826, %v809
        %v816 = vshrl.u32 2131351028, %v810
        %v817 = vor.u32 %v815, %v816
        %v818 = vshll.u32 2131351028, %v809
        %v819 = vshrl.u32 2102212464, %v810
        %v820 = vor.u32 %v818, %v819
        %v821 = vshll.u32 2102212464, %v809
        %v822 = vshrl.u32 920167782, %v810
        %v823 = vor.u32 %v821, %v822
        %v824 = vshll.u32 920167782, %v809
        %v825 = vshrl.u32 1326507024, %v810
        %v826 = vor.u32 %v824, %v825
        %vm827 = vcmp.lt.s32.totalorder %v808, 1
        %vm828 = vcmp.lt.s32.totalorder %v808, 2
        %vm829 = vcmp.lt.s32.totalorder %v808, 3
        %vm830 = vcmp.lt.s32.totalorder %v808, 4
        %v831 = vsel %vm827, %v811, %v814
        %v832 = vsel %vm830, %v820, 2102212464
        %v833 = vsel %vm829, %v817, %v832
        %v834 = vsel %vm828, %v831, %v833
        %v835 = vsel %vm827, %v814, %v817
        %v836 = vsel %vm830, %v823, 920167782
        %v837 = vsel %vm829, %v820, %v836
        %v838 = vsel %vm828, %v835, %v837
        %v839 = vsel %vm827, %v817, %v820
        %v840 = vsel %vm830, %v826, 1326507024
        %v841 = vsel %vm829, %v823, %v840
        %v842 = vsel %vm828, %v839, %v841
        %v843 = vshll.u32 %v803, 8
        %v844 = vmul.u32.u64.compose %v843, %v842
        %v845 = vextract.low.u32 %v844
        %v846 = vextract.high.u32 %v844
        %v847 = vmul.u32.u64.compose %v843, %v838
        %v848 = vextract.low.u32 %v847
        %v849 = vextract.high.u32 %v847
        %v850 = vmul.u32 %v843, %v834
        %v851 = vadd.s32 %v846, %v848
        %vm852 = vc.u32 %v846, %v848
        %v853 = vadd.s32 %v849, 1
        %v854 = vsel %vm852, %v853, %v849
        %v855 = vadd.s32 %v850, %v854
        %v856 = vadd.s32 %v855, 536870912
        %v857 = vshrl.u32 %v856, 30
        %v858 = vshll.u32 %v857, 30
        %v859 = vsub.s32 %v855, %v858
        %vm860 = vcmp.lt.s32.totalorder %v859, 0
        %v861 = vsub.s32 0, %v859
        %v862 = vsel %vm860, %v861, %v859
        %v863 = vclz %v862
        %v864 = vsub.s32 %v863, 2
        %vm865 = vcmp.gt.s32.totalorder 0, %v864
        %v866 = vsel %vm865, 0, %v864
        %v867 = vsub.s32 32, %v866
        %v868 = vshll.u32 %v859, %v866
        %v869 = vshrl.u32 %v851, %v867
        %v870 = vor.u32 %v868, %v869
        %v871 = vsub.s32 4294967266, %v866
        %v872 = vadd.s32 %v871, 127
        %v873 = vshll.u32 %v872, 23
        %v874 = vor.u32 4788187, %v873
        %v875 = vand.u32 2147483647, %v874
        %v877 = vcvt.s32.f32 %v870
        %v878 = vmul.f32 %v877, %v875
        %v879 = vxor.u32 %v878, 2147483648
        %v880 = vsel %vm797, %v879, %v878
        %v881 = vsub.s32 4, %v857
        %v882 = vsel %vm797, %v881, %v857
        %v883 = vsel %vm796, %v470, %v880
        %v884 = vsel %vm796, 0, %v882
        %v885 = vcosq.f32.pop %v883
        %v886 = vsinq.f32.pop %v883
        %vm887 = vweird.f32 %v470
        %v888 = vadd.s32 %v884, 3
        %v889 = vand.u32 %v888, 3
        %vm890 = vcmp.lt.s32.totalorder %v889, 2
        %vm891 = vcmp.eq.s32.totalorder %v889, 0
        %v892 = vxor.u32 %v886, 2147483648
        %v893 = vsel %vm891, %v885, %v892
        %vm894 = vcmp.eq.s32.totalorder %v889, 2
        %v895 = vxor.u32 %v885, 2147483648
        %v896 = vsel %vm894, %v895, %v886
        %v897 = vsel %vm890, %v893, %v896
        %v898 = vsel %vm887, nan, %v897
        %v899 = vand.u32 2147483647, %v471
        %vm900 = vcmp.le.f32.partialorder %v899, 0.7853982
        %vm901 = vcmp.lt.s32.totalorder %v471, 0
        %v902 = vand.u32 %v471, 2139095040
        %v903 = vshrl.u32 %v902, 23
        %v904 = vsub.s32 %v903, 127
        %v905 = vand.u32 2147483647, %v471
        %v906 = vand.u32 %v905, 8388607
        %v907 = vor.u32 %v906, 8388608
        %v908 = vsub.s32 0, %v907
        %v909 = vadd.s32 %v904, 1
        %vm910 = vcmp.gt.s32.totalorder %v909, 0
        %v911 = vsel %vm910, %v909, 0
        %v912 = vshrl.u32 %v911, 5
        %v913 = vand.u32 %v911, 31
        %v914 = vsub.s32 32, %v913
        %v915 = vshrl.u32 683565275, %v914
        %v916 = vshll.u32 683565275, %v913
        %v917 = vshrl.u32 2475754826, %v914
        %v918 = vor.u32 %v916, %v917
        %v919 = vshll.u32 2475754826, %v913
        %v920 = vshrl.u32 2131351028, %v914
        %v921 = vor.u32 %v919, %v920
        %v922 = vshll.u32 2131351028, %v913
        %v923 = vshrl.u32 2102212464, %v914
        %v924 = vor.u32 %v922, %v923
        %v925 = vshll.u32 2102212464, %v913
        %v926 = vshrl.u32 920167782, %v914
        %v927 = vor.u32 %v925, %v926
        %v928 = vshll.u32 920167782, %v913
        %v929 = vshrl.u32 1326507024, %v914
        %v930 = vor.u32 %v928, %v929
        %vm931 = vcmp.lt.s32.totalorder %v912, 1
        %vm932 = vcmp.lt.s32.totalorder %v912, 2
        %vm933 = vcmp.lt.s32.totalorder %v912, 3
        %vm934 = vcmp.lt.s32.totalorder %v912, 4
        %v935 = vsel %vm931, %v915, %v918
        %v936 = vsel %vm934, %v924, 2102212464
        %v937 = vsel %vm933, %v921, %v936
        %v938 = vsel %vm932, %v935, %v937
        %v939 = vsel %vm931, %v918, %v921
        %v940 = vsel %vm934, %v927, 920167782
        %v941 = vsel %vm933, %v924, %v940
        %v942 = vsel %vm932, %v939, %v941
        %v943 = vsel %vm931, %v921, %v924
        %v944 = vsel %vm934, %v930, 1326507024
        %v945 = vsel %vm933, %v927, %v944
        %v946 = vsel %vm932, %v943, %v945
        %v947 = vshll.u32 %v907, 8
        %v948 = vmul.u32.u64.compose %v947, %v946
        %v949 = vextract.low.u32 %v948
        %v950 = vextract.high.u32 %v948
        %v951 = vmul.u32.u64.compose %v947, %v942
        %v952 = vextract.low.u32 %v951
        %v953 = vextract.high.u32 %v951
        %v954 = vmul.u32 %v947, %v938
        %v955 = vadd.s32 %v950, %v952
        %vm956 = vc.u32 %v950, %v952
        %v957 = vadd.s32 %v953, 1
        %v958 = vsel %vm956, %v957, %v953
        %v959 = vadd.s32 %v954, %v958
        %v960 = vadd.s32 %v959, 536870912
        %v961 = vshrl.u32 %v960, 30
        %v962 = vshll.u32 %v961, 30
        %v963 = vsub.s32 %v959, %v962
        %vm964 = vcmp.lt.s32.totalorder %v963, 0
        %v965 = vsub.s32 0, %v963
        %v966 = vsel %vm964, %v965, %v963
        %v967 = vclz %v966
        %v968 = vsub.s32 %v967, 2
        %vm969 = vcmp.gt.s32.totalorder 0, %v968
        %v970 = vsel %vm969, 0, %v968
        %v971 = vsub.s32 32, %v970
        %v972 = vshll.u32 %v963, %v970
        %v973 = vshrl.u32 %v955, %v971
        %v974 = vor.u32 %v972, %v973
        %v975 = vsub.s32 4294967266, %v970
        %v976 = vadd.s32 %v975, 127
        %v977 = vshll.u32 %v976, 23
        %v978 = vor.u32 4788187, %v977
        %v979 = vand.u32 2147483647, %v978
        %v981 = vcvt.s32.f32 %v974
        %v982 = vmul.f32 %v981, %v979
        %v983 = vxor.u32 %v982, 2147483648
        %v984 = vsel %vm901, %v983, %v982
        %v985 = vsub.s32 4, %v961
        %v986 = vsel %vm901, %v985, %v961
        %v987 = vsel %vm900, %v471, %v984
        %v988 = vsel %vm900, 0, %v986
        %v989 = vcosq.f32.pop %v987
        %v990 = vsinq.f32.pop %v987
        %vm991 = vweird.f32 %v471
        %v992 = vadd.s32 %v988, 3
        %v993 = vand.u32 %v992, 3
        %vm994 = vcmp.lt.s32.totalorder %v993, 2
        %vm995 = vcmp.eq.s32.totalorder %v993, 0
        %v996 = vxor.u32 %v990, 2147483648
        %v997 = vsel %vm995, %v989, %v996
        %vm998 = vcmp.eq.s32.totalorder %v993, 2
        %v999 = vxor.u32 %v989, 2147483648
        %v1000 = vsel %vm998, %v999, %v990
        %v1001 = vsel %vm994, %v997, %v1000
        %v1002 = vsel %vm991, nan, %v1001
        %v1003 = vand.u32 2147483647, %v472
        %vm1004 = vcmp.le.f32.partialorder %v1003, 0.7853982
        %vm1005 = vcmp.lt.s32.totalorder %v472, 0
        %v1006 = vand.u32 %v472, 2139095040
        %v1007 = vshrl.u32 %v1006, 23
        %v1008 = vsub.s32 %v1007, 127
        %v1009 = vand.u32 2147483647, %v472
        %v1010 = vand.u32 %v1009, 8388607
        %v1011 = vor.u32 %v1010, 8388608
        %v1012 = vsub.s32 0, %v1011
        %v1013 = vadd.s32 %v1008, 1
        %vm1014 = vcmp.gt.s32.totalorder %v1013, 0
        %v1015 = vsel %vm1014, %v1013, 0
        %v1016 = vshrl.u32 %v1015, 5
        %v1017 = vand.u32 %v1015, 31
        %v1018 = vsub.s32 32, %v1017
        %v1019 = vshrl.u32 683565275, %v1018
        %v1020 = vshll.u32 683565275, %v1017
        %v1021 = vshrl.u32 2475754826, %v1018
        %v1022 = vor.u32 %v1020, %v1021
        %v1023 = vshll.u32 2475754826, %v1017
        %v1024 = vshrl.u32 2131351028, %v1018
        %v1025 = vor.u32 %v1023, %v1024
        %v1026 = vshll.u32 2131351028, %v1017
        %v1027 = vshrl.u32 2102212464, %v1018
        %v1028 = vor.u32 %v1026, %v1027
        %v1029 = vshll.u32 2102212464, %v1017
        %v1030 = vshrl.u32 920167782, %v1018
        %v1031 = vor.u32 %v1029, %v1030
        %v1032 = vshll.u32 920167782, %v1017
        %v1033 = vshrl.u32 1326507024, %v1018
        %v1034 = vor.u32 %v1032, %v1033
        %vm1035 = vcmp.lt.s32.totalorder %v1016, 1
        %vm1036 = vcmp.lt.s32.totalorder %v1016, 2
        %vm1037 = vcmp.lt.s32.totalorder %v1016, 3
        %vm1038 = vcmp.lt.s32.totalorder %v1016, 4
        %v1039 = vsel %vm1035, %v1019, %v1022
        %v1040 = vsel %vm1038, %v1028, 2102212464
        %v1041 = vsel %vm1037, %v1025, %v1040
        %v1042 = vsel %vm1036, %v1039, %v1041
        %v1043 = vsel %vm1035, %v1022, %v1025
        %v1044 = vsel %vm1038, %v1031, 920167782
        %v1045 = vsel %vm1037, %v1028, %v1044
        %v1046 = vsel %vm1036, %v1043, %v1045
        %v1047 = vsel %vm1035, %v1025, %v1028
        %v1048 = vsel %vm1038, %v1034, 1326507024
        %v1049 = vsel %vm1037, %v1031, %v1048
        %v1050 = vsel %vm1036, %v1047, %v1049
        %v1051 = vshll.u32 %v1011, 8
        %v1052 = vmul.u32.u64.compose %v1051, %v1050
        %v1053 = vextract.low.u32 %v1052
        %v1054 = vextract.high.u32 %v1052
        %v1055 = vmul.u32.u64.compose %v1051, %v1046
        %v1056 = vextract.low.u32 %v1055
        %v1057 = vextract.high.u32 %v1055
        %v1058 = vmul.u32 %v1051, %v1042
        %v1059 = vadd.s32 %v1054, %v1056
        %vm1060 = vc.u32 %v1054, %v1056
        %v1061 = vadd.s32 %v1057, 1
        %v1062 = vsel %vm1060, %v1061, %v1057
        %v1063 = vadd.s32 %v1058, %v1062
        %v1064 = vadd.s32 %v1063, 536870912
        %v1065 = vshrl.u32 %v1064, 30
        %v1066 = vshll.u32 %v1065, 30
        %v1067 = vsub.s32 %v1063, %v1066
        %vm1068 = vcmp.lt.s32.totalorder %v1067, 0
        %v1069 = vsub.s32 0, %v1067
        %v1070 = vsel %vm1068, %v1069, %v1067
        %v1071 = vclz %v1070
        %v1072 = vsub.s32 %v1071, 2
        %vm1073 = vcmp.gt.s32.totalorder 0, %v1072
        %v1074 = vsel %vm1073, 0, %v1072
        %v1075 = vsub.s32 32, %v1074
        %v1076 = vshll.u32 %v1067, %v1074
        %v1077 = vshrl.u32 %v1059, %v1075
        %v1078 = vor.u32 %v1076, %v1077
        %v1079 = vsub.s32 4294967266, %v1074
        %v1080 = vadd.s32 %v1079, 127
        %v1081 = vshll.u32 %v1080, 23
        %v1082 = vor.u32 4788187, %v1081
        %v1083 = vand.u32 2147483647, %v1082
        %v1085 = vcvt.s32.f32 %v1078
        %v1086 = vmul.f32 %v1085, %v1083
        %v1087 = vxor.u32 %v1086, 2147483648
        %v1088 = vsel %vm1005, %v1087, %v1086
        %v1089 = vsub.s32 4, %v1065
        %v1090 = vsel %vm1005, %v1089, %v1065
        %v1091 = vsel %vm1004, %v472, %v1088
        %v1092 = vsel %vm1004, 0, %v1090
        %v1093 = vcosq.f32.pop %v1091
        %v1094 = vsinq.f32.pop %v1091
        %vm1095 = vweird.f32 %v472
        %v1096 = vadd.s32 %v1092, 3
        %v1097 = vand.u32 %v1096, 3
        %vm1098 = vcmp.lt.s32.totalorder %v1097, 2
        %vm1099 = vcmp.eq.s32.totalorder %v1097, 0
        %v1100 = vxor.u32 %v1094, 2147483648
        %v1101 = vsel %vm1099, %v1093, %v1100
        %vm1102 = vcmp.eq.s32.totalorder %v1097, 2
        %v1103 = vxor.u32 %v1093, 2147483648
        %v1104 = vsel %vm1102, %v1103, %v1094
        %v1105 = vsel %vm1098, %v1101, %v1104
        %v1106 = vsel %vm1095, nan, %v1105
        %v1107 = vand.u32 2147483647, %v473
        %vm1108 = vcmp.le.f32.partialorder %v1107, 0.7853982
        %vm1109 = vcmp.lt.s32.totalorder %v473, 0
        %v1110 = vand.u32 %v473, 2139095040
        %v1111 = vshrl.u32 %v1110, 23
        %v1112 = vsub.s32 %v1111, 127
        %v1113 = vand.u32 2147483647, %v473
        %v1114 = vand.u32 %v1113, 8388607
        %v1115 = vor.u32 %v1114, 8388608
        %v1116 = vsub.s32 0, %v1115
        %v1117 = vadd.s32 %v1112, 1
        %vm1118 = vcmp.gt.s32.totalorder %v1117, 0
        %v1119 = vsel %vm1118, %v1117, 0
        %v1120 = vshrl.u32 %v1119, 5
        %v1121 = vand.u32 %v1119, 31
        %v1122 = vsub.s32 32, %v1121
        %v1123 = vshrl.u32 683565275, %v1122
        %v1124 = vshll.u32 683565275, %v1121
        %v1125 = vshrl.u32 2475754826, %v1122
        %v1126 = vor.u32 %v1124, %v1125
        %v1127 = vshll.u32 2475754826, %v1121
        %v1128 = vshrl.u32 2131351028, %v1122
        %v1129 = vor.u32 %v1127, %v1128
        %v1130 = vshll.u32 2131351028, %v1121
        %v1131 = vshrl.u32 2102212464, %v1122
        %v1132 = vor.u32 %v1130, %v1131
        %v1133 = vshll.u32 2102212464, %v1121
        %v1134 = vshrl.u32 920167782, %v1122
        %v1135 = vor.u32 %v1133, %v1134
        %v1136 = vshll.u32 920167782, %v1121
        %v1137 = vshrl.u32 1326507024, %v1122
        %v1138 = vor.u32 %v1136, %v1137
        %vm1139 = vcmp.lt.s32.totalorder %v1120, 1
        %vm1140 = vcmp.lt.s32.totalorder %v1120, 2
        %vm1141 = vcmp.lt.s32.totalorder %v1120, 3
        %vm1142 = vcmp.lt.s32.totalorder %v1120, 4
        %v1143 = vsel %vm1139, %v1123, %v1126
        %v1144 = vsel %vm1142, %v1132, 2102212464
        %v1145 = vsel %vm1141, %v1129, %v1144
        %v1146 = vsel %vm1140, %v1143, %v1145
        %v1147 = vsel %vm1139, %v1126, %v1129
        %v1148 = vsel %vm1142, %v1135, 920167782
        %v1149 = vsel %vm1141, %v1132, %v1148
        %v1150 = vsel %vm1140, %v1147, %v1149
        %v1151 = vsel %vm1139, %v1129, %v1132
        %v1152 = vsel %vm1142, %v1138, 1326507024
        %v1153 = vsel %vm1141, %v1135, %v1152
        %v1154 = vsel %vm1140, %v1151, %v1153
        %v1155 = vshll.u32 %v1115, 8
        %v1156 = vmul.u32.u64.compose %v1155, %v1154
        %v1157 = vextract.low.u32 %v1156
        %v1158 = vextract.high.u32 %v1156
        %v1159 = vmul.u32.u64.compose %v1155, %v1150
        %v1160 = vextract.low.u32 %v1159
        %v1161 = vextract.high.u32 %v1159
        %v1162 = vmul.u32 %v1155, %v1146
        %v1163 = vadd.s32 %v1158, %v1160
        %vm1164 = vc.u32 %v1158, %v1160
        %v1165 = vadd.s32 %v1161, 1
        %v1166 = vsel %vm1164, %v1165, %v1161
        %v1167 = vadd.s32 %v1162, %v1166
        %v1168 = vadd.s32 %v1167, 536870912
        %v1169 = vshrl.u32 %v1168, 30
        %v1170 = vshll.u32 %v1169, 30
        %v1171 = vsub.s32 %v1167, %v1170
        %vm1172 = vcmp.lt.s32.totalorder %v1171, 0
        %v1173 = vsub.s32 0, %v1171
        %v1174 = vsel %vm1172, %v1173, %v1171
        %v1175 = vclz %v1174
        %v1176 = vsub.s32 %v1175, 2
        %vm1177 = vcmp.gt.s32.totalorder 0, %v1176
        %v1178 = vsel %vm1177, 0, %v1176
        %v1179 = vsub.s32 32, %v1178
        %v1180 = vshll.u32 %v1171, %v1178
        %v1181 = vshrl.u32 %v1163, %v1179
        %v1182 = vor.u32 %v1180, %v1181
        %v1183 = vsub.s32 4294967266, %v1178
        %v1184 = vadd.s32 %v1183, 127
        %v1185 = vshll.u32 %v1184, 23
        %v1186 = vor.u32 4788187, %v1185
        %v1187 = vand.u32 2147483647, %v1186
        %v1189 = vcvt.s32.f32 %v1182
        %v1190 = vmul.f32 %v1189, %v1187
        %v1191 = vxor.u32 %v1190, 2147483648
        %v1192 = vsel %vm1109, %v1191, %v1190
        %v1193 = vsub.s32 4, %v1169
        %v1194 = vsel %vm1109, %v1193, %v1169
        %v1195 = vsel %vm1108, %v473, %v1192
        %v1196 = vsel %vm1108, 0, %v1194
        %v1197 = vcosq.f32.pop %v1195
        %v1198 = vsinq.f32.pop %v1195
        %vm1199 = vweird.f32 %v473
        %v1200 = vadd.s32 %v1196, 3
        %v1201 = vand.u32 %v1200, 3
        %vm1202 = vcmp.lt.s32.totalorder %v1201, 2
        %vm1203 = vcmp.eq.s32.totalorder %v1201, 0
        %v1204 = vxor.u32 %v1198, 2147483648
        %v1205 = vsel %vm1203, %v1197, %v1204
        %vm1206 = vcmp.eq.s32.totalorder %v1201, 2
        %v1207 = vxor.u32 %v1197, 2147483648
        %v1208 = vsel %vm1206, %v1207, %v1198
        %v1209 = vsel %vm1202, %v1205, %v1208
        %v1210 = vsel %vm1199, nan, %v1209
        %v1211 = vand.u32 2147483647, %v474
        %vm1212 = vcmp.le.f32.partialorder %v1211, 0.7853982
        %vm1213 = vcmp.lt.s32.totalorder %v474, 0
        %v1214 = vand.u32 %v474, 2139095040
        %v1215 = vshrl.u32 %v1214, 23
        %v1216 = vsub.s32 %v1215, 127
        %v1217 = vand.u32 2147483647, %v474
        %v1218 = vand.u32 %v1217, 8388607
        %v1219 = vor.u32 %v1218, 8388608
        %v1220 = vsub.s32 0, %v1219
        %v1221 = vadd.s32 %v1216, 1
        %vm1222 = vcmp.gt.s32.totalorder %v1221, 0
        %v1223 = vsel %vm1222, %v1221, 0
        %v1224 = vshrl.u32 %v1223, 5
        %v1225 = vand.u32 %v1223, 31
        %v1226 = vsub.s32 32, %v1225
        %v1227 = vshrl.u32 683565275, %v1226
        %v1228 = vshll.u32 683565275, %v1225
        %v1229 = vshrl.u32 2475754826, %v1226
        %v1230 = vor.u32 %v1228, %v1229
        %v1231 = vshll.u32 2475754826, %v1225
        %v1232 = vshrl.u32 2131351028, %v1226
        %v1233 = vor.u32 %v1231, %v1232
        %v1234 = vshll.u32 2131351028, %v1225
        %v1235 = vshrl.u32 2102212464, %v1226
        %v1236 = vor.u32 %v1234, %v1235
        %v1237 = vshll.u32 2102212464, %v1225
        %v1238 = vshrl.u32 920167782, %v1226
        %v1239 = vor.u32 %v1237, %v1238
        %v1240 = vshll.u32 920167782, %v1225
        %v1241 = vshrl.u32 1326507024, %v1226
        %v1242 = vor.u32 %v1240, %v1241
        %vm1243 = vcmp.lt.s32.totalorder %v1224, 1
        %vm1244 = vcmp.lt.s32.totalorder %v1224, 2
        %vm1245 = vcmp.lt.s32.totalorder %v1224, 3
        %vm1246 = vcmp.lt.s32.totalorder %v1224, 4
        %v1247 = vsel %vm1243, %v1227, %v1230
        %v1248 = vsel %vm1246, %v1236, 2102212464
        %v1249 = vsel %vm1245, %v1233, %v1248
        %v1250 = vsel %vm1244, %v1247, %v1249
        %v1251 = vsel %vm1243, %v1230, %v1233
        %v1252 = vsel %vm1246, %v1239, 920167782
        %v1253 = vsel %vm1245, %v1236, %v1252
        %v1254 = vsel %vm1244, %v1251, %v1253
        %v1255 = vsel %vm1243, %v1233, %v1236
        %v1256 = vsel %vm1246, %v1242, 1326507024
        %v1257 = vsel %vm1245, %v1239, %v1256
        %v1258 = vsel %vm1244, %v1255, %v1257
        %v1259 = vshll.u32 %v1219, 8
        %v1260 = vmul.u32.u64.compose %v1259, %v1258
        %v1261 = vextract.low.u32 %v1260
        %v1262 = vextract.high.u32 %v1260
        %v1263 = vmul.u32.u64.compose %v1259, %v1254
        %v1264 = vextract.low.u32 %v1263
        %v1265 = vextract.high.u32 %v1263
        %v1266 = vmul.u32 %v1259, %v1250
        %v1267 = vadd.s32 %v1262, %v1264
        %vm1268 = vc.u32 %v1262, %v1264
        %v1269 = vadd.s32 %v1265, 1
        %v1270 = vsel %vm1268, %v1269, %v1265
        %v1271 = vadd.s32 %v1266, %v1270
        %v1272 = vadd.s32 %v1271, 536870912
        %v1273 = vshrl.u32 %v1272, 30
        %v1274 = vshll.u32 %v1273, 30
        %v1275 = vsub.s32 %v1271, %v1274
        %vm1276 = vcmp.lt.s32.totalorder %v1275, 0
        %v1277 = vsub.s32 0, %v1275
        %v1278 = vsel %vm1276, %v1277, %v1275
        %v1279 = vclz %v1278
        %v1280 = vsub.s32 %v1279, 2
        %vm1281 = vcmp.gt.s32.totalorder 0, %v1280
        %v1282 = vsel %vm1281, 0, %v1280
        %v1283 = vsub.s32 32, %v1282
        %v1284 = vshll.u32 %v1275, %v1282
        %v1285 = vshrl.u32 %v1267, %v1283
        %v1286 = vor.u32 %v1284, %v1285
        %v1287 = vsub.s32 4294967266, %v1282
        %v1288 = vadd.s32 %v1287, 127
        %v1289 = vshll.u32 %v1288, 23
        %v1290 = vor.u32 4788187, %v1289
        %v1291 = vand.u32 2147483647, %v1290
        %v1293 = vcvt.s32.f32 %v1286
        %v1294 = vmul.f32 %v1293, %v1291
        %v1295 = vxor.u32 %v1294, 2147483648
        %v1296 = vsel %vm1213, %v1295, %v1294
        %v1297 = vsub.s32 4, %v1273
        %v1298 = vsel %vm1213, %v1297, %v1273
        %v1299 = vsel %vm1212, %v474, %v1296
        %v1300 = vsel %vm1212, 0, %v1298
        %v1301 = vcosq.f32.pop %v1299
        %v1302 = vsinq.f32.pop %v1299
        %vm1303 = vweird.f32 %v474
        %v1304 = vadd.s32 %v1300, 3
        %v1305 = vand.u32 %v1304, 3
        %vm1306 = vcmp.lt.s32.totalorder %v1305, 2
        %vm1307 = vcmp.eq.s32.totalorder %v1305, 0
        %v1308 = vxor.u32 %v1302, 2147483648
        %v1309 = vsel %vm1307, %v1301, %v1308
        %vm1310 = vcmp.eq.s32.totalorder %v1305, 2
        %v1311 = vxor.u32 %v1301, 2147483648
        %v1312 = vsel %vm1310, %v1311, %v1302
        %v1313 = vsel %vm1306, %v1309, %v1312
        %v1314 = vsel %vm1303, nan, %v1313
        %v1315 = vand.u32 2147483647, %v475
        %vm1316 = vcmp.le.f32.partialorder %v1315, 0.7853982
        %vm1317 = vcmp.lt.s32.totalorder %v475, 0
        %v1318 = vand.u32 %v475, 2139095040
        %v1319 = vshrl.u32 %v1318, 23
        %v1320 = vsub.s32 %v1319, 127
        %v1321 = vand.u32 2147483647, %v475
        %v1322 = vand.u32 %v1321, 8388607
        %v1323 = vor.u32 %v1322, 8388608
        %v1324 = vsub.s32 0, %v1323
        %v1325 = vadd.s32 %v1320, 1
        %vm1326 = vcmp.gt.s32.totalorder %v1325, 0
        %v1327 = vsel %vm1326, %v1325, 0
        %v1328 = vshrl.u32 %v1327, 5
        %v1329 = vand.u32 %v1327, 31
        %v1330 = vsub.s32 32, %v1329
        %v1331 = vshrl.u32 683565275, %v1330
        %v1332 = vshll.u32 683565275, %v1329
        %v1333 = vshrl.u32 2475754826, %v1330
        %v1334 = vor.u32 %v1332, %v1333
        %v1335 = vshll.u32 2475754826, %v1329
        %v1336 = vshrl.u32 2131351028, %v1330
        %v1337 = vor.u32 %v1335, %v1336
        %v1338 = vshll.u32 2131351028, %v1329
        %v1339 = vshrl.u32 2102212464, %v1330
        %v1340 = vor.u32 %v1338, %v1339
        %v1341 = vshll.u32 2102212464, %v1329
        %v1342 = vshrl.u32 920167782, %v1330
        %v1343 = vor.u32 %v1341, %v1342
        %v1344 = vshll.u32 920167782, %v1329
        %v1345 = vshrl.u32 1326507024, %v1330
        %v1346 = vor.u32 %v1344, %v1345
        %vm1347 = vcmp.lt.s32.totalorder %v1328, 1
        %vm1348 = vcmp.lt.s32.totalorder %v1328, 2
        %vm1349 = vcmp.lt.s32.totalorder %v1328, 3
        %vm1350 = vcmp.lt.s32.totalorder %v1328, 4
        %v1351 = vsel %vm1347, %v1331, %v1334
        %v1352 = vsel %vm1350, %v1340, 2102212464
        %v1353 = vsel %vm1349, %v1337, %v1352
        %v1354 = vsel %vm1348, %v1351, %v1353
        %v1355 = vsel %vm1347, %v1334, %v1337
        %v1356 = vsel %vm1350, %v1343, 920167782
        %v1357 = vsel %vm1349, %v1340, %v1356
        %v1358 = vsel %vm1348, %v1355, %v1357
        %v1359 = vsel %vm1347, %v1337, %v1340
        %v1360 = vsel %vm1350, %v1346, 1326507024
        %v1361 = vsel %vm1349, %v1343, %v1360
        %v1362 = vsel %vm1348, %v1359, %v1361
        %v1363 = vshll.u32 %v1323, 8
        %v1364 = vmul.u32.u64.compose %v1363, %v1362
        %v1365 = vextract.low.u32 %v1364
        %v1366 = vextract.high.u32 %v1364
        %v1367 = vmul.u32.u64.compose %v1363, %v1358
        %v1368 = vextract.low.u32 %v1367
        %v1369 = vextract.high.u32 %v1367
        %v1370 = vmul.u32 %v1363, %v1354
        %v1371 = vadd.s32 %v1366, %v1368
        %vm1372 = vc.u32 %v1366, %v1368
        %v1373 = vadd.s32 %v1369, 1
        %v1374 = vsel %vm1372, %v1373, %v1369
        %v1375 = vadd.s32 %v1370, %v1374
        %v1376 = vadd.s32 %v1375, 536870912
        %v1377 = vshrl.u32 %v1376, 30
        %v1378 = vshll.u32 %v1377, 30
        %v1379 = vsub.s32 %v1375, %v1378
        %vm1380 = vcmp.lt.s32.totalorder %v1379, 0
        %v1381 = vsub.s32 0, %v1379
        %v1382 = vsel %vm1380, %v1381, %v1379
        %v1383 = vclz %v1382
        %v1384 = vsub.s32 %v1383, 2
        %vm1385 = vcmp.gt.s32.totalorder 0, %v1384
        %v1386 = vsel %vm1385, 0, %v1384
        %v1387 = vsub.s32 32, %v1386
        %v1388 = vshll.u32 %v1379, %v1386
        %v1389 = vshrl.u32 %v1371, %v1387
        %v1390 = vor.u32 %v1388, %v1389
        %v1391 = vsub.s32 4294967266, %v1386
        %v1392 = vadd.s32 %v1391, 127
        %v1393 = vshll.u32 %v1392, 23
        %v1394 = vor.u32 4788187, %v1393
        %v1395 = vand.u32 2147483647, %v1394
        %v1397 = vcvt.s32.f32 %v1390
        %v1398 = vmul.f32 %v1397, %v1395
        %v1399 = vxor.u32 %v1398, 2147483648
        %v1400 = vsel %vm1317, %v1399, %v1398
        %v1401 = vsub.s32 4, %v1377
        %v1402 = vsel %vm1317, %v1401, %v1377
        %v1403 = vsel %vm1316, %v475, %v1400
        %v1404 = vsel %vm1316, 0, %v1402
        %v1405 = vcosq.f32.pop %v1403
        %v1406 = vsinq.f32.pop %v1403
        %vm1407 = vweird.f32 %v475
        %v1408 = vadd.s32 %v1404, 3
        %v1409 = vand.u32 %v1408, 3
        %vm1410 = vcmp.lt.s32.totalorder %v1409, 2
        %vm1411 = vcmp.eq.s32.totalorder %v1409, 0
        %v1412 = vxor.u32 %v1406, 2147483648
        %v1413 = vsel %vm1411, %v1405, %v1412
        %vm1414 = vcmp.eq.s32.totalorder %v1409, 2
        %v1415 = vxor.u32 %v1405, 2147483648
        %v1416 = vsel %vm1414, %v1415, %v1406
        %v1417 = vsel %vm1410, %v1413, %v1416
        %v1418 = vsel %vm1407, nan, %v1417
        %v1419 = vand.u32 2147483647, %v476
        %vm1420 = vcmp.le.f32.partialorder %v1419, 0.7853982
        %vm1421 = vcmp.lt.s32.totalorder %v476, 0
        %v1422 = vand.u32 %v476, 2139095040
        %v1423 = vshrl.u32 %v1422, 23
        %v1424 = vsub.s32 %v1423, 127
        %v1425 = vand.u32 2147483647, %v476
        %v1426 = vand.u32 %v1425, 8388607
        %v1427 = vor.u32 %v1426, 8388608
        %v1428 = vsub.s32 0, %v1427
        %v1429 = vadd.s32 %v1424, 1
        %vm1430 = vcmp.gt.s32.totalorder %v1429, 0
        %v1431 = vsel %vm1430, %v1429, 0
        %v1432 = vshrl.u32 %v1431, 5
        %v1433 = vand.u32 %v1431, 31
        %v1434 = vsub.s32 32, %v1433
        %v1435 = vshrl.u32 683565275, %v1434
        %v1436 = vshll.u32 683565275, %v1433
        %v1437 = vshrl.u32 2475754826, %v1434
        %v1438 = vor.u32 %v1436, %v1437
        %v1439 = vshll.u32 2475754826, %v1433
        %v1440 = vshrl.u32 2131351028, %v1434
        %v1441 = vor.u32 %v1439, %v1440
        %v1442 = vshll.u32 2131351028, %v1433
        %v1443 = vshrl.u32 2102212464, %v1434
        %v1444 = vor.u32 %v1442, %v1443
        %v1445 = vshll.u32 2102212464, %v1433
        %v1446 = vshrl.u32 920167782, %v1434
        %v1447 = vor.u32 %v1445, %v1446
        %v1448 = vshll.u32 920167782, %v1433
        %v1449 = vshrl.u32 1326507024, %v1434
        %v1450 = vor.u32 %v1448, %v1449
        %vm1451 = vcmp.lt.s32.totalorder %v1432, 1
        %vm1452 = vcmp.lt.s32.totalorder %v1432, 2
        %vm1453 = vcmp.lt.s32.totalorder %v1432, 3
        %vm1454 = vcmp.lt.s32.totalorder %v1432, 4
        %v1455 = vsel %vm1451, %v1435, %v1438
        %v1456 = vsel %vm1454, %v1444, 2102212464
        %v1457 = vsel %vm1453, %v1441, %v1456
        %v1458 = vsel %vm1452, %v1455, %v1457
        %v1459 = vsel %vm1451, %v1438, %v1441
        %v1460 = vsel %vm1454, %v1447, 920167782
        %v1461 = vsel %vm1453, %v1444, %v1460
        %v1462 = vsel %vm1452, %v1459, %v1461
        %v1463 = vsel %vm1451, %v1441, %v1444
        %v1464 = vsel %vm1454, %v1450, 1326507024
        %v1465 = vsel %vm1453, %v1447, %v1464
        %v1466 = vsel %vm1452, %v1463, %v1465
        %v1467 = vshll.u32 %v1427, 8
        %v1468 = vmul.u32.u64.compose %v1467, %v1466
        %v1469 = vextract.low.u32 %v1468
        %v1470 = vextract.high.u32 %v1468
        %v1471 = vmul.u32.u64.compose %v1467, %v1462
        %v1472 = vextract.low.u32 %v1471
        %v1473 = vextract.high.u32 %v1471
        %v1474 = vmul.u32 %v1467, %v1458
        %v1475 = vadd.s32 %v1470, %v1472
        %vm1476 = vc.u32 %v1470, %v1472
        %v1477 = vadd.s32 %v1473, 1
        %v1478 = vsel %vm1476, %v1477, %v1473
        %v1479 = vadd.s32 %v1474, %v1478
        %v1480 = vadd.s32 %v1479, 536870912
        %v1481 = vshrl.u32 %v1480, 30
        %v1482 = vshll.u32 %v1481, 30
        %v1483 = vsub.s32 %v1479, %v1482
        %vm1484 = vcmp.lt.s32.totalorder %v1483, 0
        %v1485 = vsub.s32 0, %v1483
        %v1486 = vsel %vm1484, %v1485, %v1483
        %v1487 = vclz %v1486
        %v1488 = vsub.s32 %v1487, 2
        %vm1489 = vcmp.gt.s32.totalorder 0, %v1488
        %v1490 = vsel %vm1489, 0, %v1488
        %v1491 = vsub.s32 32, %v1490
        %v1492 = vshll.u32 %v1483, %v1490
        %v1493 = vshrl.u32 %v1475, %v1491
        %v1494 = vor.u32 %v1492, %v1493
        %v1495 = vsub.s32 4294967266, %v1490
        %v1496 = vadd.s32 %v1495, 127
        %v1497 = vshll.u32 %v1496, 23
        %v1498 = vor.u32 4788187, %v1497
        %v1499 = vand.u32 2147483647, %v1498
        %v1501 = vcvt.s32.f32 %v1494
        %v1502 = vmul.f32 %v1501, %v1499
        %v1503 = vxor.u32 %v1502, 2147483648
        %v1504 = vsel %vm1421, %v1503, %v1502
        %v1505 = vsub.s32 4, %v1481
        %v1506 = vsel %vm1421, %v1505, %v1481
        %v1507 = vsel %vm1420, %v476, %v1504
        %v1508 = vsel %vm1420, 0, %v1506
        %v1509 = vcosq.f32.pop %v1507
        %v1510 = vsinq.f32.pop %v1507
        %vm1511 = vweird.f32 %v476
        %v1512 = vadd.s32 %v1508, 3
        %v1513 = vand.u32 %v1512, 3
        %vm1514 = vcmp.lt.s32.totalorder %v1513, 2
        %vm1515 = vcmp.eq.s32.totalorder %v1513, 0
        %v1516 = vxor.u32 %v1510, 2147483648
        %v1517 = vsel %vm1515, %v1509, %v1516
        %vm1518 = vcmp.eq.s32.totalorder %v1513, 2
        %v1519 = vxor.u32 %v1509, 2147483648
        %v1520 = vsel %vm1518, %v1519, %v1510
        %v1521 = vsel %vm1514, %v1517, %v1520
        %v1522 = vsel %vm1511, nan, %v1521
        %v1523 = vand.u32 2147483647, %v477
        %vm1524 = vcmp.le.f32.partialorder %v1523, 0.7853982
        %vm1525 = vcmp.lt.s32.totalorder %v477, 0
        %v1526 = vand.u32 %v477, 2139095040
        %v1527 = vshrl.u32 %v1526, 23
        %v1528 = vsub.s32 %v1527, 127
        %v1529 = vand.u32 2147483647, %v477
        %v1530 = vand.u32 %v1529, 8388607
        %v1531 = vor.u32 %v1530, 8388608
        %v1532 = vsub.s32 0, %v1531
        %v1533 = vadd.s32 %v1528, 1
        %vm1534 = vcmp.gt.s32.totalorder %v1533, 0
        %v1535 = vsel %vm1534, %v1533, 0
        %v1536 = vshrl.u32 %v1535, 5
        %v1537 = vand.u32 %v1535, 31
        %v1538 = vsub.s32 32, %v1537
        %v1539 = vshrl.u32 683565275, %v1538
        %v1540 = vshll.u32 683565275, %v1537
        %v1541 = vshrl.u32 2475754826, %v1538
        %v1542 = vor.u32 %v1540, %v1541
        %v1543 = vshll.u32 2475754826, %v1537
        %v1544 = vshrl.u32 2131351028, %v1538
        %v1545 = vor.u32 %v1543, %v1544
        %v1546 = vshll.u32 2131351028, %v1537
        %v1547 = vshrl.u32 2102212464, %v1538
        %v1548 = vor.u32 %v1546, %v1547
        %v1549 = vshll.u32 2102212464, %v1537
        %v1550 = vshrl.u32 920167782, %v1538
        %v1551 = vor.u32 %v1549, %v1550
        %v1552 = vshll.u32 920167782, %v1537
        %v1553 = vshrl.u32 1326507024, %v1538
        %v1554 = vor.u32 %v1552, %v1553
        %vm1555 = vcmp.lt.s32.totalorder %v1536, 1
        %vm1556 = vcmp.lt.s32.totalorder %v1536, 2
        %vm1557 = vcmp.lt.s32.totalorder %v1536, 3
        %vm1558 = vcmp.lt.s32.totalorder %v1536, 4
        %v1559 = vsel %vm1555, %v1539, %v1542
        %v1560 = vsel %vm1558, %v1548, 2102212464
        %v1561 = vsel %vm1557, %v1545, %v1560
        %v1562 = vsel %vm1556, %v1559, %v1561
        %v1563 = vsel %vm1555, %v1542, %v1545
        %v1564 = vsel %vm1558, %v1551, 920167782
        %v1565 = vsel %vm1557, %v1548, %v1564
        %v1566 = vsel %vm1556, %v1563, %v1565
        %v1567 = vsel %vm1555, %v1545, %v1548
        %v1568 = vsel %vm1558, %v1554, 1326507024
        %v1569 = vsel %vm1557, %v1551, %v1568
        %v1570 = vsel %vm1556, %v1567, %v1569
        %v1571 = vshll.u32 %v1531, 8
        %v1572 = vmul.u32.u64.compose %v1571, %v1570
        %v1573 = vextract.low.u32 %v1572
        %v1574 = vextract.high.u32 %v1572
        %v1575 = vmul.u32.u64.compose %v1571, %v1566
        %v1576 = vextract.low.u32 %v1575
        %v1577 = vextract.high.u32 %v1575
        %v1578 = vmul.u32 %v1571, %v1562
        %v1579 = vadd.s32 %v1574, %v1576
        %vm1580 = vc.u32 %v1574, %v1576
        %v1581 = vadd.s32 %v1577, 1
        %v1582 = vsel %vm1580, %v1581, %v1577
        %v1583 = vadd.s32 %v1578, %v1582
        %v1584 = vadd.s32 %v1583, 536870912
        %v1585 = vshrl.u32 %v1584, 30
        %v1586 = vshll.u32 %v1585, 30
        %v1587 = vsub.s32 %v1583, %v1586
        %vm1588 = vcmp.lt.s32.totalorder %v1587, 0
        %v1589 = vsub.s32 0, %v1587
        %v1590 = vsel %vm1588, %v1589, %v1587
        %v1591 = vclz %v1590
        %v1592 = vsub.s32 %v1591, 2
        %vm1593 = vcmp.gt.s32.totalorder 0, %v1592
        %v1594 = vsel %vm1593, 0, %v1592
        %v1595 = vsub.s32 32, %v1594
        %v1596 = vshll.u32 %v1587, %v1594
        %v1597 = vshrl.u32 %v1579, %v1595
        %v1598 = vor.u32 %v1596, %v1597
        %v1599 = vsub.s32 4294967266, %v1594
        %v1600 = vadd.s32 %v1599, 127
        %v1601 = vshll.u32 %v1600, 23
        %v1602 = vor.u32 4788187, %v1601
        %v1603 = vand.u32 2147483647, %v1602
        %v1605 = vcvt.s32.f32 %v1598
        %v1606 = vmul.f32 %v1605, %v1603
        %v1607 = vxor.u32 %v1606, 2147483648
        %v1608 = vsel %vm1525, %v1607, %v1606
        %v1609 = vsub.s32 4, %v1585
        %v1610 = vsel %vm1525, %v1609, %v1585
        %v1611 = vsel %vm1524, %v477, %v1608
        %v1612 = vsel %vm1524, 0, %v1610
        %v1613 = vcosq.f32.pop %v1611
        %v1614 = vsinq.f32.pop %v1611
        %vm1615 = vweird.f32 %v477
        %v1616 = vadd.s32 %v1612, 3
        %v1617 = vand.u32 %v1616, 3
        %vm1618 = vcmp.lt.s32.totalorder %v1617, 2
        %vm1619 = vcmp.eq.s32.totalorder %v1617, 0
        %v1620 = vxor.u32 %v1614, 2147483648
        %v1621 = vsel %vm1619, %v1613, %v1620
        %vm1622 = vcmp.eq.s32.totalorder %v1617, 2
        %v1623 = vxor.u32 %v1613, 2147483648
        %v1624 = vsel %vm1622, %v1623, %v1614
        %v1625 = vsel %vm1618, %v1621, %v1624
        %v1626 = vsel %vm1615, nan, %v1625
        %v1627 = vand.u32 2147483647, %v478
        %vm1628 = vcmp.le.f32.partialorder %v1627, 0.7853982
        %vm1629 = vcmp.lt.s32.totalorder %v478, 0
        %v1630 = vand.u32 %v478, 2139095040
        %v1631 = vshrl.u32 %v1630, 23
        %v1632 = vsub.s32 %v1631, 127
        %v1633 = vand.u32 2147483647, %v478
        %v1634 = vand.u32 %v1633, 8388607
        %v1635 = vor.u32 %v1634, 8388608
        %v1636 = vsub.s32 0, %v1635
        %v1637 = vadd.s32 %v1632, 1
        %vm1638 = vcmp.gt.s32.totalorder %v1637, 0
        %v1639 = vsel %vm1638, %v1637, 0
        %v1640 = vshrl.u32 %v1639, 5
        %v1641 = vand.u32 %v1639, 31
        %v1642 = vsub.s32 32, %v1641
        %v1643 = vshrl.u32 683565275, %v1642
        %v1644 = vshll.u32 683565275, %v1641
        %v1645 = vshrl.u32 2475754826, %v1642
        %v1646 = vor.u32 %v1644, %v1645
        %v1647 = vshll.u32 2475754826, %v1641
        %v1648 = vshrl.u32 2131351028, %v1642
        %v1649 = vor.u32 %v1647, %v1648
        %v1650 = vshll.u32 2131351028, %v1641
        %v1651 = vshrl.u32 2102212464, %v1642
        %v1652 = vor.u32 %v1650, %v1651
        %v1653 = vshll.u32 2102212464, %v1641
        %v1654 = vshrl.u32 920167782, %v1642
        %v1655 = vor.u32 %v1653, %v1654
        %v1656 = vshll.u32 920167782, %v1641
        %v1657 = vshrl.u32 1326507024, %v1642
        %v1658 = vor.u32 %v1656, %v1657
        %vm1659 = vcmp.lt.s32.totalorder %v1640, 1
        %vm1660 = vcmp.lt.s32.totalorder %v1640, 2
        %vm1661 = vcmp.lt.s32.totalorder %v1640, 3
        %vm1662 = vcmp.lt.s32.totalorder %v1640, 4
        %v1663 = vsel %vm1659, %v1643, %v1646
        %v1664 = vsel %vm1662, %v1652, 2102212464
        %v1665 = vsel %vm1661, %v1649, %v1664
        %v1666 = vsel %vm1660, %v1663, %v1665
        %v1667 = vsel %vm1659, %v1646, %v1649
        %v1668 = vsel %vm1662, %v1655, 920167782
        %v1669 = vsel %vm1661, %v1652, %v1668
        %v1670 = vsel %vm1660, %v1667, %v1669
        %v1671 = vsel %vm1659, %v1649, %v1652
        %v1672 = vsel %vm1662, %v1658, 1326507024
        %v1673 = vsel %vm1661, %v1655, %v1672
        %v1674 = vsel %vm1660, %v1671, %v1673
        %v1675 = vshll.u32 %v1635, 8
        %v1676 = vmul.u32.u64.compose %v1675, %v1674
        %v1677 = vextract.low.u32 %v1676
        %v1678 = vextract.high.u32 %v1676
        %v1679 = vmul.u32.u64.compose %v1675, %v1670
        %v1680 = vextract.low.u32 %v1679
        %v1681 = vextract.high.u32 %v1679
        %v1682 = vmul.u32 %v1675, %v1666
        %v1683 = vadd.s32 %v1678, %v1680
        %vm1684 = vc.u32 %v1678, %v1680
        %v1685 = vadd.s32 %v1681, 1
        %v1686 = vsel %vm1684, %v1685, %v1681
        %v1687 = vadd.s32 %v1682, %v1686
        %v1688 = vadd.s32 %v1687, 536870912
        %v1689 = vshrl.u32 %v1688, 30
        %v1690 = vshll.u32 %v1689, 30
        %v1691 = vsub.s32 %v1687, %v1690
        %vm1692 = vcmp.lt.s32.totalorder %v1691, 0
        %v1693 = vsub.s32 0, %v1691
        %v1694 = vsel %vm1692, %v1693, %v1691
        %v1695 = vclz %v1694
        %v1696 = vsub.s32 %v1695, 2
        %vm1697 = vcmp.gt.s32.totalorder 0, %v1696
        %v1698 = vsel %vm1697, 0, %v1696
        %v1699 = vsub.s32 32, %v1698
        %v1700 = vshll.u32 %v1691, %v1698
        %v1701 = vshrl.u32 %v1683, %v1699
        %v1702 = vor.u32 %v1700, %v1701
        %v1703 = vsub.s32 4294967266, %v1698
        %v1704 = vadd.s32 %v1703, 127
        %v1705 = vshll.u32 %v1704, 23
        %v1706 = vor.u32 4788187, %v1705
        %v1707 = vand.u32 2147483647, %v1706
        %v1709 = vcvt.s32.f32 %v1702
        %v1710 = vmul.f32 %v1709, %v1707
        %v1711 = vxor.u32 %v1710, 2147483648
        %v1712 = vsel %vm1629, %v1711, %v1710
        %v1713 = vsub.s32 4, %v1689
        %v1714 = vsel %vm1629, %v1713, %v1689
        %v1715 = vsel %vm1628, %v478, %v1712
        %v1716 = vsel %vm1628, 0, %v1714
        %v1717 = vcosq.f32.pop %v1715
        %v1718 = vsinq.f32.pop %v1715
        %vm1719 = vweird.f32 %v478
        %v1720 = vadd.s32 %v1716, 3
        %v1721 = vand.u32 %v1720, 3
        %vm1722 = vcmp.lt.s32.totalorder %v1721, 2
        %vm1723 = vcmp.eq.s32.totalorder %v1721, 0
        %v1724 = vxor.u32 %v1718, 2147483648
        %v1725 = vsel %vm1723, %v1717, %v1724
        %vm1726 = vcmp.eq.s32.totalorder %v1721, 2
        %v1727 = vxor.u32 %v1717, 2147483648
        %v1728 = vsel %vm1726, %v1727, %v1718
        %v1729 = vsel %vm1722, %v1725, %v1728
        %v1730 = vsel %vm1719, nan, %v1729
        %v1731 = vand.u32 2147483647, %v479
        %vm1732 = vcmp.le.f32.partialorder %v1731, 0.7853982
        %vm1733 = vcmp.lt.s32.totalorder %v479, 0
        %v1734 = vand.u32 %v479, 2139095040
        %v1735 = vshrl.u32 %v1734, 23
        %v1736 = vsub.s32 %v1735, 127
        %v1737 = vand.u32 2147483647, %v479
        %v1738 = vand.u32 %v1737, 8388607
        %v1739 = vor.u32 %v1738, 8388608
        %v1740 = vsub.s32 0, %v1739
        %v1741 = vadd.s32 %v1736, 1
        %vm1742 = vcmp.gt.s32.totalorder %v1741, 0
        %v1743 = vsel %vm1742, %v1741, 0
        %v1744 = vshrl.u32 %v1743, 5
        %v1745 = vand.u32 %v1743, 31
        %v1746 = vsub.s32 32, %v1745
        %v1747 = vshrl.u32 683565275, %v1746
        %v1748 = vshll.u32 683565275, %v1745
        %v1749 = vshrl.u32 2475754826, %v1746
        %v1750 = vor.u32 %v1748, %v1749
        %v1751 = vshll.u32 2475754826, %v1745
        %v1752 = vshrl.u32 2131351028, %v1746
        %v1753 = vor.u32 %v1751, %v1752
        %v1754 = vshll.u32 2131351028, %v1745
        %v1755 = vshrl.u32 2102212464, %v1746
        %v1756 = vor.u32 %v1754, %v1755
        %v1757 = vshll.u32 2102212464, %v1745
        %v1758 = vshrl.u32 920167782, %v1746
        %v1759 = vor.u32 %v1757, %v1758
        %v1760 = vshll.u32 920167782, %v1745
        %v1761 = vshrl.u32 1326507024, %v1746
        %v1762 = vor.u32 %v1760, %v1761
        %vm1763 = vcmp.lt.s32.totalorder %v1744, 1
        %vm1764 = vcmp.lt.s32.totalorder %v1744, 2
        %vm1765 = vcmp.lt.s32.totalorder %v1744, 3
        %vm1766 = vcmp.lt.s32.totalorder %v1744, 4
        %v1767 = vsel %vm1763, %v1747, %v1750
        %v1768 = vsel %vm1766, %v1756, 2102212464
        %v1769 = vsel %vm1765, %v1753, %v1768
        %v1770 = vsel %vm1764, %v1767, %v1769
        %v1771 = vsel %vm1763, %v1750, %v1753
        %v1772 = vsel %vm1766, %v1759, 920167782
        %v1773 = vsel %vm1765, %v1756, %v1772
        %v1774 = vsel %vm1764, %v1771, %v1773
        %v1775 = vsel %vm1763, %v1753, %v1756
        %v1776 = vsel %vm1766, %v1762, 1326507024
        %v1777 = vsel %vm1765, %v1759, %v1776
        %v1778 = vsel %vm1764, %v1775, %v1777
        %v1779 = vshll.u32 %v1739, 8
        %v1780 = vmul.u32.u64.compose %v1779, %v1778
        %v1781 = vextract.low.u32 %v1780
        %v1782 = vextract.high.u32 %v1780
        %v1783 = vmul.u32.u64.compose %v1779, %v1774
        %v1784 = vextract.low.u32 %v1783
        %v1785 = vextract.high.u32 %v1783
        %v1786 = vmul.u32 %v1779, %v1770
        %v1787 = vadd.s32 %v1782, %v1784
        %vm1788 = vc.u32 %v1782, %v1784
        %v1789 = vadd.s32 %v1785, 1
        %v1790 = vsel %vm1788, %v1789, %v1785
        %v1791 = vadd.s32 %v1786, %v1790
        %v1792 = vadd.s32 %v1791, 536870912
        %v1793 = vshrl.u32 %v1792, 30
        %v1794 = vshll.u32 %v1793, 30
        %v1795 = vsub.s32 %v1791, %v1794
        %vm1796 = vcmp.lt.s32.totalorder %v1795, 0
        %v1797 = vsub.s32 0, %v1795
        %v1798 = vsel %vm1796, %v1797, %v1795
        %v1799 = vclz %v1798
        %v1800 = vsub.s32 %v1799, 2
        %vm1801 = vcmp.gt.s32.totalorder 0, %v1800
        %v1802 = vsel %vm1801, 0, %v1800
        %v1803 = vsub.s32 32, %v1802
        %v1804 = vshll.u32 %v1795, %v1802
        %v1805 = vshrl.u32 %v1787, %v1803
        %v1806 = vor.u32 %v1804, %v1805
        %v1807 = vsub.s32 4294967266, %v1802
        %v1808 = vadd.s32 %v1807, 127
        %v1809 = vshll.u32 %v1808, 23
        %v1810 = vor.u32 4788187, %v1809
        %v1811 = vand.u32 2147483647, %v1810
        %v1813 = vcvt.s32.f32 %v1806
        %v1814 = vmul.f32 %v1813, %v1811
        %v1815 = vxor.u32 %v1814, 2147483648
        %v1816 = vsel %vm1733, %v1815, %v1814
        %v1817 = vsub.s32 4, %v1793
        %v1818 = vsel %vm1733, %v1817, %v1793
        %v1819 = vsel %vm1732, %v479, %v1816
        %v1820 = vsel %vm1732, 0, %v1818
        %v1821 = vcosq.f32.pop %v1819
        %v1822 = vsinq.f32.pop %v1819
        %vm1823 = vweird.f32 %v479
        %v1824 = vadd.s32 %v1820, 3
        %v1825 = vand.u32 %v1824, 3
        %vm1826 = vcmp.lt.s32.totalorder %v1825, 2
        %vm1827 = vcmp.eq.s32.totalorder %v1825, 0
        %v1828 = vxor.u32 %v1822, 2147483648
        %v1829 = vsel %vm1827, %v1821, %v1828
        %vm1830 = vcmp.eq.s32.totalorder %v1825, 2
        %v1831 = vxor.u32 %v1821, 2147483648
        %v1832 = vsel %vm1830, %v1831, %v1822
        %v1833 = vsel %vm1826, %v1829, %v1832
        %v1834 = vsel %vm1823, nan, %v1833
        %v1835 = vand.u32 2147483647, %v480
        %vm1836 = vcmp.le.f32.partialorder %v1835, 0.7853982
        %vm1837 = vcmp.lt.s32.totalorder %v480, 0
        %v1838 = vand.u32 %v480, 2139095040
        %v1839 = vshrl.u32 %v1838, 23
        %v1840 = vsub.s32 %v1839, 127
        %v1841 = vand.u32 2147483647, %v480
        %v1842 = vand.u32 %v1841, 8388607
        %v1843 = vor.u32 %v1842, 8388608
        %v1844 = vsub.s32 0, %v1843
        %v1845 = vadd.s32 %v1840, 1
        %vm1846 = vcmp.gt.s32.totalorder %v1845, 0
        %v1847 = vsel %vm1846, %v1845, 0
        %v1848 = vshrl.u32 %v1847, 5
        %v1849 = vand.u32 %v1847, 31
        %v1850 = vsub.s32 32, %v1849
        %v1851 = vshrl.u32 683565275, %v1850
        %v1852 = vshll.u32 683565275, %v1849
        %v1853 = vshrl.u32 2475754826, %v1850
        %v1854 = vor.u32 %v1852, %v1853
        %v1855 = vshll.u32 2475754826, %v1849
        %v1856 = vshrl.u32 2131351028, %v1850
        %v1857 = vor.u32 %v1855, %v1856
        %v1858 = vshll.u32 2131351028, %v1849
        %v1859 = vshrl.u32 2102212464, %v1850
        %v1860 = vor.u32 %v1858, %v1859
        %v1861 = vshll.u32 2102212464, %v1849
        %v1862 = vshrl.u32 920167782, %v1850
        %v1863 = vor.u32 %v1861, %v1862
        %v1864 = vshll.u32 920167782, %v1849
        %v1865 = vshrl.u32 1326507024, %v1850
        %v1866 = vor.u32 %v1864, %v1865
        %vm1867 = vcmp.lt.s32.totalorder %v1848, 1
        %vm1868 = vcmp.lt.s32.totalorder %v1848, 2
        %vm1869 = vcmp.lt.s32.totalorder %v1848, 3
        %vm1870 = vcmp.lt.s32.totalorder %v1848, 4
        %v1871 = vsel %vm1867, %v1851, %v1854
        %v1872 = vsel %vm1870, %v1860, 2102212464
        %v1873 = vsel %vm1869, %v1857, %v1872
        %v1874 = vsel %vm1868, %v1871, %v1873
        %v1875 = vsel %vm1867, %v1854, %v1857
        %v1876 = vsel %vm1870, %v1863, 920167782
        %v1877 = vsel %vm1869, %v1860, %v1876
        %v1878 = vsel %vm1868, %v1875, %v1877
        %v1879 = vsel %vm1867, %v1857, %v1860
        %v1880 = vsel %vm1870, %v1866, 1326507024
        %v1881 = vsel %vm1869, %v1863, %v1880
        %v1882 = vsel %vm1868, %v1879, %v1881
        %v1883 = vshll.u32 %v1843, 8
        %v1884 = vmul.u32.u64.compose %v1883, %v1882
        %v1885 = vextract.low.u32 %v1884
        %v1886 = vextract.high.u32 %v1884
        %v1887 = vmul.u32.u64.compose %v1883, %v1878
        %v1888 = vextract.low.u32 %v1887
        %v1889 = vextract.high.u32 %v1887
        %v1890 = vmul.u32 %v1883, %v1874
        %v1891 = vadd.s32 %v1886, %v1888
        %vm1892 = vc.u32 %v1886, %v1888
        %v1893 = vadd.s32 %v1889, 1
        %v1894 = vsel %vm1892, %v1893, %v1889
        %v1895 = vadd.s32 %v1890, %v1894
        %v1896 = vadd.s32 %v1895, 536870912
        %v1897 = vshrl.u32 %v1896, 30
        %v1898 = vshll.u32 %v1897, 30
        %v1899 = vsub.s32 %v1895, %v1898
        %vm1900 = vcmp.lt.s32.totalorder %v1899, 0
        %v1901 = vsub.s32 0, %v1899
        %v1902 = vsel %vm1900, %v1901, %v1899
        %v1903 = vclz %v1902
        %v1904 = vsub.s32 %v1903, 2
        %vm1905 = vcmp.gt.s32.totalorder 0, %v1904
        %v1906 = vsel %vm1905, 0, %v1904
        %v1907 = vsub.s32 32, %v1906
        %v1908 = vshll.u32 %v1899, %v1906
        %v1909 = vshrl.u32 %v1891, %v1907
        %v1910 = vor.u32 %v1908, %v1909
        %v1911 = vsub.s32 4294967266, %v1906
        %v1912 = vadd.s32 %v1911, 127
        %v1913 = vshll.u32 %v1912, 23
        %v1914 = vor.u32 4788187, %v1913
        %v1915 = vand.u32 2147483647, %v1914
        %v1917 = vcvt.s32.f32 %v1910
        %v1918 = vmul.f32 %v1917, %v1915
        %v1919 = vxor.u32 %v1918, 2147483648
        %v1920 = vsel %vm1837, %v1919, %v1918
        %v1921 = vsub.s32 4, %v1897
        %v1922 = vsel %vm1837, %v1921, %v1897
        %v1923 = vsel %vm1836, %v480, %v1920
        %v1924 = vsel %vm1836, 0, %v1922
        %v1925 = vcosq.f32.pop %v1923
        %v1926 = vsinq.f32.pop %v1923
        %vm1927 = vweird.f32 %v480
        %v1928 = vadd.s32 %v1924, 3
        %v1929 = vand.u32 %v1928, 3
        %vm1930 = vcmp.lt.s32.totalorder %v1929, 2
        %vm1931 = vcmp.eq.s32.totalorder %v1929, 0
        %v1932 = vxor.u32 %v1926, 2147483648
        %v1933 = vsel %vm1931, %v1925, %v1932
        %vm1934 = vcmp.eq.s32.totalorder %v1929, 2
        %v1935 = vxor.u32 %v1925, 2147483648
        %v1936 = vsel %vm1934, %v1935, %v1926
        %v1937 = vsel %vm1930, %v1933, %v1936
        %v1938 = vsel %vm1927, nan, %v1937
        %v1939 = vand.u32 2147483647, %v481
        %vm1940 = vcmp.le.f32.partialorder %v1939, 0.7853982
        %vm1941 = vcmp.lt.s32.totalorder %v481, 0
        %v1942 = vand.u32 %v481, 2139095040
        %v1943 = vshrl.u32 %v1942, 23
        %v1944 = vsub.s32 %v1943, 127
        %v1945 = vand.u32 2147483647, %v481
        %v1946 = vand.u32 %v1945, 8388607
        %v1947 = vor.u32 %v1946, 8388608
        %v1948 = vsub.s32 0, %v1947
        %v1949 = vadd.s32 %v1944, 1
        %vm1950 = vcmp.gt.s32.totalorder %v1949, 0
        %v1951 = vsel %vm1950, %v1949, 0
        %v1952 = vshrl.u32 %v1951, 5
        %v1953 = vand.u32 %v1951, 31
        %v1954 = vsub.s32 32, %v1953
        %v1955 = vshrl.u32 683565275, %v1954
        %v1956 = vshll.u32 683565275, %v1953
        %v1957 = vshrl.u32 2475754826, %v1954
        %v1958 = vor.u32 %v1956, %v1957
        %v1959 = vshll.u32 2475754826, %v1953
        %v1960 = vshrl.u32 2131351028, %v1954
        %v1961 = vor.u32 %v1959, %v1960
        %v1962 = vshll.u32 2131351028, %v1953
        %v1963 = vshrl.u32 2102212464, %v1954
        %v1964 = vor.u32 %v1962, %v1963
        %v1965 = vshll.u32 2102212464, %v1953
        %v1966 = vshrl.u32 920167782, %v1954
        %v1967 = vor.u32 %v1965, %v1966
        %v1968 = vshll.u32 920167782, %v1953
        %v1969 = vshrl.u32 1326507024, %v1954
        %v1970 = vor.u32 %v1968, %v1969
        %vm1971 = vcmp.lt.s32.totalorder %v1952, 1
        %vm1972 = vcmp.lt.s32.totalorder %v1952, 2
        %vm1973 = vcmp.lt.s32.totalorder %v1952, 3
        %vm1974 = vcmp.lt.s32.totalorder %v1952, 4
        %v1975 = vsel %vm1971, %v1955, %v1958
        %v1976 = vsel %vm1974, %v1964, 2102212464
        %v1977 = vsel %vm1973, %v1961, %v1976
        %v1978 = vsel %vm1972, %v1975, %v1977
        %v1979 = vsel %vm1971, %v1958, %v1961
        %v1980 = vsel %vm1974, %v1967, 920167782
        %v1981 = vsel %vm1973, %v1964, %v1980
        %v1982 = vsel %vm1972, %v1979, %v1981
        %v1983 = vsel %vm1971, %v1961, %v1964
        %v1984 = vsel %vm1974, %v1970, 1326507024
        %v1985 = vsel %vm1973, %v1967, %v1984
        %v1986 = vsel %vm1972, %v1983, %v1985
        %v1987 = vshll.u32 %v1947, 8
        %v1988 = vmul.u32.u64.compose %v1987, %v1986
        %v1989 = vextract.low.u32 %v1988
        %v1990 = vextract.high.u32 %v1988
        %v1991 = vmul.u32.u64.compose %v1987, %v1982
        %v1992 = vextract.low.u32 %v1991
        %v1993 = vextract.high.u32 %v1991
        %v1994 = vmul.u32 %v1987, %v1978
        %v1995 = vadd.s32 %v1990, %v1992
        %vm1996 = vc.u32 %v1990, %v1992
        %v1997 = vadd.s32 %v1993, 1
        %v1998 = vsel %vm1996, %v1997, %v1993
        %v1999 = vadd.s32 %v1994, %v1998
        %v2000 = vadd.s32 %v1999, 536870912
        %v2001 = vshrl.u32 %v2000, 30
        %v2002 = vshll.u32 %v2001, 30
        %v2003 = vsub.s32 %v1999, %v2002
        %vm2004 = vcmp.lt.s32.totalorder %v2003, 0
        %v2005 = vsub.s32 0, %v2003
        %v2006 = vsel %vm2004, %v2005, %v2003
        %v2007 = vclz %v2006
        %v2008 = vsub.s32 %v2007, 2
        %vm2009 = vcmp.gt.s32.totalorder 0, %v2008
        %v2010 = vsel %vm2009, 0, %v2008
        %v2011 = vsub.s32 32, %v2010
        %v2012 = vshll.u32 %v2003, %v2010
        %v2013 = vshrl.u32 %v1995, %v2011
        %v2014 = vor.u32 %v2012, %v2013
        %v2015 = vsub.s32 4294967266, %v2010
        %v2016 = vadd.s32 %v2015, 127
        %v2017 = vshll.u32 %v2016, 23
        %v2018 = vor.u32 4788187, %v2017
        %v2019 = vand.u32 2147483647, %v2018
        %v2021 = vcvt.s32.f32 %v2014
        %v2022 = vmul.f32 %v2021, %v2019
        %v2023 = vxor.u32 %v2022, 2147483648
        %v2024 = vsel %vm1941, %v2023, %v2022
        %v2025 = vsub.s32 4, %v2001
        %v2026 = vsel %vm1941, %v2025, %v2001
        %v2027 = vsel %vm1940, %v481, %v2024
        %v2028 = vsel %vm1940, 0, %v2026
        %v2029 = vcosq.f32.pop %v2027
        %v2030 = vsinq.f32.pop %v2027
        %vm2031 = vweird.f32 %v481
        %v2032 = vadd.s32 %v2028, 3
        %v2033 = vand.u32 %v2032, 3
        %vm2034 = vcmp.lt.s32.totalorder %v2033, 2
        %vm2035 = vcmp.eq.s32.totalorder %v2033, 0
        %v2036 = vxor.u32 %v2030, 2147483648
        %v2037 = vsel %vm2035, %v2029, %v2036
        %vm2038 = vcmp.eq.s32.totalorder %v2033, 2
        %v2039 = vxor.u32 %v2029, 2147483648
        %v2040 = vsel %vm2038, %v2039, %v2030
        %v2041 = vsel %vm2034, %v2037, %v2040
        %v2042 = vsel %vm2031, nan, %v2041
        %v2043 = vand.u32 2147483647, %v482
        %vm2044 = vcmp.le.f32.partialorder %v2043, 0.7853982
        %vm2045 = vcmp.lt.s32.totalorder %v482, 0
        %v2046 = vand.u32 %v482, 2139095040
        %v2047 = vshrl.u32 %v2046, 23
        %v2048 = vsub.s32 %v2047, 127
        %v2049 = vand.u32 2147483647, %v482
        %v2050 = vand.u32 %v2049, 8388607
        %v2051 = vor.u32 %v2050, 8388608
        %v2052 = vsub.s32 0, %v2051
        %v2053 = vadd.s32 %v2048, 1
        %vm2054 = vcmp.gt.s32.totalorder %v2053, 0
        %v2055 = vsel %vm2054, %v2053, 0
        %v2056 = vshrl.u32 %v2055, 5
        %v2057 = vand.u32 %v2055, 31
        %v2058 = vsub.s32 32, %v2057
        %v2059 = vshrl.u32 683565275, %v2058
        %v2060 = vshll.u32 683565275, %v2057
        %v2061 = vshrl.u32 2475754826, %v2058
        %v2062 = vor.u32 %v2060, %v2061
        %v2063 = vshll.u32 2475754826, %v2057
        %v2064 = vshrl.u32 2131351028, %v2058
        %v2065 = vor.u32 %v2063, %v2064
        %v2066 = vshll.u32 2131351028, %v2057
        %v2067 = vshrl.u32 2102212464, %v2058
        %v2068 = vor.u32 %v2066, %v2067
        %v2069 = vshll.u32 2102212464, %v2057
        %v2070 = vshrl.u32 920167782, %v2058
        %v2071 = vor.u32 %v2069, %v2070
        %v2072 = vshll.u32 920167782, %v2057
        %v2073 = vshrl.u32 1326507024, %v2058
        %v2074 = vor.u32 %v2072, %v2073
        %vm2075 = vcmp.lt.s32.totalorder %v2056, 1
        %vm2076 = vcmp.lt.s32.totalorder %v2056, 2
        %vm2077 = vcmp.lt.s32.totalorder %v2056, 3
        %vm2078 = vcmp.lt.s32.totalorder %v2056, 4
        %v2079 = vsel %vm2075, %v2059, %v2062
        %v2080 = vsel %vm2078, %v2068, 2102212464
        %v2081 = vsel %vm2077, %v2065, %v2080
        %v2082 = vsel %vm2076, %v2079, %v2081
        %v2083 = vsel %vm2075, %v2062, %v2065
        %v2084 = vsel %vm2078, %v2071, 920167782
        %v2085 = vsel %vm2077, %v2068, %v2084
        %v2086 = vsel %vm2076, %v2083, %v2085
        %v2087 = vsel %vm2075, %v2065, %v2068
        %v2088 = vsel %vm2078, %v2074, 1326507024
        %v2089 = vsel %vm2077, %v2071, %v2088
        %v2090 = vsel %vm2076, %v2087, %v2089
        %v2091 = vshll.u32 %v2051, 8
        %v2092 = vmul.u32.u64.compose %v2091, %v2090
        %v2093 = vextract.low.u32 %v2092
        %v2094 = vextract.high.u32 %v2092
        %v2095 = vmul.u32.u64.compose %v2091, %v2086
        %v2096 = vextract.low.u32 %v2095
        %v2097 = vextract.high.u32 %v2095
        %v2098 = vmul.u32 %v2091, %v2082
        %v2099 = vadd.s32 %v2094, %v2096
        %vm2100 = vc.u32 %v2094, %v2096
        %v2101 = vadd.s32 %v2097, 1
        %v2102 = vsel %vm2100, %v2101, %v2097
        %v2103 = vadd.s32 %v2098, %v2102
        %v2104 = vadd.s32 %v2103, 536870912
        %v2105 = vshrl.u32 %v2104, 30
        %v2106 = vshll.u32 %v2105, 30
        %v2107 = vsub.s32 %v2103, %v2106
        %vm2108 = vcmp.lt.s32.totalorder %v2107, 0
        %v2109 = vsub.s32 0, %v2107
        %v2110 = vsel %vm2108, %v2109, %v2107
        %v2111 = vclz %v2110
        %v2112 = vsub.s32 %v2111, 2
        %vm2113 = vcmp.gt.s32.totalorder 0, %v2112
        %v2114 = vsel %vm2113, 0, %v2112
        %v2115 = vsub.s32 32, %v2114
        %v2116 = vshll.u32 %v2107, %v2114
        %v2117 = vshrl.u32 %v2099, %v2115
        %v2118 = vor.u32 %v2116, %v2117
        %v2119 = vsub.s32 4294967266, %v2114
        %v2120 = vadd.s32 %v2119, 127
        %v2121 = vshll.u32 %v2120, 23
        %v2122 = vor.u32 4788187, %v2121
        %v2123 = vand.u32 2147483647, %v2122
        %v2125 = vcvt.s32.f32 %v2118
        %v2126 = vmul.f32 %v2125, %v2123
        %v2127 = vxor.u32 %v2126, 2147483648
        %v2128 = vsel %vm2045, %v2127, %v2126
        %v2129 = vsub.s32 4, %v2105
        %v2130 = vsel %vm2045, %v2129, %v2105
        %v2131 = vsel %vm2044, %v482, %v2128
        %v2132 = vsel %vm2044, 0, %v2130
        %v2133 = vcosq.f32.pop %v2131
        %v2134 = vsinq.f32.pop %v2131
        %vm2135 = vweird.f32 %v482
        %v2136 = vadd.s32 %v2132, 3
        %v2137 = vand.u32 %v2136, 3
        %vm2138 = vcmp.lt.s32.totalorder %v2137, 2
        %vm2139 = vcmp.eq.s32.totalorder %v2137, 0
        %v2140 = vxor.u32 %v2134, 2147483648
        %v2141 = vsel %vm2139, %v2133, %v2140
        %vm2142 = vcmp.eq.s32.totalorder %v2137, 2
        %v2143 = vxor.u32 %v2133, 2147483648
        %v2144 = vsel %vm2142, %v2143, %v2134
        %v2145 = vsel %vm2138, %v2141, %v2144
        %v2146 = vsel %vm2135, nan, %v2145
        %2147 = vst.msk [vmem:[%s163] sm:$0xff] %vm194, %v586
        %2148 = vst.msk [vmem:[%s163 + $0x8] sm:$0xff] %vm194, %v690
        %2149 = vst.msk [vmem:[%s163 + $0x10] sm:$0xff] %vm194, %v794
        %2150 = vst.msk [vmem:[%s163 + $0x18] sm:$0xff] %vm194, %v898
        %2151 = vst.msk [vmem:[%s163 + $0x20] sm:$0xff] %vm194, %v1002
        %2152 = vst.msk [vmem:[%s163 + $0x28] sm:$0xff] %vm194, %v1106
        %2153 = vst.msk [vmem:[%s163 + $0x30] sm:$0xff] %vm194, %v1210
        %2154 = vst.msk [vmem:[%s163 + $0x38] sm:$0xff] %vm194, %v1314
        %2155 = vst.msk [vmem:[%s163 + $0x40] sm:$0xff] %vm194, %v1418
        %2156 = vst.msk [vmem:[%s163 + $0x48] sm:$0xff] %vm194, %v1522
        %2157 = vst.msk [vmem:[%s163 + $0x50] sm:$0xff] %vm194, %v1626
        %2158 = vst.msk [vmem:[%s163 + $0x58] sm:$0xff] %vm194, %v1730
        %2159 = vst.msk [vmem:[%s163 + $0x60] sm:$0xff] %vm194, %v1834
        %2160 = vst.msk [vmem:[%s163 + $0x68] sm:$0xff] %vm194, %v1938
        %2161 = vst.msk [vmem:[%s163 + $0x70] sm:$0xff] %vm194, %v2042
        %2162 = vst.msk [vmem:[%s163 + $0x78] sm:$0xff] %vm194, %v2146
        %v2163 = vmul.f32 %v289, %v349
        %v2164 = vmul.f32 %v290, %v349
        %v2165 = vmul.f32 %v289, %v353
        %v2166 = vmul.f32 %v290, %v353
        %v2167 = vmul.f32 %v289, %v357
        %v2168 = vmul.f32 %v290, %v357
        %v2169 = vmul.f32 %v289, %v361
        %v2170 = vmul.f32 %v290, %v361
        %v2171 = vmul.f32 %v289, %v365
        %v2172 = vmul.f32 %v290, %v365
        %v2173 = vmul.f32 %v289, %v369
        %v2174 = vmul.f32 %v290, %v369
        %v2175 = vmul.f32 %v289, %v373
        %v2176 = vmul.f32 %v290, %v373
        %v2177 = vmul.f32 %v289, %v377
        %v2178 = vmul.f32 %v290, %v377
        %v2179 = vadd.f32 %v2163, %v437
        %v2180 = vadd.f32 %v2164, %v437
        %v2181 = vadd.f32 %v2165, %v441
        %v2182 = vadd.f32 %v2166, %v441
        %v2183 = vadd.f32 %v2167, %v445
        %v2184 = vadd.f32 %v2168, %v445
        %v2185 = vadd.f32 %v2169, %v449
        %v2186 = vadd.f32 %v2170, %v449
        %v2187 = vadd.f32 %v2171, %v453
        %v2188 = vadd.f32 %v2172, %v453
        %v2189 = vadd.f32 %v2173, %v457
        %v2190 = vadd.f32 %v2174, %v457
        %v2191 = vadd.f32 %v2175, %v461
        %v2192 = vadd.f32 %v2176, %v461
        %v2193 = vadd.f32 %v2177, %v465
        %v2194 = vadd.f32 %v2178, %v465
        %v2195 = vand.u32 2147483647, %v2179
        %vm2196 = vcmp.le.f32.partialorder %v2195, 0.7853982
        %vm2197 = vcmp.lt.s32.totalorder %v2179, 0
        %v2198 = vand.u32 %v2179, 2139095040
        %v2199 = vshrl.u32 %v2198, 23
        %v2200 = vsub.s32 %v2199, 127
        %v2201 = vand.u32 2147483647, %v2179
        %v2202 = vand.u32 %v2201, 8388607
        %v2203 = vor.u32 %v2202, 8388608
        %v2204 = vsub.s32 0, %v2203
        %v2205 = vadd.s32 %v2200, 1
        %vm2206 = vcmp.gt.s32.totalorder %v2205, 0
        %v2207 = vsel %vm2206, %v2205, 0
        %v2208 = vshrl.u32 %v2207, 5
        %v2209 = vand.u32 %v2207, 31
        %v2210 = vsub.s32 32, %v2209
        %v2211 = vshrl.u32 683565275, %v2210
        %v2212 = vshll.u32 683565275, %v2209
        %v2213 = vshrl.u32 2475754826, %v2210
        %v2214 = vor.u32 %v2212, %v2213
        %v2215 = vshll.u32 2475754826, %v2209
        %v2216 = vshrl.u32 2131351028, %v2210
        %v2217 = vor.u32 %v2215, %v2216
        %v2218 = vshll.u32 2131351028, %v2209
        %v2219 = vshrl.u32 2102212464, %v2210
        %v2220 = vor.u32 %v2218, %v2219
        %v2221 = vshll.u32 2102212464, %v2209
        %v2222 = vshrl.u32 920167782, %v2210
        %v2223 = vor.u32 %v2221, %v2222
        %v2224 = vshll.u32 920167782, %v2209
        %v2225 = vshrl.u32 1326507024, %v2210
        %v2226 = vor.u32 %v2224, %v2225
        %vm2227 = vcmp.lt.s32.totalorder %v2208, 1
        %vm2228 = vcmp.lt.s32.totalorder %v2208, 2
        %vm2229 = vcmp.lt.s32.totalorder %v2208, 3
        %vm2230 = vcmp.lt.s32.totalorder %v2208, 4
        %v2231 = vsel %vm2227, %v2211, %v2214
        %v2232 = vsel %vm2230, %v2220, 2102212464
        %v2233 = vsel %vm2229, %v2217, %v2232
        %v2234 = vsel %vm2228, %v2231, %v2233
        %v2235 = vsel %vm2227, %v2214, %v2217
        %v2236 = vsel %vm2230, %v2223, 920167782
        %v2237 = vsel %vm2229, %v2220, %v2236
        %v2238 = vsel %vm2228, %v2235, %v2237
        %v2239 = vsel %vm2227, %v2217, %v2220
        %v2240 = vsel %vm2230, %v2226, 1326507024
        %v2241 = vsel %vm2229, %v2223, %v2240
        %v2242 = vsel %vm2228, %v2239, %v2241
        %v2243 = vshll.u32 %v2203, 8
        %v2244 = vmul.u32.u64.compose %v2243, %v2242
        %v2245 = vextract.low.u32 %v2244
        %v2246 = vextract.high.u32 %v2244
        %v2247 = vmul.u32.u64.compose %v2243, %v2238
        %v2248 = vextract.low.u32 %v2247
        %v2249 = vextract.high.u32 %v2247
        %v2250 = vmul.u32 %v2243, %v2234
        %v2251 = vadd.s32 %v2246, %v2248
        %vm2252 = vc.u32 %v2246, %v2248
        %v2253 = vadd.s32 %v2249, 1
        %v2254 = vsel %vm2252, %v2253, %v2249
        %v2255 = vadd.s32 %v2250, %v2254
        %v2256 = vadd.s32 %v2255, 536870912
        %v2257 = vshrl.u32 %v2256, 30
        %v2258 = vshll.u32 %v2257, 30
        %v2259 = vsub.s32 %v2255, %v2258
        %vm2260 = vcmp.lt.s32.totalorder %v2259, 0
        %v2261 = vsub.s32 0, %v2259
        %v2262 = vsel %vm2260, %v2261, %v2259
        %v2263 = vclz %v2262
        %v2264 = vsub.s32 %v2263, 2
        %vm2265 = vcmp.gt.s32.totalorder 0, %v2264
        %v2266 = vsel %vm2265, 0, %v2264
        %v2267 = vsub.s32 32, %v2266
        %v2268 = vshll.u32 %v2259, %v2266
        %v2269 = vshrl.u32 %v2251, %v2267
        %v2270 = vor.u32 %v2268, %v2269
        %v2271 = vsub.s32 4294967266, %v2266
        %v2272 = vadd.s32 %v2271, 127
        %v2273 = vshll.u32 %v2272, 23
        %v2274 = vor.u32 4788187, %v2273
        %v2275 = vand.u32 2147483647, %v2274
        %v2277 = vcvt.s32.f32 %v2270
        %v2278 = vmul.f32 %v2277, %v2275
        %v2279 = vxor.u32 %v2278, 2147483648
        %v2280 = vsel %vm2197, %v2279, %v2278
        %v2281 = vsub.s32 4, %v2257
        %v2282 = vsel %vm2197, %v2281, %v2257
        %v2283 = vsel %vm2196, %v2179, %v2280
        %v2284 = vsel %vm2196, 0, %v2282
        %v2285 = vcosq.f32.pop %v2283
        %v2286 = vsinq.f32.pop %v2283
        %vm2287 = vweird.f32 %v2179
        %v2288 = vadd.s32 %v2284, 3
        %v2289 = vand.u32 %v2288, 3
        %vm2290 = vcmp.lt.s32.totalorder %v2289, 2
        %vm2291 = vcmp.eq.s32.totalorder %v2289, 0
        %v2292 = vxor.u32 %v2286, 2147483648
        %v2293 = vsel %vm2291, %v2285, %v2292
        %vm2294 = vcmp.eq.s32.totalorder %v2289, 2
        %v2295 = vxor.u32 %v2285, 2147483648
        %v2296 = vsel %vm2294, %v2295, %v2286
        %v2297 = vsel %vm2290, %v2293, %v2296
        %v2298 = vsel %vm2287, nan, %v2297
        %v2299 = vand.u32 2147483647, %v2180
        %vm2300 = vcmp.le.f32.partialorder %v2299, 0.7853982
        %vm2301 = vcmp.lt.s32.totalorder %v2180, 0
        %v2302 = vand.u32 %v2180, 2139095040
        %v2303 = vshrl.u32 %v2302, 23
        %v2304 = vsub.s32 %v2303, 127
        %v2305 = vand.u32 2147483647, %v2180
        %v2306 = vand.u32 %v2305, 8388607
        %v2307 = vor.u32 %v2306, 8388608
        %v2308 = vsub.s32 0, %v2307
        %v2309 = vadd.s32 %v2304, 1
        %vm2310 = vcmp.gt.s32.totalorder %v2309, 0
        %v2311 = vsel %vm2310, %v2309, 0
        %v2312 = vshrl.u32 %v2311, 5
        %v2313 = vand.u32 %v2311, 31
        %v2314 = vsub.s32 32, %v2313
        %v2315 = vshrl.u32 683565275, %v2314
        %v2316 = vshll.u32 683565275, %v2313
        %v2317 = vshrl.u32 2475754826, %v2314
        %v2318 = vor.u32 %v2316, %v2317
        %v2319 = vshll.u32 2475754826, %v2313
        %v2320 = vshrl.u32 2131351028, %v2314
        %v2321 = vor.u32 %v2319, %v2320
        %v2322 = vshll.u32 2131351028, %v2313
        %v2323 = vshrl.u32 2102212464, %v2314
        %v2324 = vor.u32 %v2322, %v2323
        %v2325 = vshll.u32 2102212464, %v2313
        %v2326 = vshrl.u32 920167782, %v2314
        %v2327 = vor.u32 %v2325, %v2326
        %v2328 = vshll.u32 920167782, %v2313
        %v2329 = vshrl.u32 1326507024, %v2314
        %v2330 = vor.u32 %v2328, %v2329
        %vm2331 = vcmp.lt.s32.totalorder %v2312, 1
        %vm2332 = vcmp.lt.s32.totalorder %v2312, 2
        %vm2333 = vcmp.lt.s32.totalorder %v2312, 3
        %vm2334 = vcmp.lt.s32.totalorder %v2312, 4
        %v2335 = vsel %vm2331, %v2315, %v2318
        %v2336 = vsel %vm2334, %v2324, 2102212464
        %v2337 = vsel %vm2333, %v2321, %v2336
        %v2338 = vsel %vm2332, %v2335, %v2337
        %v2339 = vsel %vm2331, %v2318, %v2321
        %v2340 = vsel %vm2334, %v2327, 920167782
        %v2341 = vsel %vm2333, %v2324, %v2340
        %v2342 = vsel %vm2332, %v2339, %v2341
        %v2343 = vsel %vm2331, %v2321, %v2324
        %v2344 = vsel %vm2334, %v2330, 1326507024
        %v2345 = vsel %vm2333, %v2327, %v2344
        %v2346 = vsel %vm2332, %v2343, %v2345
        %v2347 = vshll.u32 %v2307, 8
        %v2348 = vmul.u32.u64.compose %v2347, %v2346
        %v2349 = vextract.low.u32 %v2348
        %v2350 = vextract.high.u32 %v2348
        %v2351 = vmul.u32.u64.compose %v2347, %v2342
        %v2352 = vextract.low.u32 %v2351
        %v2353 = vextract.high.u32 %v2351
        %v2354 = vmul.u32 %v2347, %v2338
        %v2355 = vadd.s32 %v2350, %v2352
        %vm2356 = vc.u32 %v2350, %v2352
        %v2357 = vadd.s32 %v2353, 1
        %v2358 = vsel %vm2356, %v2357, %v2353
        %v2359 = vadd.s32 %v2354, %v2358
        %v2360 = vadd.s32 %v2359, 536870912
        %v2361 = vshrl.u32 %v2360, 30
        %v2362 = vshll.u32 %v2361, 30
        %v2363 = vsub.s32 %v2359, %v2362
        %vm2364 = vcmp.lt.s32.totalorder %v2363, 0
        %v2365 = vsub.s32 0, %v2363
        %v2366 = vsel %vm2364, %v2365, %v2363
        %v2367 = vclz %v2366
        %v2368 = vsub.s32 %v2367, 2
        %vm2369 = vcmp.gt.s32.totalorder 0, %v2368
        %v2370 = vsel %vm2369, 0, %v2368
        %v2371 = vsub.s32 32, %v2370
        %v2372 = vshll.u32 %v2363, %v2370
        %v2373 = vshrl.u32 %v2355, %v2371
        %v2374 = vor.u32 %v2372, %v2373
        %v2375 = vsub.s32 4294967266, %v2370
        %v2376 = vadd.s32 %v2375, 127
        %v2377 = vshll.u32 %v2376, 23
        %v2378 = vor.u32 4788187, %v2377
        %v2379 = vand.u32 2147483647, %v2378
        %v2381 = vcvt.s32.f32 %v2374
        %v2382 = vmul.f32 %v2381, %v2379
        %v2383 = vxor.u32 %v2382, 2147483648
        %v2384 = vsel %vm2301, %v2383, %v2382
        %v2385 = vsub.s32 4, %v2361
        %v2386 = vsel %vm2301, %v2385, %v2361
        %v2387 = vsel %vm2300, %v2180, %v2384
        %v2388 = vsel %vm2300, 0, %v2386
        %v2389 = vcosq.f32.pop %v2387
        %v2390 = vsinq.f32.pop %v2387
        %vm2391 = vweird.f32 %v2180
        %v2392 = vadd.s32 %v2388, 3
        %v2393 = vand.u32 %v2392, 3
        %vm2394 = vcmp.lt.s32.totalorder %v2393, 2
        %vm2395 = vcmp.eq.s32.totalorder %v2393, 0
        %v2396 = vxor.u32 %v2390, 2147483648
        %v2397 = vsel %vm2395, %v2389, %v2396
        %vm2398 = vcmp.eq.s32.totalorder %v2393, 2
        %v2399 = vxor.u32 %v2389, 2147483648
        %v2400 = vsel %vm2398, %v2399, %v2390
        %v2401 = vsel %vm2394, %v2397, %v2400
        %v2402 = vsel %vm2391, nan, %v2401
        %v2403 = vand.u32 2147483647, %v2181
        %vm2404 = vcmp.le.f32.partialorder %v2403, 0.7853982
        %vm2405 = vcmp.lt.s32.totalorder %v2181, 0
        %v2406 = vand.u32 %v2181, 2139095040
        %v2407 = vshrl.u32 %v2406, 23
        %v2408 = vsub.s32 %v2407, 127
        %v2409 = vand.u32 2147483647, %v2181
        %v2410 = vand.u32 %v2409, 8388607
        %v2411 = vor.u32 %v2410, 8388608
        %v2412 = vsub.s32 0, %v2411
        %v2413 = vadd.s32 %v2408, 1
        %vm2414 = vcmp.gt.s32.totalorder %v2413, 0
        %v2415 = vsel %vm2414, %v2413, 0
        %v2416 = vshrl.u32 %v2415, 5
        %v2417 = vand.u32 %v2415, 31
        %v2418 = vsub.s32 32, %v2417
        %v2419 = vshrl.u32 683565275, %v2418
        %v2420 = vshll.u32 683565275, %v2417
        %v2421 = vshrl.u32 2475754826, %v2418
        %v2422 = vor.u32 %v2420, %v2421
        %v2423 = vshll.u32 2475754826, %v2417
        %v2424 = vshrl.u32 2131351028, %v2418
        %v2425 = vor.u32 %v2423, %v2424
        %v2426 = vshll.u32 2131351028, %v2417
        %v2427 = vshrl.u32 2102212464, %v2418
        %v2428 = vor.u32 %v2426, %v2427
        %v2429 = vshll.u32 2102212464, %v2417
        %v2430 = vshrl.u32 920167782, %v2418
        %v2431 = vor.u32 %v2429, %v2430
        %v2432 = vshll.u32 920167782, %v2417
        %v2433 = vshrl.u32 1326507024, %v2418
        %v2434 = vor.u32 %v2432, %v2433
        %vm2435 = vcmp.lt.s32.totalorder %v2416, 1
        %vm2436 = vcmp.lt.s32.totalorder %v2416, 2
        %vm2437 = vcmp.lt.s32.totalorder %v2416, 3
        %vm2438 = vcmp.lt.s32.totalorder %v2416, 4
        %v2439 = vsel %vm2435, %v2419, %v2422
        %v2440 = vsel %vm2438, %v2428, 2102212464
        %v2441 = vsel %vm2437, %v2425, %v2440
        %v2442 = vsel %vm2436, %v2439, %v2441
        %v2443 = vsel %vm2435, %v2422, %v2425
        %v2444 = vsel %vm2438, %v2431, 920167782
        %v2445 = vsel %vm2437, %v2428, %v2444
        %v2446 = vsel %vm2436, %v2443, %v2445
        %v2447 = vsel %vm2435, %v2425, %v2428
        %v2448 = vsel %vm2438, %v2434, 1326507024
        %v2449 = vsel %vm2437, %v2431, %v2448
        %v2450 = vsel %vm2436, %v2447, %v2449
        %v2451 = vshll.u32 %v2411, 8
        %v2452 = vmul.u32.u64.compose %v2451, %v2450
        %v2453 = vextract.low.u32 %v2452
        %v2454 = vextract.high.u32 %v2452
        %v2455 = vmul.u32.u64.compose %v2451, %v2446
        %v2456 = vextract.low.u32 %v2455
        %v2457 = vextract.high.u32 %v2455
        %v2458 = vmul.u32 %v2451, %v2442
        %v2459 = vadd.s32 %v2454, %v2456
        %vm2460 = vc.u32 %v2454, %v2456
        %v2461 = vadd.s32 %v2457, 1
        %v2462 = vsel %vm2460, %v2461, %v2457
        %v2463 = vadd.s32 %v2458, %v2462
        %v2464 = vadd.s32 %v2463, 536870912
        %v2465 = vshrl.u32 %v2464, 30
        %v2466 = vshll.u32 %v2465, 30
        %v2467 = vsub.s32 %v2463, %v2466
        %vm2468 = vcmp.lt.s32.totalorder %v2467, 0
        %v2469 = vsub.s32 0, %v2467
        %v2470 = vsel %vm2468, %v2469, %v2467
        %v2471 = vclz %v2470
        %v2472 = vsub.s32 %v2471, 2
        %vm2473 = vcmp.gt.s32.totalorder 0, %v2472
        %v2474 = vsel %vm2473, 0, %v2472
        %v2475 = vsub.s32 32, %v2474
        %v2476 = vshll.u32 %v2467, %v2474
        %v2477 = vshrl.u32 %v2459, %v2475
        %v2478 = vor.u32 %v2476, %v2477
        %v2479 = vsub.s32 4294967266, %v2474
        %v2480 = vadd.s32 %v2479, 127
        %v2481 = vshll.u32 %v2480, 23
        %v2482 = vor.u32 4788187, %v2481
        %v2483 = vand.u32 2147483647, %v2482
        %v2485 = vcvt.s32.f32 %v2478
        %v2486 = vmul.f32 %v2485, %v2483
        %v2487 = vxor.u32 %v2486, 2147483648
        %v2488 = vsel %vm2405, %v2487, %v2486
        %v2489 = vsub.s32 4, %v2465
        %v2490 = vsel %vm2405, %v2489, %v2465
        %v2491 = vsel %vm2404, %v2181, %v2488
        %v2492 = vsel %vm2404, 0, %v2490
        %v2493 = vcosq.f32.pop %v2491
        %v2494 = vsinq.f32.pop %v2491
        %vm2495 = vweird.f32 %v2181
        %v2496 = vadd.s32 %v2492, 3
        %v2497 = vand.u32 %v2496, 3
        %vm2498 = vcmp.lt.s32.totalorder %v2497, 2
        %vm2499 = vcmp.eq.s32.totalorder %v2497, 0
        %v2500 = vxor.u32 %v2494, 2147483648
        %v2501 = vsel %vm2499, %v2493, %v2500
        %vm2502 = vcmp.eq.s32.totalorder %v2497, 2
        %v2503 = vxor.u32 %v2493, 2147483648
        %v2504 = vsel %vm2502, %v2503, %v2494
        %v2505 = vsel %vm2498, %v2501, %v2504
        %v2506 = vsel %vm2495, nan, %v2505
        %v2507 = vand.u32 2147483647, %v2182
        %vm2508 = vcmp.le.f32.partialorder %v2507, 0.7853982
        %vm2509 = vcmp.lt.s32.totalorder %v2182, 0
        %v2510 = vand.u32 %v2182, 2139095040
        %v2511 = vshrl.u32 %v2510, 23
        %v2512 = vsub.s32 %v2511, 127
        %v2513 = vand.u32 2147483647, %v2182
        %v2514 = vand.u32 %v2513, 8388607
        %v2515 = vor.u32 %v2514, 8388608
        %v2516 = vsub.s32 0, %v2515
        %v2517 = vadd.s32 %v2512, 1
        %vm2518 = vcmp.gt.s32.totalorder %v2517, 0
        %v2519 = vsel %vm2518, %v2517, 0
        %v2520 = vshrl.u32 %v2519, 5
        %v2521 = vand.u32 %v2519, 31
        %v2522 = vsub.s32 32, %v2521
        %v2523 = vshrl.u32 683565275, %v2522
        %v2524 = vshll.u32 683565275, %v2521
        %v2525 = vshrl.u32 2475754826, %v2522
        %v2526 = vor.u32 %v2524, %v2525
        %v2527 = vshll.u32 2475754826, %v2521
        %v2528 = vshrl.u32 2131351028, %v2522
        %v2529 = vor.u32 %v2527, %v2528
        %v2530 = vshll.u32 2131351028, %v2521
        %v2531 = vshrl.u32 2102212464, %v2522
        %v2532 = vor.u32 %v2530, %v2531
        %v2533 = vshll.u32 2102212464, %v2521
        %v2534 = vshrl.u32 920167782, %v2522
        %v2535 = vor.u32 %v2533, %v2534
        %v2536 = vshll.u32 920167782, %v2521
        %v2537 = vshrl.u32 1326507024, %v2522
        %v2538 = vor.u32 %v2536, %v2537
        %vm2539 = vcmp.lt.s32.totalorder %v2520, 1
        %vm2540 = vcmp.lt.s32.totalorder %v2520, 2
        %vm2541 = vcmp.lt.s32.totalorder %v2520, 3
        %vm2542 = vcmp.lt.s32.totalorder %v2520, 4
        %v2543 = vsel %vm2539, %v2523, %v2526
        %v2544 = vsel %vm2542, %v2532, 2102212464
        %v2545 = vsel %vm2541, %v2529, %v2544
        %v2546 = vsel %vm2540, %v2543, %v2545
        %v2547 = vsel %vm2539, %v2526, %v2529
        %v2548 = vsel %vm2542, %v2535, 920167782
        %v2549 = vsel %vm2541, %v2532, %v2548
        %v2550 = vsel %vm2540, %v2547, %v2549
        %v2551 = vsel %vm2539, %v2529, %v2532
        %v2552 = vsel %vm2542, %v2538, 1326507024
        %v2553 = vsel %vm2541, %v2535, %v2552
        %v2554 = vsel %vm2540, %v2551, %v2553
        %v2555 = vshll.u32 %v2515, 8
        %v2556 = vmul.u32.u64.compose %v2555, %v2554
        %v2557 = vextract.low.u32 %v2556
        %v2558 = vextract.high.u32 %v2556
        %v2559 = vmul.u32.u64.compose %v2555, %v2550
        %v2560 = vextract.low.u32 %v2559
        %v2561 = vextract.high.u32 %v2559
        %v2562 = vmul.u32 %v2555, %v2546
        %v2563 = vadd.s32 %v2558, %v2560
        %vm2564 = vc.u32 %v2558, %v2560
        %v2565 = vadd.s32 %v2561, 1
        %v2566 = vsel %vm2564, %v2565, %v2561
        %v2567 = vadd.s32 %v2562, %v2566
        %v2568 = vadd.s32 %v2567, 536870912
        %v2569 = vshrl.u32 %v2568, 30
        %v2570 = vshll.u32 %v2569, 30
        %v2571 = vsub.s32 %v2567, %v2570
        %vm2572 = vcmp.lt.s32.totalorder %v2571, 0
        %v2573 = vsub.s32 0, %v2571
        %v2574 = vsel %vm2572, %v2573, %v2571
        %v2575 = vclz %v2574
        %v2576 = vsub.s32 %v2575, 2
        %vm2577 = vcmp.gt.s32.totalorder 0, %v2576
        %v2578 = vsel %vm2577, 0, %v2576
        %v2579 = vsub.s32 32, %v2578
        %v2580 = vshll.u32 %v2571, %v2578
        %v2581 = vshrl.u32 %v2563, %v2579
        %v2582 = vor.u32 %v2580, %v2581
        %v2583 = vsub.s32 4294967266, %v2578
        %v2584 = vadd.s32 %v2583, 127
        %v2585 = vshll.u32 %v2584, 23
        %v2586 = vor.u32 4788187, %v2585
        %v2587 = vand.u32 2147483647, %v2586
        %v2589 = vcvt.s32.f32 %v2582
        %v2590 = vmul.f32 %v2589, %v2587
        %v2591 = vxor.u32 %v2590, 2147483648
        %v2592 = vsel %vm2509, %v2591, %v2590
        %v2593 = vsub.s32 4, %v2569
        %v2594 = vsel %vm2509, %v2593, %v2569
        %v2595 = vsel %vm2508, %v2182, %v2592
        %v2596 = vsel %vm2508, 0, %v2594
        %v2597 = vcosq.f32.pop %v2595
        %v2598 = vsinq.f32.pop %v2595
        %vm2599 = vweird.f32 %v2182
        %v2600 = vadd.s32 %v2596, 3
        %v2601 = vand.u32 %v2600, 3
        %vm2602 = vcmp.lt.s32.totalorder %v2601, 2
        %vm2603 = vcmp.eq.s32.totalorder %v2601, 0
        %v2604 = vxor.u32 %v2598, 2147483648
        %v2605 = vsel %vm2603, %v2597, %v2604
        %vm2606 = vcmp.eq.s32.totalorder %v2601, 2
        %v2607 = vxor.u32 %v2597, 2147483648
        %v2608 = vsel %vm2606, %v2607, %v2598
        %v2609 = vsel %vm2602, %v2605, %v2608
        %v2610 = vsel %vm2599, nan, %v2609
        %v2611 = vand.u32 2147483647, %v2183
        %vm2612 = vcmp.le.f32.partialorder %v2611, 0.7853982
        %vm2613 = vcmp.lt.s32.totalorder %v2183, 0
        %v2614 = vand.u32 %v2183, 2139095040
        %v2615 = vshrl.u32 %v2614, 23
        %v2616 = vsub.s32 %v2615, 127
        %v2617 = vand.u32 2147483647, %v2183
        %v2618 = vand.u32 %v2617, 8388607
        %v2619 = vor.u32 %v2618, 8388608
        %v2620 = vsub.s32 0, %v2619
        %v2621 = vadd.s32 %v2616, 1
        %vm2622 = vcmp.gt.s32.totalorder %v2621, 0
        %v2623 = vsel %vm2622, %v2621, 0
        %v2624 = vshrl.u32 %v2623, 5
        %v2625 = vand.u32 %v2623, 31
        %v2626 = vsub.s32 32, %v2625
        %v2627 = vshrl.u32 683565275, %v2626
        %v2628 = vshll.u32 683565275, %v2625
        %v2629 = vshrl.u32 2475754826, %v2626
        %v2630 = vor.u32 %v2628, %v2629
        %v2631 = vshll.u32 2475754826, %v2625
        %v2632 = vshrl.u32 2131351028, %v2626
        %v2633 = vor.u32 %v2631, %v2632
        %v2634 = vshll.u32 2131351028, %v2625
        %v2635 = vshrl.u32 2102212464, %v2626
        %v2636 = vor.u32 %v2634, %v2635
        %v2637 = vshll.u32 2102212464, %v2625
        %v2638 = vshrl.u32 920167782, %v2626
        %v2639 = vor.u32 %v2637, %v2638
        %v2640 = vshll.u32 920167782, %v2625
        %v2641 = vshrl.u32 1326507024, %v2626
        %v2642 = vor.u32 %v2640, %v2641
        %vm2643 = vcmp.lt.s32.totalorder %v2624, 1
        %vm2644 = vcmp.lt.s32.totalorder %v2624, 2
        %vm2645 = vcmp.lt.s32.totalorder %v2624, 3
        %vm2646 = vcmp.lt.s32.totalorder %v2624, 4
        %v2647 = vsel %vm2643, %v2627, %v2630
        %v2648 = vsel %vm2646, %v2636, 2102212464
        %v2649 = vsel %vm2645, %v2633, %v2648
        %v2650 = vsel %vm2644, %v2647, %v2649
        %v2651 = vsel %vm2643, %v2630, %v2633
        %v2652 = vsel %vm2646, %v2639, 920167782
        %v2653 = vsel %vm2645, %v2636, %v2652
        %v2654 = vsel %vm2644, %v2651, %v2653
        %v2655 = vsel %vm2643, %v2633, %v2636
        %v2656 = vsel %vm2646, %v2642, 1326507024
        %v2657 = vsel %vm2645, %v2639, %v2656
        %v2658 = vsel %vm2644, %v2655, %v2657
        %v2659 = vshll.u32 %v2619, 8
        %v2660 = vmul.u32.u64.compose %v2659, %v2658
        %v2661 = vextract.low.u32 %v2660
        %v2662 = vextract.high.u32 %v2660
        %v2663 = vmul.u32.u64.compose %v2659, %v2654
        %v2664 = vextract.low.u32 %v2663
        %v2665 = vextract.high.u32 %v2663
        %v2666 = vmul.u32 %v2659, %v2650
        %v2667 = vadd.s32 %v2662, %v2664
        %vm2668 = vc.u32 %v2662, %v2664
        %v2669 = vadd.s32 %v2665, 1
        %v2670 = vsel %vm2668, %v2669, %v2665
        %v2671 = vadd.s32 %v2666, %v2670
        %v2672 = vadd.s32 %v2671, 536870912
        %v2673 = vshrl.u32 %v2672, 30
        %v2674 = vshll.u32 %v2673, 30
        %v2675 = vsub.s32 %v2671, %v2674
        %vm2676 = vcmp.lt.s32.totalorder %v2675, 0
        %v2677 = vsub.s32 0, %v2675
        %v2678 = vsel %vm2676, %v2677, %v2675
        %v2679 = vclz %v2678
        %v2680 = vsub.s32 %v2679, 2
        %vm2681 = vcmp.gt.s32.totalorder 0, %v2680
        %v2682 = vsel %vm2681, 0, %v2680
        %v2683 = vsub.s32 32, %v2682
        %v2684 = vshll.u32 %v2675, %v2682
        %v2685 = vshrl.u32 %v2667, %v2683
        %v2686 = vor.u32 %v2684, %v2685
        %v2687 = vsub.s32 4294967266, %v2682
        %v2688 = vadd.s32 %v2687, 127
        %v2689 = vshll.u32 %v2688, 23
        %v2690 = vor.u32 4788187, %v2689
        %v2691 = vand.u32 2147483647, %v2690
        %v2693 = vcvt.s32.f32 %v2686
        %v2694 = vmul.f32 %v2693, %v2691
        %v2695 = vxor.u32 %v2694, 2147483648
        %v2696 = vsel %vm2613, %v2695, %v2694
        %v2697 = vsub.s32 4, %v2673
        %v2698 = vsel %vm2613, %v2697, %v2673
        %v2699 = vsel %vm2612, %v2183, %v2696
        %v2700 = vsel %vm2612, 0, %v2698
        %v2701 = vcosq.f32.pop %v2699
        %v2702 = vsinq.f32.pop %v2699
        %vm2703 = vweird.f32 %v2183
        %v2704 = vadd.s32 %v2700, 3
        %v2705 = vand.u32 %v2704, 3
        %vm2706 = vcmp.lt.s32.totalorder %v2705, 2
        %vm2707 = vcmp.eq.s32.totalorder %v2705, 0
        %v2708 = vxor.u32 %v2702, 2147483648
        %v2709 = vsel %vm2707, %v2701, %v2708
        %vm2710 = vcmp.eq.s32.totalorder %v2705, 2
        %v2711 = vxor.u32 %v2701, 2147483648
        %v2712 = vsel %vm2710, %v2711, %v2702
        %v2713 = vsel %vm2706, %v2709, %v2712
        %v2714 = vsel %vm2703, nan, %v2713
        %v2715 = vand.u32 2147483647, %v2184
        %vm2716 = vcmp.le.f32.partialorder %v2715, 0.7853982
        %vm2717 = vcmp.lt.s32.totalorder %v2184, 0
        %v2718 = vand.u32 %v2184, 2139095040
        %v2719 = vshrl.u32 %v2718, 23
        %v2720 = vsub.s32 %v2719, 127
        %v2721 = vand.u32 2147483647, %v2184
        %v2722 = vand.u32 %v2721, 8388607
        %v2723 = vor.u32 %v2722, 8388608
        %v2724 = vsub.s32 0, %v2723
        %v2725 = vadd.s32 %v2720, 1
        %vm2726 = vcmp.gt.s32.totalorder %v2725, 0
        %v2727 = vsel %vm2726, %v2725, 0
        %v2728 = vshrl.u32 %v2727, 5
        %v2729 = vand.u32 %v2727, 31
        %v2730 = vsub.s32 32, %v2729
        %v2731 = vshrl.u32 683565275, %v2730
        %v2732 = vshll.u32 683565275, %v2729
        %v2733 = vshrl.u32 2475754826, %v2730
        %v2734 = vor.u32 %v2732, %v2733
        %v2735 = vshll.u32 2475754826, %v2729
        %v2736 = vshrl.u32 2131351028, %v2730
        %v2737 = vor.u32 %v2735, %v2736
        %v2738 = vshll.u32 2131351028, %v2729
        %v2739 = vshrl.u32 2102212464, %v2730
        %v2740 = vor.u32 %v2738, %v2739
        %v2741 = vshll.u32 2102212464, %v2729
        %v2742 = vshrl.u32 920167782, %v2730
        %v2743 = vor.u32 %v2741, %v2742
        %v2744 = vshll.u32 920167782, %v2729
        %v2745 = vshrl.u32 1326507024, %v2730
        %v2746 = vor.u32 %v2744, %v2745
        %vm2747 = vcmp.lt.s32.totalorder %v2728, 1
        %vm2748 = vcmp.lt.s32.totalorder %v2728, 2
        %vm2749 = vcmp.lt.s32.totalorder %v2728, 3
        %vm2750 = vcmp.lt.s32.totalorder %v2728, 4
        %v2751 = vsel %vm2747, %v2731, %v2734
        %v2752 = vsel %vm2750, %v2740, 2102212464
        %v2753 = vsel %vm2749, %v2737, %v2752
        %v2754 = vsel %vm2748, %v2751, %v2753
        %v2755 = vsel %vm2747, %v2734, %v2737
        %v2756 = vsel %vm2750, %v2743, 920167782
        %v2757 = vsel %vm2749, %v2740, %v2756
        %v2758 = vsel %vm2748, %v2755, %v2757
        %v2759 = vsel %vm2747, %v2737, %v2740
        %v2760 = vsel %vm2750, %v2746, 1326507024
        %v2761 = vsel %vm2749, %v2743, %v2760
        %v2762 = vsel %vm2748, %v2759, %v2761
        %v2763 = vshll.u32 %v2723, 8
        %v2764 = vmul.u32.u64.compose %v2763, %v2762
        %v2765 = vextract.low.u32 %v2764
        %v2766 = vextract.high.u32 %v2764
        %v2767 = vmul.u32.u64.compose %v2763, %v2758
        %v2768 = vextract.low.u32 %v2767
        %v2769 = vextract.high.u32 %v2767
        %v2770 = vmul.u32 %v2763, %v2754
        %v2771 = vadd.s32 %v2766, %v2768
        %vm2772 = vc.u32 %v2766, %v2768
        %v2773 = vadd.s32 %v2769, 1
        %v2774 = vsel %vm2772, %v2773, %v2769
        %v2775 = vadd.s32 %v2770, %v2774
        %v2776 = vadd.s32 %v2775, 536870912
        %v2777 = vshrl.u32 %v2776, 30
        %v2778 = vshll.u32 %v2777, 30
        %v2779 = vsub.s32 %v2775, %v2778
        %vm2780 = vcmp.lt.s32.totalorder %v2779, 0
        %v2781 = vsub.s32 0, %v2779
        %v2782 = vsel %vm2780, %v2781, %v2779
        %v2783 = vclz %v2782
        %v2784 = vsub.s32 %v2783, 2
        %vm2785 = vcmp.gt.s32.totalorder 0, %v2784
        %v2786 = vsel %vm2785, 0, %v2784
        %v2787 = vsub.s32 32, %v2786
        %v2788 = vshll.u32 %v2779, %v2786
        %v2789 = vshrl.u32 %v2771, %v2787
        %v2790 = vor.u32 %v2788, %v2789
        %v2791 = vsub.s32 4294967266, %v2786
        %v2792 = vadd.s32 %v2791, 127
        %v2793 = vshll.u32 %v2792, 23
        %v2794 = vor.u32 4788187, %v2793
        %v2795 = vand.u32 2147483647, %v2794
        %v2797 = vcvt.s32.f32 %v2790
        %v2798 = vmul.f32 %v2797, %v2795
        %v2799 = vxor.u32 %v2798, 2147483648
        %v2800 = vsel %vm2717, %v2799, %v2798
        %v2801 = vsub.s32 4, %v2777
        %v2802 = vsel %vm2717, %v2801, %v2777
        %v2803 = vsel %vm2716, %v2184, %v2800
        %v2804 = vsel %vm2716, 0, %v2802
        %v2805 = vcosq.f32.pop %v2803
        %v2806 = vsinq.f32.pop %v2803
        %vm2807 = vweird.f32 %v2184
        %v2808 = vadd.s32 %v2804, 3
        %v2809 = vand.u32 %v2808, 3
        %vm2810 = vcmp.lt.s32.totalorder %v2809, 2
        %vm2811 = vcmp.eq.s32.totalorder %v2809, 0
        %v2812 = vxor.u32 %v2806, 2147483648
        %v2813 = vsel %vm2811, %v2805, %v2812
        %vm2814 = vcmp.eq.s32.totalorder %v2809, 2
        %v2815 = vxor.u32 %v2805, 2147483648
        %v2816 = vsel %vm2814, %v2815, %v2806
        %v2817 = vsel %vm2810, %v2813, %v2816
        %v2818 = vsel %vm2807, nan, %v2817
        %v2819 = vand.u32 2147483647, %v2185
        %vm2820 = vcmp.le.f32.partialorder %v2819, 0.7853982
        %vm2821 = vcmp.lt.s32.totalorder %v2185, 0
        %v2822 = vand.u32 %v2185, 2139095040
        %v2823 = vshrl.u32 %v2822, 23
        %v2824 = vsub.s32 %v2823, 127
        %v2825 = vand.u32 2147483647, %v2185
        %v2826 = vand.u32 %v2825, 8388607
        %v2827 = vor.u32 %v2826, 8388608
        %v2828 = vsub.s32 0, %v2827
        %v2829 = vadd.s32 %v2824, 1
        %vm2830 = vcmp.gt.s32.totalorder %v2829, 0
        %v2831 = vsel %vm2830, %v2829, 0
        %v2832 = vshrl.u32 %v2831, 5
        %v2833 = vand.u32 %v2831, 31
        %v2834 = vsub.s32 32, %v2833
        %v2835 = vshrl.u32 683565275, %v2834
        %v2836 = vshll.u32 683565275, %v2833
        %v2837 = vshrl.u32 2475754826, %v2834
        %v2838 = vor.u32 %v2836, %v2837
        %v2839 = vshll.u32 2475754826, %v2833
        %v2840 = vshrl.u32 2131351028, %v2834
        %v2841 = vor.u32 %v2839, %v2840
        %v2842 = vshll.u32 2131351028, %v2833
        %v2843 = vshrl.u32 2102212464, %v2834
        %v2844 = vor.u32 %v2842, %v2843
        %v2845 = vshll.u32 2102212464, %v2833
        %v2846 = vshrl.u32 920167782, %v2834
        %v2847 = vor.u32 %v2845, %v2846
        %v2848 = vshll.u32 920167782, %v2833
        %v2849 = vshrl.u32 1326507024, %v2834
        %v2850 = vor.u32 %v2848, %v2849
        %vm2851 = vcmp.lt.s32.totalorder %v2832, 1
        %vm2852 = vcmp.lt.s32.totalorder %v2832, 2
        %vm2853 = vcmp.lt.s32.totalorder %v2832, 3
        %vm2854 = vcmp.lt.s32.totalorder %v2832, 4
        %v2855 = vsel %vm2851, %v2835, %v2838
        %v2856 = vsel %vm2854, %v2844, 2102212464
        %v2857 = vsel %vm2853, %v2841, %v2856
        %v2858 = vsel %vm2852, %v2855, %v2857
        %v2859 = vsel %vm2851, %v2838, %v2841
        %v2860 = vsel %vm2854, %v2847, 920167782
        %v2861 = vsel %vm2853, %v2844, %v2860
        %v2862 = vsel %vm2852, %v2859, %v2861
        %v2863 = vsel %vm2851, %v2841, %v2844
        %v2864 = vsel %vm2854, %v2850, 1326507024
        %v2865 = vsel %vm2853, %v2847, %v2864
        %v2866 = vsel %vm2852, %v2863, %v2865
        %v2867 = vshll.u32 %v2827, 8
        %v2868 = vmul.u32.u64.compose %v2867, %v2866
        %v2869 = vextract.low.u32 %v2868
        %v2870 = vextract.high.u32 %v2868
        %v2871 = vmul.u32.u64.compose %v2867, %v2862
        %v2872 = vextract.low.u32 %v2871
        %v2873 = vextract.high.u32 %v2871
        %v2874 = vmul.u32 %v2867, %v2858
        %v2875 = vadd.s32 %v2870, %v2872
        %vm2876 = vc.u32 %v2870, %v2872
        %v2877 = vadd.s32 %v2873, 1
        %v2878 = vsel %vm2876, %v2877, %v2873
        %v2879 = vadd.s32 %v2874, %v2878
        %v2880 = vadd.s32 %v2879, 536870912
        %v2881 = vshrl.u32 %v2880, 30
        %v2882 = vshll.u32 %v2881, 30
        %v2883 = vsub.s32 %v2879, %v2882
        %vm2884 = vcmp.lt.s32.totalorder %v2883, 0
        %v2885 = vsub.s32 0, %v2883
        %v2886 = vsel %vm2884, %v2885, %v2883
        %v2887 = vclz %v2886
        %v2888 = vsub.s32 %v2887, 2
        %vm2889 = vcmp.gt.s32.totalorder 0, %v2888
        %v2890 = vsel %vm2889, 0, %v2888
        %v2891 = vsub.s32 32, %v2890
        %v2892 = vshll.u32 %v2883, %v2890
        %v2893 = vshrl.u32 %v2875, %v2891
        %v2894 = vor.u32 %v2892, %v2893
        %v2895 = vsub.s32 4294967266, %v2890
        %v2896 = vadd.s32 %v2895, 127
        %v2897 = vshll.u32 %v2896, 23
        %v2898 = vor.u32 4788187, %v2897
        %v2899 = vand.u32 2147483647, %v2898
        %v2901 = vcvt.s32.f32 %v2894
        %v2902 = vmul.f32 %v2901, %v2899
        %v2903 = vxor.u32 %v2902, 2147483648
        %v2904 = vsel %vm2821, %v2903, %v2902
        %v2905 = vsub.s32 4, %v2881
        %v2906 = vsel %vm2821, %v2905, %v2881
        %v2907 = vsel %vm2820, %v2185, %v2904
        %v2908 = vsel %vm2820, 0, %v2906
        %v2909 = vcosq.f32.pop %v2907
        %v2910 = vsinq.f32.pop %v2907
        %vm2911 = vweird.f32 %v2185
        %v2912 = vadd.s32 %v2908, 3
        %v2913 = vand.u32 %v2912, 3
        %vm2914 = vcmp.lt.s32.totalorder %v2913, 2
        %vm2915 = vcmp.eq.s32.totalorder %v2913, 0
        %v2916 = vxor.u32 %v2910, 2147483648
        %v2917 = vsel %vm2915, %v2909, %v2916
        %vm2918 = vcmp.eq.s32.totalorder %v2913, 2
        %v2919 = vxor.u32 %v2909, 2147483648
        %v2920 = vsel %vm2918, %v2919, %v2910
        %v2921 = vsel %vm2914, %v2917, %v2920
        %v2922 = vsel %vm2911, nan, %v2921
        %v2923 = vand.u32 2147483647, %v2186
        %vm2924 = vcmp.le.f32.partialorder %v2923, 0.7853982
        %vm2925 = vcmp.lt.s32.totalorder %v2186, 0
        %v2926 = vand.u32 %v2186, 2139095040
        %v2927 = vshrl.u32 %v2926, 23
        %v2928 = vsub.s32 %v2927, 127
        %v2929 = vand.u32 2147483647, %v2186
        %v2930 = vand.u32 %v2929, 8388607
        %v2931 = vor.u32 %v2930, 8388608
        %v2932 = vsub.s32 0, %v2931
        %v2933 = vadd.s32 %v2928, 1
        %vm2934 = vcmp.gt.s32.totalorder %v2933, 0
        %v2935 = vsel %vm2934, %v2933, 0
        %v2936 = vshrl.u32 %v2935, 5
        %v2937 = vand.u32 %v2935, 31
        %v2938 = vsub.s32 32, %v2937
        %v2939 = vshrl.u32 683565275, %v2938
        %v2940 = vshll.u32 683565275, %v2937
        %v2941 = vshrl.u32 2475754826, %v2938
        %v2942 = vor.u32 %v2940, %v2941
        %v2943 = vshll.u32 2475754826, %v2937
        %v2944 = vshrl.u32 2131351028, %v2938
        %v2945 = vor.u32 %v2943, %v2944
        %v2946 = vshll.u32 2131351028, %v2937
        %v2947 = vshrl.u32 2102212464, %v2938
        %v2948 = vor.u32 %v2946, %v2947
        %v2949 = vshll.u32 2102212464, %v2937
        %v2950 = vshrl.u32 920167782, %v2938
        %v2951 = vor.u32 %v2949, %v2950
        %v2952 = vshll.u32 920167782, %v2937
        %v2953 = vshrl.u32 1326507024, %v2938
        %v2954 = vor.u32 %v2952, %v2953
        %vm2955 = vcmp.lt.s32.totalorder %v2936, 1
        %vm2956 = vcmp.lt.s32.totalorder %v2936, 2
        %vm2957 = vcmp.lt.s32.totalorder %v2936, 3
        %vm2958 = vcmp.lt.s32.totalorder %v2936, 4
        %v2959 = vsel %vm2955, %v2939, %v2942
        %v2960 = vsel %vm2958, %v2948, 2102212464
        %v2961 = vsel %vm2957, %v2945, %v2960
        %v2962 = vsel %vm2956, %v2959, %v2961
        %v2963 = vsel %vm2955, %v2942, %v2945
        %v2964 = vsel %vm2958, %v2951, 920167782
        %v2965 = vsel %vm2957, %v2948, %v2964
        %v2966 = vsel %vm2956, %v2963, %v2965
        %v2967 = vsel %vm2955, %v2945, %v2948
        %v2968 = vsel %vm2958, %v2954, 1326507024
        %v2969 = vsel %vm2957, %v2951, %v2968
        %v2970 = vsel %vm2956, %v2967, %v2969
        %v2971 = vshll.u32 %v2931, 8
        %v2972 = vmul.u32.u64.compose %v2971, %v2970
        %v2973 = vextract.low.u32 %v2972
        %v2974 = vextract.high.u32 %v2972
        %v2975 = vmul.u32.u64.compose %v2971, %v2966
        %v2976 = vextract.low.u32 %v2975
        %v2977 = vextract.high.u32 %v2975
        %v2978 = vmul.u32 %v2971, %v2962
        %v2979 = vadd.s32 %v2974, %v2976
        %vm2980 = vc.u32 %v2974, %v2976
        %v2981 = vadd.s32 %v2977, 1
        %v2982 = vsel %vm2980, %v2981, %v2977
        %v2983 = vadd.s32 %v2978, %v2982
        %v2984 = vadd.s32 %v2983, 536870912
        %v2985 = vshrl.u32 %v2984, 30
        %v2986 = vshll.u32 %v2985, 30
        %v2987 = vsub.s32 %v2983, %v2986
        %vm2988 = vcmp.lt.s32.totalorder %v2987, 0
        %v2989 = vsub.s32 0, %v2987
        %v2990 = vsel %vm2988, %v2989, %v2987
        %v2991 = vclz %v2990
        %v2992 = vsub.s32 %v2991, 2
        %vm2993 = vcmp.gt.s32.totalorder 0, %v2992
        %v2994 = vsel %vm2993, 0, %v2992
        %v2995 = vsub.s32 32, %v2994
        %v2996 = vshll.u32 %v2987, %v2994
        %v2997 = vshrl.u32 %v2979, %v2995
        %v2998 = vor.u32 %v2996, %v2997
        %v2999 = vsub.s32 4294967266, %v2994
        %v3000 = vadd.s32 %v2999, 127
        %v3001 = vshll.u32 %v3000, 23
        %v3002 = vor.u32 4788187, %v3001
        %v3003 = vand.u32 2147483647, %v3002
        %v3005 = vcvt.s32.f32 %v2998
        %v3006 = vmul.f32 %v3005, %v3003
        %v3007 = vxor.u32 %v3006, 2147483648
        %v3008 = vsel %vm2925, %v3007, %v3006
        %v3009 = vsub.s32 4, %v2985
        %v3010 = vsel %vm2925, %v3009, %v2985
        %v3011 = vsel %vm2924, %v2186, %v3008
        %v3012 = vsel %vm2924, 0, %v3010
        %v3013 = vcosq.f32.pop %v3011
        %v3014 = vsinq.f32.pop %v3011
        %vm3015 = vweird.f32 %v2186
        %v3016 = vadd.s32 %v3012, 3
        %v3017 = vand.u32 %v3016, 3
        %vm3018 = vcmp.lt.s32.totalorder %v3017, 2
        %vm3019 = vcmp.eq.s32.totalorder %v3017, 0
        %v3020 = vxor.u32 %v3014, 2147483648
        %v3021 = vsel %vm3019, %v3013, %v3020
        %vm3022 = vcmp.eq.s32.totalorder %v3017, 2
        %v3023 = vxor.u32 %v3013, 2147483648
        %v3024 = vsel %vm3022, %v3023, %v3014
        %v3025 = vsel %vm3018, %v3021, %v3024
        %v3026 = vsel %vm3015, nan, %v3025
        %v3027 = vand.u32 2147483647, %v2187
        %vm3028 = vcmp.le.f32.partialorder %v3027, 0.7853982
        %vm3029 = vcmp.lt.s32.totalorder %v2187, 0
        %v3030 = vand.u32 %v2187, 2139095040
        %v3031 = vshrl.u32 %v3030, 23
        %v3032 = vsub.s32 %v3031, 127
        %v3033 = vand.u32 2147483647, %v2187
        %v3034 = vand.u32 %v3033, 8388607
        %v3035 = vor.u32 %v3034, 8388608
        %v3036 = vsub.s32 0, %v3035
        %v3037 = vadd.s32 %v3032, 1
        %vm3038 = vcmp.gt.s32.totalorder %v3037, 0
        %v3039 = vsel %vm3038, %v3037, 0
        %v3040 = vshrl.u32 %v3039, 5
        %v3041 = vand.u32 %v3039, 31
        %v3042 = vsub.s32 32, %v3041
        %v3043 = vshrl.u32 683565275, %v3042
        %v3044 = vshll.u32 683565275, %v3041
        %v3045 = vshrl.u32 2475754826, %v3042
        %v3046 = vor.u32 %v3044, %v3045
        %v3047 = vshll.u32 2475754826, %v3041
        %v3048 = vshrl.u32 2131351028, %v3042
        %v3049 = vor.u32 %v3047, %v3048
        %v3050 = vshll.u32 2131351028, %v3041
        %v3051 = vshrl.u32 2102212464, %v3042
        %v3052 = vor.u32 %v3050, %v3051
        %v3053 = vshll.u32 2102212464, %v3041
        %v3054 = vshrl.u32 920167782, %v3042
        %v3055 = vor.u32 %v3053, %v3054
        %v3056 = vshll.u32 920167782, %v3041
        %v3057 = vshrl.u32 1326507024, %v3042
        %v3058 = vor.u32 %v3056, %v3057
        %vm3059 = vcmp.lt.s32.totalorder %v3040, 1
        %vm3060 = vcmp.lt.s32.totalorder %v3040, 2
        %vm3061 = vcmp.lt.s32.totalorder %v3040, 3
        %vm3062 = vcmp.lt.s32.totalorder %v3040, 4
        %v3063 = vsel %vm3059, %v3043, %v3046
        %v3064 = vsel %vm3062, %v3052, 2102212464
        %v3065 = vsel %vm3061, %v3049, %v3064
        %v3066 = vsel %vm3060, %v3063, %v3065
        %v3067 = vsel %vm3059, %v3046, %v3049
        %v3068 = vsel %vm3062, %v3055, 920167782
        %v3069 = vsel %vm3061, %v3052, %v3068
        %v3070 = vsel %vm3060, %v3067, %v3069
        %v3071 = vsel %vm3059, %v3049, %v3052
        %v3072 = vsel %vm3062, %v3058, 1326507024
        %v3073 = vsel %vm3061, %v3055, %v3072
        %v3074 = vsel %vm3060, %v3071, %v3073
        %v3075 = vshll.u32 %v3035, 8
        %v3076 = vmul.u32.u64.compose %v3075, %v3074
        %v3077 = vextract.low.u32 %v3076
        %v3078 = vextract.high.u32 %v3076
        %v3079 = vmul.u32.u64.compose %v3075, %v3070
        %v3080 = vextract.low.u32 %v3079
        %v3081 = vextract.high.u32 %v3079
        %v3082 = vmul.u32 %v3075, %v3066
        %v3083 = vadd.s32 %v3078, %v3080
        %vm3084 = vc.u32 %v3078, %v3080
        %v3085 = vadd.s32 %v3081, 1
        %v3086 = vsel %vm3084, %v3085, %v3081
        %v3087 = vadd.s32 %v3082, %v3086
        %v3088 = vadd.s32 %v3087, 536870912
        %v3089 = vshrl.u32 %v3088, 30
        %v3090 = vshll.u32 %v3089, 30
        %v3091 = vsub.s32 %v3087, %v3090
        %vm3092 = vcmp.lt.s32.totalorder %v3091, 0
        %v3093 = vsub.s32 0, %v3091
        %v3094 = vsel %vm3092, %v3093, %v3091
        %v3095 = vclz %v3094
        %v3096 = vsub.s32 %v3095, 2
        %vm3097 = vcmp.gt.s32.totalorder 0, %v3096
        %v3098 = vsel %vm3097, 0, %v3096
        %v3099 = vsub.s32 32, %v3098
        %v3100 = vshll.u32 %v3091, %v3098
        %v3101 = vshrl.u32 %v3083, %v3099
        %v3102 = vor.u32 %v3100, %v3101
        %v3103 = vsub.s32 4294967266, %v3098
        %v3104 = vadd.s32 %v3103, 127
        %v3105 = vshll.u32 %v3104, 23
        %v3106 = vor.u32 4788187, %v3105
        %v3107 = vand.u32 2147483647, %v3106
        %v3109 = vcvt.s32.f32 %v3102
        %v3110 = vmul.f32 %v3109, %v3107
        %v3111 = vxor.u32 %v3110, 2147483648
        %v3112 = vsel %vm3029, %v3111, %v3110
        %v3113 = vsub.s32 4, %v3089
        %v3114 = vsel %vm3029, %v3113, %v3089
        %v3115 = vsel %vm3028, %v2187, %v3112
        %v3116 = vsel %vm3028, 0, %v3114
        %v3117 = vcosq.f32.pop %v3115
        %v3118 = vsinq.f32.pop %v3115
        %vm3119 = vweird.f32 %v2187
        %v3120 = vadd.s32 %v3116, 3
        %v3121 = vand.u32 %v3120, 3
        %vm3122 = vcmp.lt.s32.totalorder %v3121, 2
        %vm3123 = vcmp.eq.s32.totalorder %v3121, 0
        %v3124 = vxor.u32 %v3118, 2147483648
        %v3125 = vsel %vm3123, %v3117, %v3124
        %vm3126 = vcmp.eq.s32.totalorder %v3121, 2
        %v3127 = vxor.u32 %v3117, 2147483648
        %v3128 = vsel %vm3126, %v3127, %v3118
        %v3129 = vsel %vm3122, %v3125, %v3128
        %v3130 = vsel %vm3119, nan, %v3129
        %v3131 = vand.u32 2147483647, %v2188
        %vm3132 = vcmp.le.f32.partialorder %v3131, 0.7853982
        %vm3133 = vcmp.lt.s32.totalorder %v2188, 0
        %v3134 = vand.u32 %v2188, 2139095040
        %v3135 = vshrl.u32 %v3134, 23
        %v3136 = vsub.s32 %v3135, 127
        %v3137 = vand.u32 2147483647, %v2188
        %v3138 = vand.u32 %v3137, 8388607
        %v3139 = vor.u32 %v3138, 8388608
        %v3140 = vsub.s32 0, %v3139
        %v3141 = vadd.s32 %v3136, 1
        %vm3142 = vcmp.gt.s32.totalorder %v3141, 0
        %v3143 = vsel %vm3142, %v3141, 0
        %v3144 = vshrl.u32 %v3143, 5
        %v3145 = vand.u32 %v3143, 31
        %v3146 = vsub.s32 32, %v3145
        %v3147 = vshrl.u32 683565275, %v3146
        %v3148 = vshll.u32 683565275, %v3145
        %v3149 = vshrl.u32 2475754826, %v3146
        %v3150 = vor.u32 %v3148, %v3149
        %v3151 = vshll.u32 2475754826, %v3145
        %v3152 = vshrl.u32 2131351028, %v3146
        %v3153 = vor.u32 %v3151, %v3152
        %v3154 = vshll.u32 2131351028, %v3145
        %v3155 = vshrl.u32 2102212464, %v3146
        %v3156 = vor.u32 %v3154, %v3155
        %v3157 = vshll.u32 2102212464, %v3145
        %v3158 = vshrl.u32 920167782, %v3146
        %v3159 = vor.u32 %v3157, %v3158
        %v3160 = vshll.u32 920167782, %v3145
        %v3161 = vshrl.u32 1326507024, %v3146
        %v3162 = vor.u32 %v3160, %v3161
        %vm3163 = vcmp.lt.s32.totalorder %v3144, 1
        %vm3164 = vcmp.lt.s32.totalorder %v3144, 2
        %vm3165 = vcmp.lt.s32.totalorder %v3144, 3
        %vm3166 = vcmp.lt.s32.totalorder %v3144, 4
        %v3167 = vsel %vm3163, %v3147, %v3150
        %v3168 = vsel %vm3166, %v3156, 2102212464
        %v3169 = vsel %vm3165, %v3153, %v3168
        %v3170 = vsel %vm3164, %v3167, %v3169
        %v3171 = vsel %vm3163, %v3150, %v3153
        %v3172 = vsel %vm3166, %v3159, 920167782
        %v3173 = vsel %vm3165, %v3156, %v3172
        %v3174 = vsel %vm3164, %v3171, %v3173
        %v3175 = vsel %vm3163, %v3153, %v3156
        %v3176 = vsel %vm3166, %v3162, 1326507024
        %v3177 = vsel %vm3165, %v3159, %v3176
        %v3178 = vsel %vm3164, %v3175, %v3177
        %v3179 = vshll.u32 %v3139, 8
        %v3180 = vmul.u32.u64.compose %v3179, %v3178
        %v3181 = vextract.low.u32 %v3180
        %v3182 = vextract.high.u32 %v3180
        %v3183 = vmul.u32.u64.compose %v3179, %v3174
        %v3184 = vextract.low.u32 %v3183
        %v3185 = vextract.high.u32 %v3183
        %v3186 = vmul.u32 %v3179, %v3170
        %v3187 = vadd.s32 %v3182, %v3184
        %vm3188 = vc.u32 %v3182, %v3184
        %v3189 = vadd.s32 %v3185, 1
        %v3190 = vsel %vm3188, %v3189, %v3185
        %v3191 = vadd.s32 %v3186, %v3190
        %v3192 = vadd.s32 %v3191, 536870912
        %v3193 = vshrl.u32 %v3192, 30
        %v3194 = vshll.u32 %v3193, 30
        %v3195 = vsub.s32 %v3191, %v3194
        %vm3196 = vcmp.lt.s32.totalorder %v3195, 0
        %v3197 = vsub.s32 0, %v3195
        %v3198 = vsel %vm3196, %v3197, %v3195
        %v3199 = vclz %v3198
        %v3200 = vsub.s32 %v3199, 2
        %vm3201 = vcmp.gt.s32.totalorder 0, %v3200
        %v3202 = vsel %vm3201, 0, %v3200
        %v3203 = vsub.s32 32, %v3202
        %v3204 = vshll.u32 %v3195, %v3202
        %v3205 = vshrl.u32 %v3187, %v3203
        %v3206 = vor.u32 %v3204, %v3205
        %v3207 = vsub.s32 4294967266, %v3202
        %v3208 = vadd.s32 %v3207, 127
        %v3209 = vshll.u32 %v3208, 23
        %v3210 = vor.u32 4788187, %v3209
        %v3211 = vand.u32 2147483647, %v3210
        %v3213 = vcvt.s32.f32 %v3206
        %v3214 = vmul.f32 %v3213, %v3211
        %v3215 = vxor.u32 %v3214, 2147483648
        %v3216 = vsel %vm3133, %v3215, %v3214
        %v3217 = vsub.s32 4, %v3193
        %v3218 = vsel %vm3133, %v3217, %v3193
        %v3219 = vsel %vm3132, %v2188, %v3216
        %v3220 = vsel %vm3132, 0, %v3218
        %v3221 = vcosq.f32.pop %v3219
        %v3222 = vsinq.f32.pop %v3219
        %vm3223 = vweird.f32 %v2188
        %v3224 = vadd.s32 %v3220, 3
        %v3225 = vand.u32 %v3224, 3
        %vm3226 = vcmp.lt.s32.totalorder %v3225, 2
        %vm3227 = vcmp.eq.s32.totalorder %v3225, 0
        %v3228 = vxor.u32 %v3222, 2147483648
        %v3229 = vsel %vm3227, %v3221, %v3228
        %vm3230 = vcmp.eq.s32.totalorder %v3225, 2
        %v3231 = vxor.u32 %v3221, 2147483648
        %v3232 = vsel %vm3230, %v3231, %v3222
        %v3233 = vsel %vm3226, %v3229, %v3232
        %v3234 = vsel %vm3223, nan, %v3233
        %v3235 = vand.u32 2147483647, %v2189
        %vm3236 = vcmp.le.f32.partialorder %v3235, 0.7853982
        %vm3237 = vcmp.lt.s32.totalorder %v2189, 0
        %v3238 = vand.u32 %v2189, 2139095040
        %v3239 = vshrl.u32 %v3238, 23
        %v3240 = vsub.s32 %v3239, 127
        %v3241 = vand.u32 2147483647, %v2189
        %v3242 = vand.u32 %v3241, 8388607
        %v3243 = vor.u32 %v3242, 8388608
        %v3244 = vsub.s32 0, %v3243
        %v3245 = vadd.s32 %v3240, 1
        %vm3246 = vcmp.gt.s32.totalorder %v3245, 0
        %v3247 = vsel %vm3246, %v3245, 0
        %v3248 = vshrl.u32 %v3247, 5
        %v3249 = vand.u32 %v3247, 31
        %v3250 = vsub.s32 32, %v3249
        %v3251 = vshrl.u32 683565275, %v3250
        %v3252 = vshll.u32 683565275, %v3249
        %v3253 = vshrl.u32 2475754826, %v3250
        %v3254 = vor.u32 %v3252, %v3253
        %v3255 = vshll.u32 2475754826, %v3249
        %v3256 = vshrl.u32 2131351028, %v3250
        %v3257 = vor.u32 %v3255, %v3256
        %v3258 = vshll.u32 2131351028, %v3249
        %v3259 = vshrl.u32 2102212464, %v3250
        %v3260 = vor.u32 %v3258, %v3259
        %v3261 = vshll.u32 2102212464, %v3249
        %v3262 = vshrl.u32 920167782, %v3250
        %v3263 = vor.u32 %v3261, %v3262
        %v3264 = vshll.u32 920167782, %v3249
        %v3265 = vshrl.u32 1326507024, %v3250
        %v3266 = vor.u32 %v3264, %v3265
        %vm3267 = vcmp.lt.s32.totalorder %v3248, 1
        %vm3268 = vcmp.lt.s32.totalorder %v3248, 2
        %vm3269 = vcmp.lt.s32.totalorder %v3248, 3
        %vm3270 = vcmp.lt.s32.totalorder %v3248, 4
        %v3271 = vsel %vm3267, %v3251, %v3254
        %v3272 = vsel %vm3270, %v3260, 2102212464
        %v3273 = vsel %vm3269, %v3257, %v3272
        %v3274 = vsel %vm3268, %v3271, %v3273
        %v3275 = vsel %vm3267, %v3254, %v3257
        %v3276 = vsel %vm3270, %v3263, 920167782
        %v3277 = vsel %vm3269, %v3260, %v3276
        %v3278 = vsel %vm3268, %v3275, %v3277
        %v3279 = vsel %vm3267, %v3257, %v3260
        %v3280 = vsel %vm3270, %v3266, 1326507024
        %v3281 = vsel %vm3269, %v3263, %v3280
        %v3282 = vsel %vm3268, %v3279, %v3281
        %v3283 = vshll.u32 %v3243, 8
        %v3284 = vmul.u32.u64.compose %v3283, %v3282
        %v3285 = vextract.low.u32 %v3284
        %v3286 = vextract.high.u32 %v3284
        %v3287 = vmul.u32.u64.compose %v3283, %v3278
        %v3288 = vextract.low.u32 %v3287
        %v3289 = vextract.high.u32 %v3287
        %v3290 = vmul.u32 %v3283, %v3274
        %v3291 = vadd.s32 %v3286, %v3288
        %vm3292 = vc.u32 %v3286, %v3288
        %v3293 = vadd.s32 %v3289, 1
        %v3294 = vsel %vm3292, %v3293, %v3289
        %v3295 = vadd.s32 %v3290, %v3294
        %v3296 = vadd.s32 %v3295, 536870912
        %v3297 = vshrl.u32 %v3296, 30
        %v3298 = vshll.u32 %v3297, 30
        %v3299 = vsub.s32 %v3295, %v3298
        %vm3300 = vcmp.lt.s32.totalorder %v3299, 0
        %v3301 = vsub.s32 0, %v3299
        %v3302 = vsel %vm3300, %v3301, %v3299
        %v3303 = vclz %v3302
        %v3304 = vsub.s32 %v3303, 2
        %vm3305 = vcmp.gt.s32.totalorder 0, %v3304
        %v3306 = vsel %vm3305, 0, %v3304
        %v3307 = vsub.s32 32, %v3306
        %v3308 = vshll.u32 %v3299, %v3306
        %v3309 = vshrl.u32 %v3291, %v3307
        %v3310 = vor.u32 %v3308, %v3309
        %v3311 = vsub.s32 4294967266, %v3306
        %v3312 = vadd.s32 %v3311, 127
        %v3313 = vshll.u32 %v3312, 23
        %v3314 = vor.u32 4788187, %v3313
        %v3315 = vand.u32 2147483647, %v3314
        %v3317 = vcvt.s32.f32 %v3310
        %v3318 = vmul.f32 %v3317, %v3315
        %v3319 = vxor.u32 %v3318, 2147483648
        %v3320 = vsel %vm3237, %v3319, %v3318
        %v3321 = vsub.s32 4, %v3297
        %v3322 = vsel %vm3237, %v3321, %v3297
        %v3323 = vsel %vm3236, %v2189, %v3320
        %v3324 = vsel %vm3236, 0, %v3322
        %v3325 = vcosq.f32.pop %v3323
        %v3326 = vsinq.f32.pop %v3323
        %vm3327 = vweird.f32 %v2189
        %v3328 = vadd.s32 %v3324, 3
        %v3329 = vand.u32 %v3328, 3
        %vm3330 = vcmp.lt.s32.totalorder %v3329, 2
        %vm3331 = vcmp.eq.s32.totalorder %v3329, 0
        %v3332 = vxor.u32 %v3326, 2147483648
        %v3333 = vsel %vm3331, %v3325, %v3332
        %vm3334 = vcmp.eq.s32.totalorder %v3329, 2
        %v3335 = vxor.u32 %v3325, 2147483648
        %v3336 = vsel %vm3334, %v3335, %v3326
        %v3337 = vsel %vm3330, %v3333, %v3336
        %v3338 = vsel %vm3327, nan, %v3337
        %v3339 = vand.u32 2147483647, %v2190
        %vm3340 = vcmp.le.f32.partialorder %v3339, 0.7853982
        %vm3341 = vcmp.lt.s32.totalorder %v2190, 0
        %v3342 = vand.u32 %v2190, 2139095040
        %v3343 = vshrl.u32 %v3342, 23
        %v3344 = vsub.s32 %v3343, 127
        %v3345 = vand.u32 2147483647, %v2190
        %v3346 = vand.u32 %v3345, 8388607
        %v3347 = vor.u32 %v3346, 8388608
        %v3348 = vsub.s32 0, %v3347
        %v3349 = vadd.s32 %v3344, 1
        %vm3350 = vcmp.gt.s32.totalorder %v3349, 0
        %v3351 = vsel %vm3350, %v3349, 0
        %v3352 = vshrl.u32 %v3351, 5
        %v3353 = vand.u32 %v3351, 31
        %v3354 = vsub.s32 32, %v3353
        %v3355 = vshrl.u32 683565275, %v3354
        %v3356 = vshll.u32 683565275, %v3353
        %v3357 = vshrl.u32 2475754826, %v3354
        %v3358 = vor.u32 %v3356, %v3357
        %v3359 = vshll.u32 2475754826, %v3353
        %v3360 = vshrl.u32 2131351028, %v3354
        %v3361 = vor.u32 %v3359, %v3360
        %v3362 = vshll.u32 2131351028, %v3353
        %v3363 = vshrl.u32 2102212464, %v3354
        %v3364 = vor.u32 %v3362, %v3363
        %v3365 = vshll.u32 2102212464, %v3353
        %v3366 = vshrl.u32 920167782, %v3354
        %v3367 = vor.u32 %v3365, %v3366
        %v3368 = vshll.u32 920167782, %v3353
        %v3369 = vshrl.u32 1326507024, %v3354
        %v3370 = vor.u32 %v3368, %v3369
        %vm3371 = vcmp.lt.s32.totalorder %v3352, 1
        %vm3372 = vcmp.lt.s32.totalorder %v3352, 2
        %vm3373 = vcmp.lt.s32.totalorder %v3352, 3
        %vm3374 = vcmp.lt.s32.totalorder %v3352, 4
        %v3375 = vsel %vm3371, %v3355, %v3358
        %v3376 = vsel %vm3374, %v3364, 2102212464
        %v3377 = vsel %vm3373, %v3361, %v3376
        %v3378 = vsel %vm3372, %v3375, %v3377
        %v3379 = vsel %vm3371, %v3358, %v3361
        %v3380 = vsel %vm3374, %v3367, 920167782
        %v3381 = vsel %vm3373, %v3364, %v3380
        %v3382 = vsel %vm3372, %v3379, %v3381
        %v3383 = vsel %vm3371, %v3361, %v3364
        %v3384 = vsel %vm3374, %v3370, 1326507024
        %v3385 = vsel %vm3373, %v3367, %v3384
        %v3386 = vsel %vm3372, %v3383, %v3385
        %v3387 = vshll.u32 %v3347, 8
        %v3388 = vmul.u32.u64.compose %v3387, %v3386
        %v3389 = vextract.low.u32 %v3388
        %v3390 = vextract.high.u32 %v3388
        %v3391 = vmul.u32.u64.compose %v3387, %v3382
        %v3392 = vextract.low.u32 %v3391
        %v3393 = vextract.high.u32 %v3391
        %v3394 = vmul.u32 %v3387, %v3378
        %v3395 = vadd.s32 %v3390, %v3392
        %vm3396 = vc.u32 %v3390, %v3392
        %v3397 = vadd.s32 %v3393, 1
        %v3398 = vsel %vm3396, %v3397, %v3393
        %v3399 = vadd.s32 %v3394, %v3398
        %v3400 = vadd.s32 %v3399, 536870912
        %v3401 = vshrl.u32 %v3400, 30
        %v3402 = vshll.u32 %v3401, 30
        %v3403 = vsub.s32 %v3399, %v3402
        %vm3404 = vcmp.lt.s32.totalorder %v3403, 0
        %v3405 = vsub.s32 0, %v3403
        %v3406 = vsel %vm3404, %v3405, %v3403
        %v3407 = vclz %v3406
        %v3408 = vsub.s32 %v3407, 2
        %vm3409 = vcmp.gt.s32.totalorder 0, %v3408
        %v3410 = vsel %vm3409, 0, %v3408
        %v3411 = vsub.s32 32, %v3410
        %v3412 = vshll.u32 %v3403, %v3410
        %v3413 = vshrl.u32 %v3395, %v3411
        %v3414 = vor.u32 %v3412, %v3413
        %v3415 = vsub.s32 4294967266, %v3410
        %v3416 = vadd.s32 %v3415, 127
        %v3417 = vshll.u32 %v3416, 23
        %v3418 = vor.u32 4788187, %v3417
        %v3419 = vand.u32 2147483647, %v3418
        %v3421 = vcvt.s32.f32 %v3414
        %v3422 = vmul.f32 %v3421, %v3419
        %v3423 = vxor.u32 %v3422, 2147483648
        %v3424 = vsel %vm3341, %v3423, %v3422
        %v3425 = vsub.s32 4, %v3401
        %v3426 = vsel %vm3341, %v3425, %v3401
        %v3427 = vsel %vm3340, %v2190, %v3424
        %v3428 = vsel %vm3340, 0, %v3426
        %v3429 = vcosq.f32.pop %v3427
        %v3430 = vsinq.f32.pop %v3427
        %vm3431 = vweird.f32 %v2190
        %v3432 = vadd.s32 %v3428, 3
        %v3433 = vand.u32 %v3432, 3
        %vm3434 = vcmp.lt.s32.totalorder %v3433, 2
        %vm3435 = vcmp.eq.s32.totalorder %v3433, 0
        %v3436 = vxor.u32 %v3430, 2147483648
        %v3437 = vsel %vm3435, %v3429, %v3436
        %vm3438 = vcmp.eq.s32.totalorder %v3433, 2
        %v3439 = vxor.u32 %v3429, 2147483648
        %v3440 = vsel %vm3438, %v3439, %v3430
        %v3441 = vsel %vm3434, %v3437, %v3440
        %v3442 = vsel %vm3431, nan, %v3441
        %v3443 = vand.u32 2147483647, %v2191
        %vm3444 = vcmp.le.f32.partialorder %v3443, 0.7853982
        %vm3445 = vcmp.lt.s32.totalorder %v2191, 0
        %v3446 = vand.u32 %v2191, 2139095040
        %v3447 = vshrl.u32 %v3446, 23
        %v3448 = vsub.s32 %v3447, 127
        %v3449 = vand.u32 2147483647, %v2191
        %v3450 = vand.u32 %v3449, 8388607
        %v3451 = vor.u32 %v3450, 8388608
        %v3452 = vsub.s32 0, %v3451
        %v3453 = vadd.s32 %v3448, 1
        %vm3454 = vcmp.gt.s32.totalorder %v3453, 0
        %v3455 = vsel %vm3454, %v3453, 0
        %v3456 = vshrl.u32 %v3455, 5
        %v3457 = vand.u32 %v3455, 31
        %v3458 = vsub.s32 32, %v3457
        %v3459 = vshrl.u32 683565275, %v3458
        %v3460 = vshll.u32 683565275, %v3457
        %v3461 = vshrl.u32 2475754826, %v3458
        %v3462 = vor.u32 %v3460, %v3461
        %v3463 = vshll.u32 2475754826, %v3457
        %v3464 = vshrl.u32 2131351028, %v3458
        %v3465 = vor.u32 %v3463, %v3464
        %v3466 = vshll.u32 2131351028, %v3457
        %v3467 = vshrl.u32 2102212464, %v3458
        %v3468 = vor.u32 %v3466, %v3467
        %v3469 = vshll.u32 2102212464, %v3457
        %v3470 = vshrl.u32 920167782, %v3458
        %v3471 = vor.u32 %v3469, %v3470
        %v3472 = vshll.u32 920167782, %v3457
        %v3473 = vshrl.u32 1326507024, %v3458
        %v3474 = vor.u32 %v3472, %v3473
        %vm3475 = vcmp.lt.s32.totalorder %v3456, 1
        %vm3476 = vcmp.lt.s32.totalorder %v3456, 2
        %vm3477 = vcmp.lt.s32.totalorder %v3456, 3
        %vm3478 = vcmp.lt.s32.totalorder %v3456, 4
        %v3479 = vsel %vm3475, %v3459, %v3462
        %v3480 = vsel %vm3478, %v3468, 2102212464
        %v3481 = vsel %vm3477, %v3465, %v3480
        %v3482 = vsel %vm3476, %v3479, %v3481
        %v3483 = vsel %vm3475, %v3462, %v3465
        %v3484 = vsel %vm3478, %v3471, 920167782
        %v3485 = vsel %vm3477, %v3468, %v3484
        %v3486 = vsel %vm3476, %v3483, %v3485
        %v3487 = vsel %vm3475, %v3465, %v3468
        %v3488 = vsel %vm3478, %v3474, 1326507024
        %v3489 = vsel %vm3477, %v3471, %v3488
        %v3490 = vsel %vm3476, %v3487, %v3489
        %v3491 = vshll.u32 %v3451, 8
        %v3492 = vmul.u32.u64.compose %v3491, %v3490
        %v3493 = vextract.low.u32 %v3492
        %v3494 = vextract.high.u32 %v3492
        %v3495 = vmul.u32.u64.compose %v3491, %v3486
        %v3496 = vextract.low.u32 %v3495
        %v3497 = vextract.high.u32 %v3495
        %v3498 = vmul.u32 %v3491, %v3482
        %v3499 = vadd.s32 %v3494, %v3496
        %vm3500 = vc.u32 %v3494, %v3496
        %v3501 = vadd.s32 %v3497, 1
        %v3502 = vsel %vm3500, %v3501, %v3497
        %v3503 = vadd.s32 %v3498, %v3502
        %v3504 = vadd.s32 %v3503, 536870912
        %v3505 = vshrl.u32 %v3504, 30
        %v3506 = vshll.u32 %v3505, 30
        %v3507 = vsub.s32 %v3503, %v3506
        %vm3508 = vcmp.lt.s32.totalorder %v3507, 0
        %v3509 = vsub.s32 0, %v3507
        %v3510 = vsel %vm3508, %v3509, %v3507
        %v3511 = vclz %v3510
        %v3512 = vsub.s32 %v3511, 2
        %vm3513 = vcmp.gt.s32.totalorder 0, %v3512
        %v3514 = vsel %vm3513, 0, %v3512
        %v3515 = vsub.s32 32, %v3514
        %v3516 = vshll.u32 %v3507, %v3514
        %v3517 = vshrl.u32 %v3499, %v3515
        %v3518 = vor.u32 %v3516, %v3517
        %v3519 = vsub.s32 4294967266, %v3514
        %v3520 = vadd.s32 %v3519, 127
        %v3521 = vshll.u32 %v3520, 23
        %v3522 = vor.u32 4788187, %v3521
        %v3523 = vand.u32 2147483647, %v3522
        %v3525 = vcvt.s32.f32 %v3518
        %v3526 = vmul.f32 %v3525, %v3523
        %v3527 = vxor.u32 %v3526, 2147483648
        %v3528 = vsel %vm3445, %v3527, %v3526
        %v3529 = vsub.s32 4, %v3505
        %v3530 = vsel %vm3445, %v3529, %v3505
        %v3531 = vsel %vm3444, %v2191, %v3528
        %v3532 = vsel %vm3444, 0, %v3530
        %v3533 = vcosq.f32.pop %v3531
        %v3534 = vsinq.f32.pop %v3531
        %vm3535 = vweird.f32 %v2191
        %v3536 = vadd.s32 %v3532, 3
        %v3537 = vand.u32 %v3536, 3
        %vm3538 = vcmp.lt.s32.totalorder %v3537, 2
        %vm3539 = vcmp.eq.s32.totalorder %v3537, 0
        %v3540 = vxor.u32 %v3534, 2147483648
        %v3541 = vsel %vm3539, %v3533, %v3540
        %vm3542 = vcmp.eq.s32.totalorder %v3537, 2
        %v3543 = vxor.u32 %v3533, 2147483648
        %v3544 = vsel %vm3542, %v3543, %v3534
        %v3545 = vsel %vm3538, %v3541, %v3544
        %v3546 = vsel %vm3535, nan, %v3545
        %v3547 = vand.u32 2147483647, %v2192
        %vm3548 = vcmp.le.f32.partialorder %v3547, 0.7853982
        %vm3549 = vcmp.lt.s32.totalorder %v2192, 0
        %v3550 = vand.u32 %v2192, 2139095040
        %v3551 = vshrl.u32 %v3550, 23
        %v3552 = vsub.s32 %v3551, 127
        %v3553 = vand.u32 2147483647, %v2192
        %v3554 = vand.u32 %v3553, 8388607
        %v3555 = vor.u32 %v3554, 8388608
        %v3556 = vsub.s32 0, %v3555
        %v3557 = vadd.s32 %v3552, 1
        %vm3558 = vcmp.gt.s32.totalorder %v3557, 0
        %v3559 = vsel %vm3558, %v3557, 0
        %v3560 = vshrl.u32 %v3559, 5
        %v3561 = vand.u32 %v3559, 31
        %v3562 = vsub.s32 32, %v3561
        %v3563 = vshrl.u32 683565275, %v3562
        %v3564 = vshll.u32 683565275, %v3561
        %v3565 = vshrl.u32 2475754826, %v3562
        %v3566 = vor.u32 %v3564, %v3565
        %v3567 = vshll.u32 2475754826, %v3561
        %v3568 = vshrl.u32 2131351028, %v3562
        %v3569 = vor.u32 %v3567, %v3568
        %v3570 = vshll.u32 2131351028, %v3561
        %v3571 = vshrl.u32 2102212464, %v3562
        %v3572 = vor.u32 %v3570, %v3571
        %v3573 = vshll.u32 2102212464, %v3561
        %v3574 = vshrl.u32 920167782, %v3562
        %v3575 = vor.u32 %v3573, %v3574
        %v3576 = vshll.u32 920167782, %v3561
        %v3577 = vshrl.u32 1326507024, %v3562
        %v3578 = vor.u32 %v3576, %v3577
        %vm3579 = vcmp.lt.s32.totalorder %v3560, 1
        %vm3580 = vcmp.lt.s32.totalorder %v3560, 2
        %vm3581 = vcmp.lt.s32.totalorder %v3560, 3
        %vm3582 = vcmp.lt.s32.totalorder %v3560, 4
        %v3583 = vsel %vm3579, %v3563, %v3566
        %v3584 = vsel %vm3582, %v3572, 2102212464
        %v3585 = vsel %vm3581, %v3569, %v3584
        %v3586 = vsel %vm3580, %v3583, %v3585
        %v3587 = vsel %vm3579, %v3566, %v3569
        %v3588 = vsel %vm3582, %v3575, 920167782
        %v3589 = vsel %vm3581, %v3572, %v3588
        %v3590 = vsel %vm3580, %v3587, %v3589
        %v3591 = vsel %vm3579, %v3569, %v3572
        %v3592 = vsel %vm3582, %v3578, 1326507024
        %v3593 = vsel %vm3581, %v3575, %v3592
        %v3594 = vsel %vm3580, %v3591, %v3593
        %v3595 = vshll.u32 %v3555, 8
        %v3596 = vmul.u32.u64.compose %v3595, %v3594
        %v3597 = vextract.low.u32 %v3596
        %v3598 = vextract.high.u32 %v3596
        %v3599 = vmul.u32.u64.compose %v3595, %v3590
        %v3600 = vextract.low.u32 %v3599
        %v3601 = vextract.high.u32 %v3599
        %v3602 = vmul.u32 %v3595, %v3586
        %v3603 = vadd.s32 %v3598, %v3600
        %vm3604 = vc.u32 %v3598, %v3600
        %v3605 = vadd.s32 %v3601, 1
        %v3606 = vsel %vm3604, %v3605, %v3601
        %v3607 = vadd.s32 %v3602, %v3606
        %v3608 = vadd.s32 %v3607, 536870912
        %v3609 = vshrl.u32 %v3608, 30
        %v3610 = vshll.u32 %v3609, 30
        %v3611 = vsub.s32 %v3607, %v3610
        %vm3612 = vcmp.lt.s32.totalorder %v3611, 0
        %v3613 = vsub.s32 0, %v3611
        %v3614 = vsel %vm3612, %v3613, %v3611
        %v3615 = vclz %v3614
        %v3616 = vsub.s32 %v3615, 2
        %vm3617 = vcmp.gt.s32.totalorder 0, %v3616
        %v3618 = vsel %vm3617, 0, %v3616
        %v3619 = vsub.s32 32, %v3618
        %v3620 = vshll.u32 %v3611, %v3618
        %v3621 = vshrl.u32 %v3603, %v3619
        %v3622 = vor.u32 %v3620, %v3621
        %v3623 = vsub.s32 4294967266, %v3618
        %v3624 = vadd.s32 %v3623, 127
        %v3625 = vshll.u32 %v3624, 23
        %v3626 = vor.u32 4788187, %v3625
        %v3627 = vand.u32 2147483647, %v3626
        %v3629 = vcvt.s32.f32 %v3622
        %v3630 = vmul.f32 %v3629, %v3627
        %v3631 = vxor.u32 %v3630, 2147483648
        %v3632 = vsel %vm3549, %v3631, %v3630
        %v3633 = vsub.s32 4, %v3609
        %v3634 = vsel %vm3549, %v3633, %v3609
        %v3635 = vsel %vm3548, %v2192, %v3632
        %v3636 = vsel %vm3548, 0, %v3634
        %v3637 = vcosq.f32.pop %v3635
        %v3638 = vsinq.f32.pop %v3635
        %vm3639 = vweird.f32 %v2192
        %v3640 = vadd.s32 %v3636, 3
        %v3641 = vand.u32 %v3640, 3
        %vm3642 = vcmp.lt.s32.totalorder %v3641, 2
        %vm3643 = vcmp.eq.s32.totalorder %v3641, 0
        %v3644 = vxor.u32 %v3638, 2147483648
        %v3645 = vsel %vm3643, %v3637, %v3644
        %vm3646 = vcmp.eq.s32.totalorder %v3641, 2
        %v3647 = vxor.u32 %v3637, 2147483648
        %v3648 = vsel %vm3646, %v3647, %v3638
        %v3649 = vsel %vm3642, %v3645, %v3648
        %v3650 = vsel %vm3639, nan, %v3649
        %v3651 = vand.u32 2147483647, %v2193
        %vm3652 = vcmp.le.f32.partialorder %v3651, 0.7853982
        %vm3653 = vcmp.lt.s32.totalorder %v2193, 0
        %v3654 = vand.u32 %v2193, 2139095040
        %v3655 = vshrl.u32 %v3654, 23
        %v3656 = vsub.s32 %v3655, 127
        %v3657 = vand.u32 2147483647, %v2193
        %v3658 = vand.u32 %v3657, 8388607
        %v3659 = vor.u32 %v3658, 8388608
        %v3660 = vsub.s32 0, %v3659
        %v3661 = vadd.s32 %v3656, 1
        %vm3662 = vcmp.gt.s32.totalorder %v3661, 0
        %v3663 = vsel %vm3662, %v3661, 0
        %v3664 = vshrl.u32 %v3663, 5
        %v3665 = vand.u32 %v3663, 31
        %v3666 = vsub.s32 32, %v3665
        %v3667 = vshrl.u32 683565275, %v3666
        %v3668 = vshll.u32 683565275, %v3665
        %v3669 = vshrl.u32 2475754826, %v3666
        %v3670 = vor.u32 %v3668, %v3669
        %v3671 = vshll.u32 2475754826, %v3665
        %v3672 = vshrl.u32 2131351028, %v3666
        %v3673 = vor.u32 %v3671, %v3672
        %v3674 = vshll.u32 2131351028, %v3665
        %v3675 = vshrl.u32 2102212464, %v3666
        %v3676 = vor.u32 %v3674, %v3675
        %v3677 = vshll.u32 2102212464, %v3665
        %v3678 = vshrl.u32 920167782, %v3666
        %v3679 = vor.u32 %v3677, %v3678
        %v3680 = vshll.u32 920167782, %v3665
        %v3681 = vshrl.u32 1326507024, %v3666
        %v3682 = vor.u32 %v3680, %v3681
        %vm3683 = vcmp.lt.s32.totalorder %v3664, 1
        %vm3684 = vcmp.lt.s32.totalorder %v3664, 2
        %vm3685 = vcmp.lt.s32.totalorder %v3664, 3
        %vm3686 = vcmp.lt.s32.totalorder %v3664, 4
        %v3687 = vsel %vm3683, %v3667, %v3670
        %v3688 = vsel %vm3686, %v3676, 2102212464
        %v3689 = vsel %vm3685, %v3673, %v3688
        %v3690 = vsel %vm3684, %v3687, %v3689
        %v3691 = vsel %vm3683, %v3670, %v3673
        %v3692 = vsel %vm3686, %v3679, 920167782
        %v3693 = vsel %vm3685, %v3676, %v3692
        %v3694 = vsel %vm3684, %v3691, %v3693
        %v3695 = vsel %vm3683, %v3673, %v3676
        %v3696 = vsel %vm3686, %v3682, 1326507024
        %v3697 = vsel %vm3685, %v3679, %v3696
        %v3698 = vsel %vm3684, %v3695, %v3697
        %v3699 = vshll.u32 %v3659, 8
        %v3700 = vmul.u32.u64.compose %v3699, %v3698
        %v3701 = vextract.low.u32 %v3700
        %v3702 = vextract.high.u32 %v3700
        %v3703 = vmul.u32.u64.compose %v3699, %v3694
        %v3704 = vextract.low.u32 %v3703
        %v3705 = vextract.high.u32 %v3703
        %v3706 = vmul.u32 %v3699, %v3690
        %v3707 = vadd.s32 %v3702, %v3704
        %vm3708 = vc.u32 %v3702, %v3704
        %v3709 = vadd.s32 %v3705, 1
        %v3710 = vsel %vm3708, %v3709, %v3705
        %v3711 = vadd.s32 %v3706, %v3710
        %v3712 = vadd.s32 %v3711, 536870912
        %v3713 = vshrl.u32 %v3712, 30
        %v3714 = vshll.u32 %v3713, 30
        %v3715 = vsub.s32 %v3711, %v3714
        %vm3716 = vcmp.lt.s32.totalorder %v3715, 0
        %v3717 = vsub.s32 0, %v3715
        %v3718 = vsel %vm3716, %v3717, %v3715
        %v3719 = vclz %v3718
        %v3720 = vsub.s32 %v3719, 2
        %vm3721 = vcmp.gt.s32.totalorder 0, %v3720
        %v3722 = vsel %vm3721, 0, %v3720
        %v3723 = vsub.s32 32, %v3722
        %v3724 = vshll.u32 %v3715, %v3722
        %v3725 = vshrl.u32 %v3707, %v3723
        %v3726 = vor.u32 %v3724, %v3725
        %v3727 = vsub.s32 4294967266, %v3722
        %v3728 = vadd.s32 %v3727, 127
        %v3729 = vshll.u32 %v3728, 23
        %v3730 = vor.u32 4788187, %v3729
        %v3731 = vand.u32 2147483647, %v3730
        %v3733 = vcvt.s32.f32 %v3726
        %v3734 = vmul.f32 %v3733, %v3731
        %v3735 = vxor.u32 %v3734, 2147483648
        %v3736 = vsel %vm3653, %v3735, %v3734
        %v3737 = vsub.s32 4, %v3713
        %v3738 = vsel %vm3653, %v3737, %v3713
        %v3739 = vsel %vm3652, %v2193, %v3736
        %v3740 = vsel %vm3652, 0, %v3738
        %v3741 = vcosq.f32.pop %v3739
        %v3742 = vsinq.f32.pop %v3739
        %vm3743 = vweird.f32 %v2193
        %v3744 = vadd.s32 %v3740, 3
        %v3745 = vand.u32 %v3744, 3
        %vm3746 = vcmp.lt.s32.totalorder %v3745, 2
        %vm3747 = vcmp.eq.s32.totalorder %v3745, 0
        %v3748 = vxor.u32 %v3742, 2147483648
        %v3749 = vsel %vm3747, %v3741, %v3748
        %vm3750 = vcmp.eq.s32.totalorder %v3745, 2
        %v3751 = vxor.u32 %v3741, 2147483648
        %v3752 = vsel %vm3750, %v3751, %v3742
        %v3753 = vsel %vm3746, %v3749, %v3752
        %v3754 = vsel %vm3743, nan, %v3753
        %v3755 = vand.u32 2147483647, %v2194
        %vm3756 = vcmp.le.f32.partialorder %v3755, 0.7853982
        %vm3757 = vcmp.lt.s32.totalorder %v2194, 0
        %v3758 = vand.u32 %v2194, 2139095040
        %v3759 = vshrl.u32 %v3758, 23
        %v3760 = vsub.s32 %v3759, 127
        %v3761 = vand.u32 2147483647, %v2194
        %v3762 = vand.u32 %v3761, 8388607
        %v3763 = vor.u32 %v3762, 8388608
        %v3764 = vsub.s32 0, %v3763
        %v3765 = vadd.s32 %v3760, 1
        %vm3766 = vcmp.gt.s32.totalorder %v3765, 0
        %v3767 = vsel %vm3766, %v3765, 0
        %v3768 = vshrl.u32 %v3767, 5
        %v3769 = vand.u32 %v3767, 31
        %v3770 = vsub.s32 32, %v3769
        %v3771 = vshrl.u32 683565275, %v3770
        %v3772 = vshll.u32 683565275, %v3769
        %v3773 = vshrl.u32 2475754826, %v3770
        %v3774 = vor.u32 %v3772, %v3773
        %v3775 = vshll.u32 2475754826, %v3769
        %v3776 = vshrl.u32 2131351028, %v3770
        %v3777 = vor.u32 %v3775, %v3776
        %v3778 = vshll.u32 2131351028, %v3769
        %v3779 = vshrl.u32 2102212464, %v3770
        %v3780 = vor.u32 %v3778, %v3779
        %v3781 = vshll.u32 2102212464, %v3769
        %v3782 = vshrl.u32 920167782, %v3770
        %v3783 = vor.u32 %v3781, %v3782
        %v3784 = vshll.u32 920167782, %v3769
        %v3785 = vshrl.u32 1326507024, %v3770
        %v3786 = vor.u32 %v3784, %v3785
        %vm3787 = vcmp.lt.s32.totalorder %v3768, 1
        %vm3788 = vcmp.lt.s32.totalorder %v3768, 2
        %vm3789 = vcmp.lt.s32.totalorder %v3768, 3
        %vm3790 = vcmp.lt.s32.totalorder %v3768, 4
        %v3791 = vsel %vm3787, %v3771, %v3774
        %v3792 = vsel %vm3790, %v3780, 2102212464
        %v3793 = vsel %vm3789, %v3777, %v3792
        %v3794 = vsel %vm3788, %v3791, %v3793
        %v3795 = vsel %vm3787, %v3774, %v3777
        %v3796 = vsel %vm3790, %v3783, 920167782
        %v3797 = vsel %vm3789, %v3780, %v3796
        %v3798 = vsel %vm3788, %v3795, %v3797
        %v3799 = vsel %vm3787, %v3777, %v3780
        %v3800 = vsel %vm3790, %v3786, 1326507024
        %v3801 = vsel %vm3789, %v3783, %v3800
        %v3802 = vsel %vm3788, %v3799, %v3801
        %v3803 = vshll.u32 %v3763, 8
        %v3804 = vmul.u32.u64.compose %v3803, %v3802
        %v3805 = vextract.low.u32 %v3804
        %v3806 = vextract.high.u32 %v3804
        %v3807 = vmul.u32.u64.compose %v3803, %v3798
        %v3808 = vextract.low.u32 %v3807
        %v3809 = vextract.high.u32 %v3807
        %v3810 = vmul.u32 %v3803, %v3794
        %v3811 = vadd.s32 %v3806, %v3808
        %vm3812 = vc.u32 %v3806, %v3808
        %v3813 = vadd.s32 %v3809, 1
        %v3814 = vsel %vm3812, %v3813, %v3809
        %v3815 = vadd.s32 %v3810, %v3814
        %v3816 = vadd.s32 %v3815, 536870912
        %v3817 = vshrl.u32 %v3816, 30
        %v3818 = vshll.u32 %v3817, 30
        %v3819 = vsub.s32 %v3815, %v3818
        %vm3820 = vcmp.lt.s32.totalorder %v3819, 0
        %v3821 = vsub.s32 0, %v3819
        %v3822 = vsel %vm3820, %v3821, %v3819
        %v3823 = vclz %v3822
        %v3824 = vsub.s32 %v3823, 2
        %vm3825 = vcmp.gt.s32.totalorder 0, %v3824
        %v3826 = vsel %vm3825, 0, %v3824
        %v3827 = vsub.s32 32, %v3826
        %v3828 = vshll.u32 %v3819, %v3826
        %v3829 = vshrl.u32 %v3811, %v3827
        %v3830 = vor.u32 %v3828, %v3829
        %v3831 = vsub.s32 4294967266, %v3826
        %v3832 = vadd.s32 %v3831, 127
        %v3833 = vshll.u32 %v3832, 23
        %v3834 = vor.u32 4788187, %v3833
        %v3835 = vand.u32 2147483647, %v3834
        %v3837 = vcvt.s32.f32 %v3830
        %v3838 = vmul.f32 %v3837, %v3835
        %v3839 = vxor.u32 %v3838, 2147483648
        %v3840 = vsel %vm3757, %v3839, %v3838
        %v3841 = vsub.s32 4, %v3817
        %v3842 = vsel %vm3757, %v3841, %v3817
        %v3843 = vsel %vm3756, %v2194, %v3840
        %v3844 = vsel %vm3756, 0, %v3842
        %v3845 = vcosq.f32.pop %v3843
        %v3846 = vsinq.f32.pop %v3843
        %vm3847 = vweird.f32 %v2194
        %v3848 = vadd.s32 %v3844, 3
        %v3849 = vand.u32 %v3848, 3
        %vm3850 = vcmp.lt.s32.totalorder %v3849, 2
        %vm3851 = vcmp.eq.s32.totalorder %v3849, 0
        %v3852 = vxor.u32 %v3846, 2147483648
        %v3853 = vsel %vm3851, %v3845, %v3852
        %vm3854 = vcmp.eq.s32.totalorder %v3849, 2
        %v3855 = vxor.u32 %v3845, 2147483648
        %v3856 = vsel %vm3854, %v3855, %v3846
        %v3857 = vsel %vm3850, %v3853, %v3856
        %v3858 = vsel %vm3847, nan, %v3857
        %s3859 = scalar_lea.vmem %s163, 128 [#allocation2]
        %3860 = vst.msk [vmem:[%s3859] sm:$0xff] %vm194, %v2298
        %3861 = vst.msk [vmem:[%s3859 + $0x8] sm:$0xff] %vm194, %v2402
        %3862 = vst.msk [vmem:[%s3859 + $0x10] sm:$0xff] %vm194, %v2506
        %3863 = vst.msk [vmem:[%s3859 + $0x18] sm:$0xff] %vm194, %v2610
        %3864 = vst.msk [vmem:[%s3859 + $0x20] sm:$0xff] %vm194, %v2714
        %3865 = vst.msk [vmem:[%s3859 + $0x28] sm:$0xff] %vm194, %v2818
        %3866 = vst.msk [vmem:[%s3859 + $0x30] sm:$0xff] %vm194, %v2922
        %3867 = vst.msk [vmem:[%s3859 + $0x38] sm:$0xff] %vm194, %v3026
        %3868 = vst.msk [vmem:[%s3859 + $0x40] sm:$0xff] %vm194, %v3130
        %3869 = vst.msk [vmem:[%s3859 + $0x48] sm:$0xff] %vm194, %v3234
        %3870 = vst.msk [vmem:[%s3859 + $0x50] sm:$0xff] %vm194, %v3338
        %3871 = vst.msk [vmem:[%s3859 + $0x58] sm:$0xff] %vm194, %v3442
        %3872 = vst.msk [vmem:[%s3859 + $0x60] sm:$0xff] %vm194, %v3546
        %3873 = vst.msk [vmem:[%s3859 + $0x68] sm:$0xff] %vm194, %v3650
        %3874 = vst.msk [vmem:[%s3859 + $0x70] sm:$0xff] %vm194, %v3754
        %3875 = vst.msk [vmem:[%s3859 + $0x78] sm:$0xff] %vm194, %v3858
        %s3876 = sand.u32 %s93, 1
        %s3877 = scalar_lea.sflag [#allocation3], %s3876
        %s3878 = sand.u32 %s93, 1
        %s3879 = smul.addr %s3878, 256
        %s3880 = scalar_lea.vmem [#allocation2], %s3879
        // Predicated region
        $region33: #{tpu_custom_call.1} parent=31 // pred_check
          %p3881 = pneg %p103
        $region34: #{tpu_custom_call.1} parent=31 // pred_check_branch
          %3883 = sbr.rel (%p3881) target = $region36
        $region35: #{tpu_custom_call.1} parent=31 // pred_region
          %s3885 = ssub.s32 4096, 4096
          %3886 = vsyncadd %s3877, %s3885
          %s3887 = smul.addr %s17, 32
          %s3888 = smul.addr %s3887, 128
          %s3889 = scalar_lea.hbm %s3, %s3888
          %s3890 = sshll.u32 %s3880, 4
          %s3891 = int_to_ptr.vmem [resolvable:$true] %s3890
          %3896 = dma.vmem_to_hbm [thread:$0]  %s3891, 4096, %s3889, %s3877, 128, 128, 8
        $region36: #{tpu_custom_call.1} parent=31 // pred_fallthru
          _
      $region32: #{tpu_custom_call.1} parent=5 // pred_fallthru
        _
      %p3897 = scmp.le.s32.totalorder 2, %s12
      // Predicated region
      $region37: #{tpu_custom_call.1} parent=5 // pred_check
        %p3898 = pneg %p3897
      $region38: #{tpu_custom_call.1} parent=5 // pred_check_branch
        %3900 = sbr.rel (%p3898) target = $region40
      $region39: #{tpu_custom_call.1} parent=5 // pred_region
        %s3901 = ssub.s32 %s12, 2
        // Predicated region
        $region41: #{tpu_custom_call.1} parent=39 // pred_check
          %p3902 = pneg %p109
        $region42: #{tpu_custom_call.1} parent=39 // pred_check_branch
          %3904 = sbr.rel (%p3902) target = $region44
        $region43: #{tpu_custom_call.1} parent=39 // pred_region
          %s3905 = sand.u32 %s94, 1
          %s3906 = scalar_lea.sflag [#allocation3], %s3905
          %s3907 = sand.u32 %s94, 1
          %s3908 = smul.addr %s3907, 256
          %s3909 = scalar_lea.vmem [#allocation2], %s3908
          %3910 = dma.done %s3906, 4096
        $region44: #{tpu_custom_call.1} parent=39 // pred_fallthru
          _
      $region40: #{tpu_custom_call.1} parent=5 // pred_fallthru
        _
    $region6: #{tpu_custom_call.1} parent=1 // loop_footer
      %s16 = sadd.s32 1, %s12
    $region7: #{tpu_custom_call.1} parent=1 // loop_footer_branch
      %11 = sbr.rel target = $region3
    $region8: #{tpu_custom_call.1} parent=1 // loop_exit
      _
    %3911 = vsyncpa [#allocation3], 1
    %s3912 = scalar_lea.sflag [#allocation3], 1
    %3913 = vsyncpa %s3912, 1

</llo_original>
